<compile_context>
chip_gen: v7x
topology: tpu7x:2x2x1
jax: 0.10.0
libtpu: 0.0.40
codegen_flags: <defaults>
</compile_context>

<pallas_src>
import jax
import jax.numpy as jnp
from jax.experimental import pallas as pl
from jax.experimental.pallas import tpu as pltpu

_F32 = jnp.float32
_BF16 = jnp.bfloat16


def _sigmoid(x):
    # Stable sigmoid on the EUP: 0.5 * (tanh(x/2) + 1).  Exact parity with
    # torch.sigmoid up to fp rounding, no exp overflow, no VALU divide.
    return 0.5 * (jnp.tanh(0.5 * x) + 1.0)


# -----------------------------------------------------------------------------
# fused kernel: one-hot embedding gathers (MXU) + fused bidirectional GRU
# encoder + one decoder GRU step + 3 stacked Linears to the target vocabulary.
# -----------------------------------------------------------------------------
def _fused_seq2seq_kernel(
        # VMEM operands
        src_tok_ref, dec_tok_ref,          # int32 (2*S*B, 1), (B, 1)
        en_emb_ref, cn_emb_ref,            # bf16 (V_en, E), (V_cn, E)
        ewih_ref, ewhh_ref, ebih_ref, ebhh_ref,   # fused-direction encoder GRU
        dwih_ref, dwhh_ref, dbih_ref, dbhh_ref,   # decoder GRU
        w1_ref, b1_ref, w2_ref, b2_ref, w3_ref, b3_ref,
        # output
        logits_ref):
    two_sb = src_tok_ref.shape[0]
    SB = two_sb // 2
    B = dec_tok_ref.shape[0]
    S = SB // B
    E = en_emb_ref.shape[1]
    H2 = ewhh_ref.shape[1]          # 2H  (fused fwd|bwd hidden width)
    Hd = dwhh_ref.shape[1]          # decoder hidden = 2H
    Ven = en_emb_ref.shape[0]
    Vcn = cn_emb_ref.shape[0]

    # ---- source embedding gather: one-hot bf16 matmul on the MXU --------------
    # rows 0..SB-1 are forward time-major tokens, rows SB..2SB-1 are the same
    # sequence time-reversed (prepared in the wrapper).
    lane_v = jax.lax.broadcasted_iota(jnp.int32, (two_sb, Ven), 1)
    onehot_src = (lane_v == src_tok_ref[...]).astype(_BF16)        # (2SB, Ven)
    x_all = jnp.dot(onehot_src, en_emb_ref[...],
                    preferred_element_type=_F32).astype(_BF16)     # (2SB, E)
    # x_cat[t*B+b] = [ emb(src[b, t]) | emb(src[b, S-1-t]) ]  -> (SB, 2E)
    x_cat = jnp.concatenate([x_all[:SB], x_all[SB:]], axis=-1)

    # ---- hoisted, direction-fused per-gate input projections ------------------
    # ewih[g] is block-diagonal (2E, 2H): forward weights top-left, backward
    # bottom-right.  r/z hidden biases folded here; n-gate hidden bias must stay
    # inside r * (gh_n + b_hn).
    gi = []
    for g in range(3):                                   # gates [r, z, n]
        acc = jnp.dot(x_cat, ewih_ref[g], preferred_element_type=_F32)
        bias = (ebih_ref[g] + ebhh_ref[g]) if g < 2 else ebih_ref[g]
        gi.append(acc + bias)                            # (SB, 2H) f32
    gi_r, gi_z, gi_n = gi
    whr, whz, whn = ewhh_ref[0], ewhh_ref[1], ewhh_ref[2]   # (2H, 2H) block-diag
    bhn = jnp.broadcast_to(ebhh_ref[2], (B, H2))            # hoisted broadcast

    # ---- fused bidirectional recurrence: h = [h_fwd | h_bwd] -------------------
    # Lanes [:H] run the forward direction (input time t); lanes [H:] run the
    # backward direction (input time S-1-t, already baked into x_cat / gi).
    # S is small -> static unroll.
    # TODO(synk): for long sequences use lax.fori_loop(..., unroll=True) and
    # consider fusing the 3 recurrent gate matmuls into one (2H, 6H) matmul.
    h = jnp.zeros((B, H2), _F32)
    for t in range(S):
        hb = h.astype(_BF16)
        gh_r = jnp.dot(hb, whr, preferred_element_type=_F32)
        gh_z = jnp.dot(hb, whz, preferred_element_type=_F32)
        gh_n = jnp.dot(hb, whn, preferred_element_type=_F32)
        lo = t * B
        r = _sigmoid(gi_r[lo:lo + B, :] + gh_r)
        z = _sigmoid(gi_z[lo:lo + B, :] + gh_z)
        n = jnp.tanh(gi_n[lo:lo + B, :] + r * (gh_n + bhn))
        h = (1.0 - z) * n + z * h

    # After the loop, h == cat(h_fwd_final, h_bwd_final) == the PyTorch
    # torch.cat((hid[:, -2], hid[:, -1]), dim=2) hidden -> no extra concat.
    hid = h                                                # (B, 2H) f32
    # NOTE: per-timestep encoder outputs are never consumed downstream, so they
    # are intentionally not written back (no masked partial-lane stores).

    # ---- decoder-step token embedding gather (one-hot matmul) ------------------
    lane_c = jax.lax.broadcasted_iota(jnp.int32, (B, Vcn), 1)
    onehot_dec = (lane_c == dec_tok_ref[...]).astype(_BF16)        # (B, Vcn)
    xd = jnp.dot(onehot_dec, cn_emb_ref[...],
                 preferred_element_type=_F32).astype(_BF16)        # (B, E)

    # ---- one decoder GRU step (hidden = 2H), gate-separated --------------------
    hid_b = hid.astype(_BF16)
    gi_rd = jnp.dot(xd, dwih_ref[0], preferred_element_type=_F32) + (dbih_ref[0] + dbhh_ref[0])
    gi_zd = jnp.dot(xd, dwih_ref[1], preferred_element_type=_F32) + (dbih_ref[1] + dbhh_ref[1])
    gi_nd = jnp.dot(xd, dwih_ref[2], preferred_element_type=_F32) + dbih_ref[2]
    gh_rd = jnp.dot(hid_b, dwhh_ref[0], preferred_element_type=_F32)
    gh_zd = jnp.dot(hid_b, dwhh_ref[1], preferred_element_type=_F32)
    gh_nd = jnp.dot(hid_b, dwhh_ref[2], preferred_element_type=_F32) + dbhh_ref[2]
    r = _sigmoid(gi_rd + gh_rd)
    z = _sigmoid(gi_zd + gh_zd)
    n = jnp.tanh(gi_nd + r * gh_nd)
    h_new = (1.0 - z) * n + z * hid                        # (B, 2H) f32

    # ---- embedding2vocab{1,2,3}: 2H -> 4H -> 8H -> V (bf16 MXU, f32 acc) -------
    y = jnp.dot(h_new.astype(_BF16), w1_ref[...], preferred_element_type=_F32) + b1_ref[...]
    y = jnp.dot(y.astype(_BF16), w2_ref[...], preferred_element_type=_F32) + b2_ref[...]
    y = jnp.dot(y.astype(_BF16), w3_ref[...], preferred_element_type=_F32) + b3_ref[...]
    logits_ref[...] = y                                    # lane-dense (B, V)


# -----------------------------------------------------------------------------
# pallas_call wrapper: layout transforms (block-diagonal direction fusion,
# bf16 casts, time-major token columns) happen here, outside the kernel.
# -----------------------------------------------------------------------------
def _fused_seq2seq(p, src_tokens, dec_tok):
    B, S = src_tokens.shape
    E = p["en_emb"].shape[1]
    H = p["enc_whh_f"].shape[1]
    Hd = p["dec_whh"].shape[1]
    V = p["dec_w3"].shape[1]
    Ven = p["en_emb"].shape[0]
    Vcn = p["cn_emb"].shape[0]

    bf = lambda a: a.astype(_BF16)   # MXU operands in bf16; biases stay f32

    def blkdiag(a, b):
        z_tr = jnp.zeros((a.shape[0], b.shape[1]), a.dtype)
        z_bl = jnp.zeros((b.shape[0], a.shape[1]), a.dtype)
        return jnp.concatenate(
            [jnp.concatenate([a, z_tr], axis=1),
             jnp.concatenate([z_bl, b], axis=1)], axis=0)

    # direction-fused encoder weights: per gate block-diag (fwd top-left,
    # bwd bottom-right); biases lane-concatenated [b_fwd | b_bwd].
    ewih = jnp.stack([blkdiag(p["enc_wih_f"][g], p["enc_wih_b"][g]) for g in range(3)])
    ewhh = jnp.stack([blkdiag(p["enc_whh_f"][g], p["enc_whh_b"][g]) for g in range(3)])
    ebih = jnp.concatenate([p["enc_bih_f"], p["enc_bih_b"]], axis=-1)   # (3,1,2H)
    ebhh = jnp.concatenate([p["enc_bhh_f"], p["enc_bhh_b"]], axis=-1)   # (3,1,2H)

    # token columns: rows 0..S*B-1 = forward time-major, rows S*B.. = reversed.
    src_tm = src_tokens.astype(jnp.int32).T                # (S, B), row t*B+b = src[b, t]
    tok2 = jnp.concatenate([src_tm.reshape(S * B, 1),
                            src_tm[::-1].reshape(S * B, 1)], axis=0)   # (2SB, 1)
    dec_col = dec_tok.astype(jnp.int32).reshape(B, 1)

    vmem_args = (
        tok2, dec_col,
        bf(p["en_emb"]), bf(p["cn_emb"]),
        bf(ewih), bf(ewhh), ebih, ebhh,
        bf(p["dec_wih"]), bf(p["dec_whh"]), p["dec_bih"], p["dec_bhh"],
        bf(p["dec_w1"]), p["dec_b1"],
        bf(p["dec_w2"]), p["dec_b2"],
        bf(p["dec_w3"]), p["dec_b3"],
    )

    flops = (2 * 2 * S * B * Ven * E                       # one-hot source gather
             + 2 * B * Vcn * E                             # one-hot decoder gather
             + 2 * 3 * S * B * (2 * E) * (2 * H)           # hoisted input proj
             + 2 * 3 * S * B * (2 * H) * (2 * H)           # fused recurrent h @ W_hh
             + 2 * 3 * B * (E * Hd + Hd * Hd)              # decoder GRU step
             + 2 * B * (Hd * 2 * Hd + 2 * Hd * 4 * Hd + 4 * Hd * V))  # linears
    transcendentals = 3 * S * B * 2 * H + 3 * B * Hd
    bytes_accessed = (sum(int(a.size) * a.dtype.itemsize for a in vmem_args)
                      + B * V * 4)

    # TODO(synk): for production shapes tile dec_w3/b3/logits over V with a
    # "parallel" grid axis and keep the embedding tables in HBM (pl.ANY) with
    # per-row DMA gathers; here everything fits VMEM comfortably.
    return pl.pallas_call(
        _fused_seq2seq_kernel,
        out_shape=jax.ShapeDtypeStruct((B, V), _F32),
        in_specs=[pl.BlockSpec(memory_space=pltpu.MemorySpace.VMEM)] * len(vmem_args),
        out_specs=pl.BlockSpec(memory_space=pltpu.MemorySpace.VMEM),
        compiler_params=pltpu.CompilerParams(
            vmem_limit_bytes=32 << 20),   # explicit; safe on v5e/v6e/v7x
        cost_estimate=pl.CostEstimate(flops=flops,
                                      transcendentals=transcendentals,
                                      bytes_accessed=bytes_accessed),
    )(*vmem_args)


# -----------------------------------------------------------------------------
# full seq2seq.forward (single decode step, matching the early return)
# -----------------------------------------------------------------------------
@jax.jit
def seq2seq_forward(params, src_tokens, target_tokens):
    B, T = target_tokens.shape
    V = params["dec_w3"].shape[1]
    logits = _fused_seq2seq(params, src_tokens, target_tokens[:, 0])  # (B, V)
    outputs = jnp.zeros((B, T, V), _F32).at[:, 1].set(logits)
    top1 = jnp.argmax(logits, axis=1).astype(jnp.int32)               # (B,)
    preds = top1[:, None]                                             # (B, 1)
    return outputs, preds


# -----------------------------------------------------------------------------
# deterministic parameter construction (gate-separated layout, weights (in, out))
# -----------------------------------------------------------------------------
def make_params(key, en_vocab, cn_vocab, emb_dim, hid_dim):
    ks = iter(jax.random.split(key, 32))
    nrm = lambda shape, s=0.1: (s * jax.random.normal(next(ks), shape)).astype(_F32)

    H, E = hid_dim, emb_dim
    Hd = 2 * H
    return {
        "en_emb": nrm((en_vocab, E)),
        "cn_emb": nrm((cn_vocab, E)),
        # encoder bidirectional GRU; gates stacked as [r, z, n]
        "enc_wih_f": nrm((3, E, H)), "enc_whh_f": nrm((3, H, H)),
        "enc_bih_f": nrm((3, 1, H)), "enc_bhh_f": nrm((3, 1, H)),
        "enc_wih_b": nrm((3, E, H)), "enc_whh_b": nrm((3, H, H)),
        "enc_bih_b": nrm((3, 1, H)), "enc_bhh_b": nrm((3, 1, H)),
        # decoder GRU (hidden = 2H)
        "dec_wih": nrm((3, E, Hd)), "dec_whh": nrm((3, Hd, Hd)),
        "dec_bih": nrm((3, 1, Hd)), "dec_bhh": nrm((3, 1, Hd)),
        # embedding2vocab{1,2,3}: 2H -> 4H -> 8H -> cn_vocab
        "dec_w1": nrm((Hd, 2 * Hd)), "dec_b1": nrm((1, 2 * Hd)),
        "dec_w2": nrm((2 * Hd, 4 * Hd)), "dec_b2": nrm((1, 4 * Hd)),
        "dec_w3": nrm((4 * Hd, cn_vocab)), "dec_b3": nrm((1, cn_vocab)),
    }


if __name__ == "__main__":
    key = jax.random.PRNGKey(0)
    k_par, k_src, k_tgt = jax.random.split(key, 3)

    B, SRC_LEN, TGT_LEN = 2, 8, 8
    EN_VOCAB, CN_VOCAB = 64, 128
    EMB_DIM, HID_DIM = 32, 32

    params = make_params(k_par, EN_VOCAB, CN_VOCAB, EMB_DIM, HID_DIM)
    src = jax.random.randint(k_src, (B, SRC_LEN), 0, EN_VOCAB, dtype=jnp.int32)
    tgt = jax.random.randint(k_tgt, (B, TGT_LEN), 0, CN_VOCAB, dtype=jnp.int32)

    outputs, preds = seq2seq_forward(params, src, tgt)
    jax.block_until_ready((outputs, preds))

    assert outputs.shape == (B, TGT_LEN, CN_VOCAB)
    assert preds.shape == (B, 1)
    print("KERNEL_OK")
</pallas_src>

<mosaic_0001>
module attributes {stable_mosaic.version = 11 : i64} {
  func.func @_fused_seq2seq_kernel(%arg0: memref<32x1xi32, #tpu.memory_space<vmem>>, %arg1: memref<2x1xi32, #tpu.memory_space<vmem>>, %arg2: memref<64x32xbf16, #tpu.memory_space<vmem>>, %arg3: memref<128x32xbf16, #tpu.memory_space<vmem>>, %arg4: memref<3x64x64xbf16, #tpu.memory_space<vmem>>, %arg5: memref<3x64x64xbf16, #tpu.memory_space<vmem>>, %arg6: memref<3x1x64xf32, #tpu.memory_space<vmem>>, %arg7: memref<3x1x64xf32, #tpu.memory_space<vmem>>, %arg8: memref<3x32x64xbf16, #tpu.memory_space<vmem>>, %arg9: memref<3x64x64xbf16, #tpu.memory_space<vmem>>, %arg10: memref<3x1x64xf32, #tpu.memory_space<vmem>>, %arg11: memref<3x1x64xf32, #tpu.memory_space<vmem>>, %arg12: memref<64x128xbf16, #tpu.memory_space<vmem>>, %arg13: memref<1x128xf32, #tpu.memory_space<vmem>>, %arg14: memref<128x256xbf16, #tpu.memory_space<vmem>>, %arg15: memref<1x256xf32, #tpu.memory_space<vmem>>, %arg16: memref<256x128xbf16, #tpu.memory_space<vmem>>, %arg17: memref<1x128xf32, #tpu.memory_space<vmem>>, %arg18: memref<2x128xf32, #tpu.memory_space<vmem>>) attributes {dimension_semantics = [], scalar_prefetch = 0 : i64, scratch_operands = 0 : i64, tpu.core_type = #tpu.core_type<tc>} {
    %0 = tpu.iota {dimensions = array<i32: 1>} : vector<32x64xi32>
    %c0 = arith.constant 0 : index
    %c0_0 = arith.constant 0 : index
    %1 = vector.load %arg0[%c0, %c0_0] : memref<32x1xi32, #tpu.memory_space<vmem>>, vector<32x1xi32>
    %2 = vector.broadcast %1 : vector<32x1xi32> to vector<32x64xi32>
    %3 = arith.cmpi eq, %0, %2 : vector<32x64xi32>
    %4 = arith.extui %3 : vector<32x64xi1> to vector<32x64xi32>
    %5 = arith.sitofp %4 : vector<32x64xi32> to vector<32x64xf32>
    %6 = arith.truncf %5 : vector<32x64xf32> to vector<32x64xbf16>
    %c0_1 = arith.constant 0 : index
    %c0_2 = arith.constant 0 : index
    %7 = vector.load %arg2[%c0_1, %c0_2] : memref<64x32xbf16, #tpu.memory_space<vmem>>, vector<64x32xbf16>
    %cst = arith.constant dense<0.000000e+00> : vector<32x32xf32>
    %8 = tpu.matmul %6, %7, %cst {dimension_numbers = #tpu.dot_dimension_numbers<[1], [0], [0], [1], [0, 0, 1, 1], [], []>} : vector<32x64xbf16>, vector<64x32xbf16>, vector<32x32xf32> -> vector<32x32xf32>
    %9 = arith.truncf %8 : vector<32x32xf32> to vector<32x32xbf16>
    %10 = vector.extract_strided_slice %9 {offsets = [0, 0], sizes = [16, 32], strides = [1, 1]} : vector<32x32xbf16> to vector<16x32xbf16>
    %11 = vector.extract_strided_slice %9 {offsets = [16, 0], sizes = [16, 32], strides = [1, 1]} : vector<32x32xbf16> to vector<16x32xbf16>
    %12 = tpu.concatenate %10, %11 in 1 : vector<16x32xbf16>, vector<16x32xbf16> -> vector<16x64xbf16>
    %c0_3 = arith.constant 0 : index
    %c0_4 = arith.constant 0 : index
    %c0_5 = arith.constant 0 : index
    %13 = vector.load %arg4[%c0_3, %c0_4, %c0_5] : memref<3x64x64xbf16, #tpu.memory_space<vmem>>, vector<1x64x64xbf16>
    %14 = vector.shape_cast %13 : vector<1x64x64xbf16> to vector<64x64xbf16>
    %cst_6 = arith.constant dense<0.000000e+00> : vector<16x64xf32>
    %15 = tpu.matmul %12, %14, %cst_6 {dimension_numbers = #tpu.dot_dimension_numbers<[1], [0], [0], [1], [0, 0, 1, 1], [], []>} : vector<16x64xbf16>, vector<64x64xbf16>, vector<16x64xf32> -> vector<16x64xf32>
    %c0_7 = arith.constant 0 : index
    %c0_8 = arith.constant 0 : index
    %c0_9 = arith.constant 0 : index
    %16 = vector.load %arg6[%c0_7, %c0_8, %c0_9] : memref<3x1x64xf32, #tpu.memory_space<vmem>>, vector<1x1x64xf32>
    %17 = vector.shape_cast %16 : vector<1x1x64xf32> to vector<1x64xf32>
    %c0_10 = arith.constant 0 : index
    %c0_11 = arith.constant 0 : index
    %c0_12 = arith.constant 0 : index
    %18 = vector.load %arg7[%c0_10, %c0_11, %c0_12] : memref<3x1x64xf32, #tpu.memory_space<vmem>>, vector<1x1x64xf32>
    %19 = vector.shape_cast %18 : vector<1x1x64xf32> to vector<1x64xf32>
    %20 = arith.addf %17, %19 : vector<1x64xf32>
    %21 = vector.broadcast %20 : vector<1x64xf32> to vector<16x64xf32>
    %22 = arith.addf %15, %21 : vector<16x64xf32>
    %c1 = arith.constant 1 : index
    %c0_13 = arith.constant 0 : index
    %c0_14 = arith.constant 0 : index
    %23 = vector.load %arg4[%c1, %c0_13, %c0_14] : memref<3x64x64xbf16, #tpu.memory_space<vmem>>, vector<1x64x64xbf16>
    %24 = vector.shape_cast %23 : vector<1x64x64xbf16> to vector<64x64xbf16>
    %cst_15 = arith.constant dense<0.000000e+00> : vector<16x64xf32>
    %25 = tpu.matmul %12, %24, %cst_15 {dimension_numbers = #tpu.dot_dimension_numbers<[1], [0], [0], [1], [0, 0, 1, 1], [], []>} : vector<16x64xbf16>, vector<64x64xbf16>, vector<16x64xf32> -> vector<16x64xf32>
    %c1_16 = arith.constant 1 : index
    %c0_17 = arith.constant 0 : index
    %c0_18 = arith.constant 0 : index
    %26 = vector.load %arg6[%c1_16, %c0_17, %c0_18] : memref<3x1x64xf32, #tpu.memory_space<vmem>>, vector<1x1x64xf32>
    %27 = vector.shape_cast %26 : vector<1x1x64xf32> to vector<1x64xf32>
    %c1_19 = arith.constant 1 : index
    %c0_20 = arith.constant 0 : index
    %c0_21 = arith.constant 0 : index
    %28 = vector.load %arg7[%c1_19, %c0_20, %c0_21] : memref<3x1x64xf32, #tpu.memory_space<vmem>>, vector<1x1x64xf32>
    %29 = vector.shape_cast %28 : vector<1x1x64xf32> to vector<1x64xf32>
    %30 = arith.addf %27, %29 : vector<1x64xf32>
    %31 = vector.broadcast %30 : vector<1x64xf32> to vector<16x64xf32>
    %32 = arith.addf %25, %31 : vector<16x64xf32>
    %c2 = arith.constant 2 : index
    %c0_22 = arith.constant 0 : index
    %c0_23 = arith.constant 0 : index
    %33 = vector.load %arg4[%c2, %c0_22, %c0_23] : memref<3x64x64xbf16, #tpu.memory_space<vmem>>, vector<1x64x64xbf16>
    %34 = vector.shape_cast %33 : vector<1x64x64xbf16> to vector<64x64xbf16>
    %cst_24 = arith.constant dense<0.000000e+00> : vector<16x64xf32>
    %35 = tpu.matmul %12, %34, %cst_24 {dimension_numbers = #tpu.dot_dimension_numbers<[1], [0], [0], [1], [0, 0, 1, 1], [], []>} : vector<16x64xbf16>, vector<64x64xbf16>, vector<16x64xf32> -> vector<16x64xf32>
    %c2_25 = arith.constant 2 : index
    %c0_26 = arith.constant 0 : index
    %c0_27 = arith.constant 0 : index
    %36 = vector.load %arg6[%c2_25, %c0_26, %c0_27] : memref<3x1x64xf32, #tpu.memory_space<vmem>>, vector<1x1x64xf32>
    %37 = vector.shape_cast %36 : vector<1x1x64xf32> to vector<1x64xf32>
    %38 = vector.broadcast %37 : vector<1x64xf32> to vector<16x64xf32>
    %39 = arith.addf %35, %38 : vector<16x64xf32>
    %c0_28 = arith.constant 0 : index
    %c0_29 = arith.constant 0 : index
    %c0_30 = arith.constant 0 : index
    %40 = vector.load %arg5[%c0_28, %c0_29, %c0_30] : memref<3x64x64xbf16, #tpu.memory_space<vmem>>, vector<1x64x64xbf16>
    %41 = vector.shape_cast %40 : vector<1x64x64xbf16> to vector<64x64xbf16>
    %c1_31 = arith.constant 1 : index
    %c0_32 = arith.constant 0 : index
    %c0_33 = arith.constant 0 : index
    %42 = vector.load %arg5[%c1_31, %c0_32, %c0_33] : memref<3x64x64xbf16, #tpu.memory_space<vmem>>, vector<1x64x64xbf16>
    %43 = vector.shape_cast %42 : vector<1x64x64xbf16> to vector<64x64xbf16>
    %c2_34 = arith.constant 2 : index
    %c0_35 = arith.constant 0 : index
    %c0_36 = arith.constant 0 : index
    %44 = vector.load %arg5[%c2_34, %c0_35, %c0_36] : memref<3x64x64xbf16, #tpu.memory_space<vmem>>, vector<1x64x64xbf16>
    %45 = vector.shape_cast %44 : vector<1x64x64xbf16> to vector<64x64xbf16>
    %c2_37 = arith.constant 2 : index
    %c0_38 = arith.constant 0 : index
    %c0_39 = arith.constant 0 : index
    %46 = vector.load %arg7[%c2_37, %c0_38, %c0_39] : memref<3x1x64xf32, #tpu.memory_space<vmem>>, vector<1x1x64xf32>
    %47 = vector.shape_cast %46 : vector<1x1x64xf32> to vector<1x64xf32>
    %48 = vector.shape_cast %47 : vector<1x64xf32> to vector<1x64xf32>
    %49 = vector.broadcast %48 : vector<1x64xf32> to vector<2x64xf32>
    %cst_40 = arith.constant 0.000000e+00 : f32
    %50 = vector.broadcast %cst_40 : f32 to vector<2x64xf32>
    %51 = arith.truncf %50 : vector<2x64xf32> to vector<2x64xbf16>
    %cst_41 = arith.constant dense<0.000000e+00> : vector<2x64xf32>
    %52 = tpu.matmul %51, %41, %cst_41 {dimension_numbers = #tpu.dot_dimension_numbers<[1], [0], [0], [1], [0, 0, 1, 1], [], []>} : vector<2x64xbf16>, vector<64x64xbf16>, vector<2x64xf32> -> vector<2x64xf32>
    %cst_42 = arith.constant dense<0.000000e+00> : vector<2x64xf32>
    %53 = tpu.matmul %51, %43, %cst_42 {dimension_numbers = #tpu.dot_dimension_numbers<[1], [0], [0], [1], [0, 0, 1, 1], [], []>} : vector<2x64xbf16>, vector<64x64xbf16>, vector<2x64xf32> -> vector<2x64xf32>
    %cst_43 = arith.constant dense<0.000000e+00> : vector<2x64xf32>
    %54 = tpu.matmul %51, %45, %cst_43 {dimension_numbers = #tpu.dot_dimension_numbers<[1], [0], [0], [1], [0, 0, 1, 1], [], []>} : vector<2x64xbf16>, vector<64x64xbf16>, vector<2x64xf32> -> vector<2x64xf32>
    %55 = vector.extract_strided_slice %22 {offsets = [0, 0], sizes = [2, 64], strides = [1, 1]} : vector<16x64xf32> to vector<2x64xf32>
    %56 = arith.addf %55, %52 : vector<2x64xf32>
    %cst_44 = arith.constant 5.000000e-01 : f32
    %57 = vector.broadcast %cst_44 : f32 to vector<2x64xf32>
    %58 = arith.mulf %57, %56 : vector<2x64xf32>
    %59 = math.tanh %58 : vector<2x64xf32>
    %cst_45 = arith.constant 1.000000e+00 : f32
    %60 = vector.broadcast %cst_45 : f32 to vector<2x64xf32>
    %61 = arith.addf %59, %60 : vector<2x64xf32>
    %cst_46 = arith.constant 5.000000e-01 : f32
    %62 = vector.broadcast %cst_46 : f32 to vector<2x64xf32>
    %63 = arith.mulf %62, %61 : vector<2x64xf32>
    %64 = vector.extract_strided_slice %32 {offsets = [0, 0], sizes = [2, 64], strides = [1, 1]} : vector<16x64xf32> to vector<2x64xf32>
    %65 = arith.addf %64, %53 : vector<2x64xf32>
    %cst_47 = arith.constant 5.000000e-01 : f32
    %66 = vector.broadcast %cst_47 : f32 to vector<2x64xf32>
    %67 = arith.mulf %66, %65 : vector<2x64xf32>
    %68 = math.tanh %67 : vector<2x64xf32>
    %cst_48 = arith.constant 1.000000e+00 : f32
    %69 = vector.broadcast %cst_48 : f32 to vector<2x64xf32>
    %70 = arith.addf %68, %69 : vector<2x64xf32>
    %cst_49 = arith.constant 5.000000e-01 : f32
    %71 = vector.broadcast %cst_49 : f32 to vector<2x64xf32>
    %72 = arith.mulf %71, %70 : vector<2x64xf32>
    %73 = vector.extract_strided_slice %39 {offsets = [0, 0], sizes = [2, 64], strides = [1, 1]} : vector<16x64xf32> to vector<2x64xf32>
    %74 = arith.addf %54, %49 : vector<2x64xf32>
    %75 = arith.mulf %63, %74 : vector<2x64xf32>
    %76 = arith.addf %73, %75 : vector<2x64xf32>
    %77 = math.tanh %76 : vector<2x64xf32>
    %cst_50 = arith.constant 1.000000e+00 : f32
    %78 = vector.broadcast %cst_50 : f32 to vector<2x64xf32>
    %79 = arith.subf %78, %72 : vector<2x64xf32>
    %80 = arith.mulf %79, %77 : vector<2x64xf32>
    %81 = arith.mulf %72, %50 : vector<2x64xf32>
    %82 = arith.addf %80, %81 : vector<2x64xf32>
    %83 = arith.truncf %82 : vector<2x64xf32> to vector<2x64xbf16>
    %cst_51 = arith.constant dense<0.000000e+00> : vector<2x64xf32>
    %84 = tpu.matmul %83, %41, %cst_51 {dimension_numbers = #tpu.dot_dimension_numbers<[1], [0], [0], [1], [0, 0, 1, 1], [], []>} : vector<2x64xbf16>, vector<64x64xbf16>, vector<2x64xf32> -> vector<2x64xf32>
    %cst_52 = arith.constant dense<0.000000e+00> : vector<2x64xf32>
    %85 = tpu.matmul %83, %43, %cst_52 {dimension_numbers = #tpu.dot_dimension_numbers<[1], [0], [0], [1], [0, 0, 1, 1], [], []>} : vector<2x64xbf16>, vector<64x64xbf16>, vector<2x64xf32> -> vector<2x64xf32>
    %cst_53 = arith.constant dense<0.000000e+00> : vector<2x64xf32>
    %86 = tpu.matmul %83, %45, %cst_53 {dimension_numbers = #tpu.dot_dimension_numbers<[1], [0], [0], [1], [0, 0, 1, 1], [], []>} : vector<2x64xbf16>, vector<64x64xbf16>, vector<2x64xf32> -> vector<2x64xf32>
    %87 = vector.extract_strided_slice %22 {offsets = [2, 0], sizes = [2, 64], strides = [1, 1]} : vector<16x64xf32> to vector<2x64xf32>
    %88 = arith.addf %87, %84 : vector<2x64xf32>
    %cst_54 = arith.constant 5.000000e-01 : f32
    %89 = vector.broadcast %cst_54 : f32 to vector<2x64xf32>
    %90 = arith.mulf %89, %88 : vector<2x64xf32>
    %91 = math.tanh %90 : vector<2x64xf32>
    %cst_55 = arith.constant 1.000000e+00 : f32
    %92 = vector.broadcast %cst_55 : f32 to vector<2x64xf32>
    %93 = arith.addf %91, %92 : vector<2x64xf32>
    %cst_56 = arith.constant 5.000000e-01 : f32
    %94 = vector.broadcast %cst_56 : f32 to vector<2x64xf32>
    %95 = arith.mulf %94, %93 : vector<2x64xf32>
    %96 = vector.extract_strided_slice %32 {offsets = [2, 0], sizes = [2, 64], strides = [1, 1]} : vector<16x64xf32> to vector<2x64xf32>
    %97 = arith.addf %96, %85 : vector<2x64xf32>
    %cst_57 = arith.constant 5.000000e-01 : f32
    %98 = vector.broadcast %cst_57 : f32 to vector<2x64xf32>
    %99 = arith.mulf %98, %97 : vector<2x64xf32>
    %100 = math.tanh %99 : vector<2x64xf32>
    %cst_58 = arith.constant 1.000000e+00 : f32
    %101 = vector.broadcast %cst_58 : f32 to vector<2x64xf32>
    %102 = arith.addf %100, %101 : vector<2x64xf32>
    %cst_59 = arith.constant 5.000000e-01 : f32
    %103 = vector.broadcast %cst_59 : f32 to vector<2x64xf32>
    %104 = arith.mulf %103, %102 : vector<2x64xf32>
    %105 = vector.extract_strided_slice %39 {offsets = [2, 0], sizes = [2, 64], strides = [1, 1]} : vector<16x64xf32> to vector<2x64xf32>
    %106 = arith.addf %86, %49 : vector<2x64xf32>
    %107 = arith.mulf %95, %106 : vector<2x64xf32>
    %108 = arith.addf %105, %107 : vector<2x64xf32>
    %109 = math.tanh %108 : vector<2x64xf32>
    %cst_60 = arith.constant 1.000000e+00 : f32
    %110 = vector.broadcast %cst_60 : f32 to vector<2x64xf32>
    %111 = arith.subf %110, %104 : vector<2x64xf32>
    %112 = arith.mulf %111, %109 : vector<2x64xf32>
    %113 = arith.mulf %104, %82 : vector<2x64xf32>
    %114 = arith.addf %112, %113 : vector<2x64xf32>
    %115 = arith.truncf %114 : vector<2x64xf32> to vector<2x64xbf16>
    %cst_61 = arith.constant dense<0.000000e+00> : vector<2x64xf32>
    %116 = tpu.matmul %115, %41, %cst_61 {dimension_numbers = #tpu.dot_dimension_numbers<[1], [0], [0], [1], [0, 0, 1, 1], [], []>} : vector<2x64xbf16>, vector<64x64xbf16>, vector<2x64xf32> -> vector<2x64xf32>
    %cst_62 = arith.constant dense<0.000000e+00> : vector<2x64xf32>
    %117 = tpu.matmul %115, %43, %cst_62 {dimension_numbers = #tpu.dot_dimension_numbers<[1], [0], [0], [1], [0, 0, 1, 1], [], []>} : vector<2x64xbf16>, vector<64x64xbf16>, vector<2x64xf32> -> vector<2x64xf32>
    %cst_63 = arith.constant dense<0.000000e+00> : vector<2x64xf32>
    %118 = tpu.matmul %115, %45, %cst_63 {dimension_numbers = #tpu.dot_dimension_numbers<[1], [0], [0], [1], [0, 0, 1, 1], [], []>} : vector<2x64xbf16>, vector<64x64xbf16>, vector<2x64xf32> -> vector<2x64xf32>
    %119 = vector.extract_strided_slice %22 {offsets = [4, 0], sizes = [2, 64], strides = [1, 1]} : vector<16x64xf32> to vector<2x64xf32>
    %120 = arith.addf %119, %116 : vector<2x64xf32>
    %cst_64 = arith.constant 5.000000e-01 : f32
    %121 = vector.broadcast %cst_64 : f32 to vector<2x64xf32>
    %122 = arith.mulf %121, %120 : vector<2x64xf32>
    %123 = math.tanh %122 : vector<2x64xf32>
    %cst_65 = arith.constant 1.000000e+00 : f32
    %124 = vector.broadcast %cst_65 : f32 to vector<2x64xf32>
    %125 = arith.addf %123, %124 : vector<2x64xf32>
    %cst_66 = arith.constant 5.000000e-01 : f32
    %126 = vector.broadcast %cst_66 : f32 to vector<2x64xf32>
    %127 = arith.mulf %126, %125 : vector<2x64xf32>
    %128 = vector.extract_strided_slice %32 {offsets = [4, 0], sizes = [2, 64], strides = [1, 1]} : vector<16x64xf32> to vector<2x64xf32>
    %129 = arith.addf %128, %117 : vector<2x64xf32>
    %cst_67 = arith.constant 5.000000e-01 : f32
    %130 = vector.broadcast %cst_67 : f32 to vector<2x64xf32>
    %131 = arith.mulf %130, %129 : vector<2x64xf32>
    %132 = math.tanh %131 : vector<2x64xf32>
    %cst_68 = arith.constant 1.000000e+00 : f32
    %133 = vector.broadcast %cst_68 : f32 to vector<2x64xf32>
    %134 = arith.addf %132, %133 : vector<2x64xf32>
    %cst_69 = arith.constant 5.000000e-01 : f32
    %135 = vector.broadcast %cst_69 : f32 to vector<2x64xf32>
    %136 = arith.mulf %135, %134 : vector<2x64xf32>
    %137 = vector.extract_strided_slice %39 {offsets = [4, 0], sizes = [2, 64], strides = [1, 1]} : vector<16x64xf32> to vector<2x64xf32>
    %138 = arith.addf %118, %49 : vector<2x64xf32>
    %139 = arith.mulf %127, %138 : vector<2x64xf32>
    %140 = arith.addf %137, %139 : vector<2x64xf32>
    %141 = math.tanh %140 : vector<2x64xf32>
    %cst_70 = arith.constant 1.000000e+00 : f32
    %142 = vector.broadcast %cst_70 : f32 to vector<2x64xf32>
    %143 = arith.subf %142, %136 : vector<2x64xf32>
    %144 = arith.mulf %143, %141 : vector<2x64xf32>
    %145 = arith.mulf %136, %114 : vector<2x64xf32>
    %146 = arith.addf %144, %145 : vector<2x64xf32>
    %147 = arith.truncf %146 : vector<2x64xf32> to vector<2x64xbf16>
    %cst_71 = arith.constant dense<0.000000e+00> : vector<2x64xf32>
    %148 = tpu.matmul %147, %41, %cst_71 {dimension_numbers = #tpu.dot_dimension_numbers<[1], [0], [0], [1], [0, 0, 1, 1], [], []>} : vector<2x64xbf16>, vector<64x64xbf16>, vector<2x64xf32> -> vector<2x64xf32>
    %cst_72 = arith.constant dense<0.000000e+00> : vector<2x64xf32>
    %149 = tpu.matmul %147, %43, %cst_72 {dimension_numbers = #tpu.dot_dimension_numbers<[1], [0], [0], [1], [0, 0, 1, 1], [], []>} : vector<2x64xbf16>, vector<64x64xbf16>, vector<2x64xf32> -> vector<2x64xf32>
    %cst_73 = arith.constant dense<0.000000e+00> : vector<2x64xf32>
    %150 = tpu.matmul %147, %45, %cst_73 {dimension_numbers = #tpu.dot_dimension_numbers<[1], [0], [0], [1], [0, 0, 1, 1], [], []>} : vector<2x64xbf16>, vector<64x64xbf16>, vector<2x64xf32> -> vector<2x64xf32>
    %151 = vector.extract_strided_slice %22 {offsets = [6, 0], sizes = [2, 64], strides = [1, 1]} : vector<16x64xf32> to vector<2x64xf32>
    %152 = arith.addf %151, %148 : vector<2x64xf32>
    %cst_74 = arith.constant 5.000000e-01 : f32
    %153 = vector.broadcast %cst_74 : f32 to vector<2x64xf32>
    %154 = arith.mulf %153, %152 : vector<2x64xf32>
    %155 = math.tanh %154 : vector<2x64xf32>
    %cst_75 = arith.constant 1.000000e+00 : f32
    %156 = vector.broadcast %cst_75 : f32 to vector<2x64xf32>
    %157 = arith.addf %155, %156 : vector<2x64xf32>
    %cst_76 = arith.constant 5.000000e-01 : f32
    %158 = vector.broadcast %cst_76 : f32 to vector<2x64xf32>
    %159 = arith.mulf %158, %157 : vector<2x64xf32>
    %160 = vector.extract_strided_slice %32 {offsets = [6, 0], sizes = [2, 64], strides = [1, 1]} : vector<16x64xf32> to vector<2x64xf32>
    %161 = arith.addf %160, %149 : vector<2x64xf32>
    %cst_77 = arith.constant 5.000000e-01 : f32
    %162 = vector.broadcast %cst_77 : f32 to vector<2x64xf32>
    %163 = arith.mulf %162, %161 : vector<2x64xf32>
    %164 = math.tanh %163 : vector<2x64xf32>
    %cst_78 = arith.constant 1.000000e+00 : f32
    %165 = vector.broadcast %cst_78 : f32 to vector<2x64xf32>
    %166 = arith.addf %164, %165 : vector<2x64xf32>
    %cst_79 = arith.constant 5.000000e-01 : f32
    %167 = vector.broadcast %cst_79 : f32 to vector<2x64xf32>
    %168 = arith.mulf %167, %166 : vector<2x64xf32>
    %169 = vector.extract_strided_slice %39 {offsets = [6, 0], sizes = [2, 64], strides = [1, 1]} : vector<16x64xf32> to vector<2x64xf32>
    %170 = arith.addf %150, %49 : vector<2x64xf32>
    %171 = arith.mulf %159, %170 : vector<2x64xf32>
    %172 = arith.addf %169, %171 : vector<2x64xf32>
    %173 = math.tanh %172 : vector<2x64xf32>
    %cst_80 = arith.constant 1.000000e+00 : f32
    %174 = vector.broadcast %cst_80 : f32 to vector<2x64xf32>
    %175 = arith.subf %174, %168 : vector<2x64xf32>
    %176 = arith.mulf %175, %173 : vector<2x64xf32>
    %177 = arith.mulf %168, %146 : vector<2x64xf32>
    %178 = arith.addf %176, %177 : vector<2x64xf32>
    %179 = arith.truncf %178 : vector<2x64xf32> to vector<2x64xbf16>
    %cst_81 = arith.constant dense<0.000000e+00> : vector<2x64xf32>
    %180 = tpu.matmul %179, %41, %cst_81 {dimension_numbers = #tpu.dot_dimension_numbers<[1], [0], [0], [1], [0, 0, 1, 1], [], []>} : vector<2x64xbf16>, vector<64x64xbf16>, vector<2x64xf32> -> vector<2x64xf32>
    %cst_82 = arith.constant dense<0.000000e+00> : vector<2x64xf32>
    %181 = tpu.matmul %179, %43, %cst_82 {dimension_numbers = #tpu.dot_dimension_numbers<[1], [0], [0], [1], [0, 0, 1, 1], [], []>} : vector<2x64xbf16>, vector<64x64xbf16>, vector<2x64xf32> -> vector<2x64xf32>
    %cst_83 = arith.constant dense<0.000000e+00> : vector<2x64xf32>
    %182 = tpu.matmul %179, %45, %cst_83 {dimension_numbers = #tpu.dot_dimension_numbers<[1], [0], [0], [1], [0, 0, 1, 1], [], []>} : vector<2x64xbf16>, vector<64x64xbf16>, vector<2x64xf32> -> vector<2x64xf32>
    %183 = vector.extract_strided_slice %22 {offsets = [8, 0], sizes = [2, 64], strides = [1, 1]} : vector<16x64xf32> to vector<2x64xf32>
    %184 = arith.addf %183, %180 : vector<2x64xf32>
    %cst_84 = arith.constant 5.000000e-01 : f32
    %185 = vector.broadcast %cst_84 : f32 to vector<2x64xf32>
    %186 = arith.mulf %185, %184 : vector<2x64xf32>
    %187 = math.tanh %186 : vector<2x64xf32>
    %cst_85 = arith.constant 1.000000e+00 : f32
    %188 = vector.broadcast %cst_85 : f32 to vector<2x64xf32>
    %189 = arith.addf %187, %188 : vector<2x64xf32>
    %cst_86 = arith.constant 5.000000e-01 : f32
    %190 = vector.broadcast %cst_86 : f32 to vector<2x64xf32>
    %191 = arith.mulf %190, %189 : vector<2x64xf32>
    %192 = vector.extract_strided_slice %32 {offsets = [8, 0], sizes = [2, 64], strides = [1, 1]} : vector<16x64xf32> to vector<2x64xf32>
    %193 = arith.addf %192, %181 : vector<2x64xf32>
    %cst_87 = arith.constant 5.000000e-01 : f32
    %194 = vector.broadcast %cst_87 : f32 to vector<2x64xf32>
    %195 = arith.mulf %194, %193 : vector<2x64xf32>
    %196 = math.tanh %195 : vector<2x64xf32>
    %cst_88 = arith.constant 1.000000e+00 : f32
    %197 = vector.broadcast %cst_88 : f32 to vector<2x64xf32>
    %198 = arith.addf %196, %197 : vector<2x64xf32>
    %cst_89 = arith.constant 5.000000e-01 : f32
    %199 = vector.broadcast %cst_89 : f32 to vector<2x64xf32>
    %200 = arith.mulf %199, %198 : vector<2x64xf32>
    %201 = vector.extract_strided_slice %39 {offsets = [8, 0], sizes = [2, 64], strides = [1, 1]} : vector<16x64xf32> to vector<2x64xf32>
    %202 = arith.addf %182, %49 : vector<2x64xf32>
    %203 = arith.mulf %191, %202 : vector<2x64xf32>
    %204 = arith.addf %201, %203 : vector<2x64xf32>
    %205 = math.tanh %204 : vector<2x64xf32>
    %cst_90 = arith.constant 1.000000e+00 : f32
    %206 = vector.broadcast %cst_90 : f32 to vector<2x64xf32>
    %207 = arith.subf %206, %200 : vector<2x64xf32>
    %208 = arith.mulf %207, %205 : vector<2x64xf32>
    %209 = arith.mulf %200, %178 : vector<2x64xf32>
    %210 = arith.addf %208, %209 : vector<2x64xf32>
    %211 = arith.truncf %210 : vector<2x64xf32> to vector<2x64xbf16>
    %cst_91 = arith.constant dense<0.000000e+00> : vector<2x64xf32>
    %212 = tpu.matmul %211, %41, %cst_91 {dimension_numbers = #tpu.dot_dimension_numbers<[1], [0], [0], [1], [0, 0, 1, 1], [], []>} : vector<2x64xbf16>, vector<64x64xbf16>, vector<2x64xf32> -> vector<2x64xf32>
    %cst_92 = arith.constant dense<0.000000e+00> : vector<2x64xf32>
    %213 = tpu.matmul %211, %43, %cst_92 {dimension_numbers = #tpu.dot_dimension_numbers<[1], [0], [0], [1], [0, 0, 1, 1], [], []>} : vector<2x64xbf16>, vector<64x64xbf16>, vector<2x64xf32> -> vector<2x64xf32>
    %cst_93 = arith.constant dense<0.000000e+00> : vector<2x64xf32>
    %214 = tpu.matmul %211, %45, %cst_93 {dimension_numbers = #tpu.dot_dimension_numbers<[1], [0], [0], [1], [0, 0, 1, 1], [], []>} : vector<2x64xbf16>, vector<64x64xbf16>, vector<2x64xf32> -> vector<2x64xf32>
    %215 = vector.extract_strided_slice %22 {offsets = [10, 0], sizes = [2, 64], strides = [1, 1]} : vector<16x64xf32> to vector<2x64xf32>
    %216 = arith.addf %215, %212 : vector<2x64xf32>
    %cst_94 = arith.constant 5.000000e-01 : f32
    %217 = vector.broadcast %cst_94 : f32 to vector<2x64xf32>
    %218 = arith.mulf %217, %216 : vector<2x64xf32>
    %219 = math.tanh %218 : vector<2x64xf32>
    %cst_95 = arith.constant 1.000000e+00 : f32
    %220 = vector.broadcast %cst_95 : f32 to vector<2x64xf32>
    %221 = arith.addf %219, %220 : vector<2x64xf32>
    %cst_96 = arith.constant 5.000000e-01 : f32
    %222 = vector.broadcast %cst_96 : f32 to vector<2x64xf32>
    %223 = arith.mulf %222, %221 : vector<2x64xf32>
    %224 = vector.extract_strided_slice %32 {offsets = [10, 0], sizes = [2, 64], strides = [1, 1]} : vector<16x64xf32> to vector<2x64xf32>
    %225 = arith.addf %224, %213 : vector<2x64xf32>
    %cst_97 = arith.constant 5.000000e-01 : f32
    %226 = vector.broadcast %cst_97 : f32 to vector<2x64xf32>
    %227 = arith.mulf %226, %225 : vector<2x64xf32>
    %228 = math.tanh %227 : vector<2x64xf32>
    %cst_98 = arith.constant 1.000000e+00 : f32
    %229 = vector.broadcast %cst_98 : f32 to vector<2x64xf32>
    %230 = arith.addf %228, %229 : vector<2x64xf32>
    %cst_99 = arith.constant 5.000000e-01 : f32
    %231 = vector.broadcast %cst_99 : f32 to vector<2x64xf32>
    %232 = arith.mulf %231, %230 : vector<2x64xf32>
    %233 = vector.extract_strided_slice %39 {offsets = [10, 0], sizes = [2, 64], strides = [1, 1]} : vector<16x64xf32> to vector<2x64xf32>
    %234 = arith.addf %214, %49 : vector<2x64xf32>
    %235 = arith.mulf %223, %234 : vector<2x64xf32>
    %236 = arith.addf %233, %235 : vector<2x64xf32>
    %237 = math.tanh %236 : vector<2x64xf32>
    %cst_100 = arith.constant 1.000000e+00 : f32
    %238 = vector.broadcast %cst_100 : f32 to vector<2x64xf32>
    %239 = arith.subf %238, %232 : vector<2x64xf32>
    %240 = arith.mulf %239, %237 : vector<2x64xf32>
    %241 = arith.mulf %232, %210 : vector<2x64xf32>
    %242 = arith.addf %240, %241 : vector<2x64xf32>
    %243 = arith.truncf %242 : vector<2x64xf32> to vector<2x64xbf16>
    %cst_101 = arith.constant dense<0.000000e+00> : vector<2x64xf32>
    %244 = tpu.matmul %243, %41, %cst_101 {dimension_numbers = #tpu.dot_dimension_numbers<[1], [0], [0], [1], [0, 0, 1, 1], [], []>} : vector<2x64xbf16>, vector<64x64xbf16>, vector<2x64xf32> -> vector<2x64xf32>
    %cst_102 = arith.constant dense<0.000000e+00> : vector<2x64xf32>
    %245 = tpu.matmul %243, %43, %cst_102 {dimension_numbers = #tpu.dot_dimension_numbers<[1], [0], [0], [1], [0, 0, 1, 1], [], []>} : vector<2x64xbf16>, vector<64x64xbf16>, vector<2x64xf32> -> vector<2x64xf32>
    %cst_103 = arith.constant dense<0.000000e+00> : vector<2x64xf32>
    %246 = tpu.matmul %243, %45, %cst_103 {dimension_numbers = #tpu.dot_dimension_numbers<[1], [0], [0], [1], [0, 0, 1, 1], [], []>} : vector<2x64xbf16>, vector<64x64xbf16>, vector<2x64xf32> -> vector<2x64xf32>
    %247 = vector.extract_strided_slice %22 {offsets = [12, 0], sizes = [2, 64], strides = [1, 1]} : vector<16x64xf32> to vector<2x64xf32>
    %248 = arith.addf %247, %244 : vector<2x64xf32>
    %cst_104 = arith.constant 5.000000e-01 : f32
    %249 = vector.broadcast %cst_104 : f32 to vector<2x64xf32>
    %250 = arith.mulf %249, %248 : vector<2x64xf32>
    %251 = math.tanh %250 : vector<2x64xf32>
    %cst_105 = arith.constant 1.000000e+00 : f32
    %252 = vector.broadcast %cst_105 : f32 to vector<2x64xf32>
    %253 = arith.addf %251, %252 : vector<2x64xf32>
    %cst_106 = arith.constant 5.000000e-01 : f32
    %254 = vector.broadcast %cst_106 : f32 to vector<2x64xf32>
    %255 = arith.mulf %254, %253 : vector<2x64xf32>
    %256 = vector.extract_strided_slice %32 {offsets = [12, 0], sizes = [2, 64], strides = [1, 1]} : vector<16x64xf32> to vector<2x64xf32>
    %257 = arith.addf %256, %245 : vector<2x64xf32>
    %cst_107 = arith.constant 5.000000e-01 : f32
    %258 = vector.broadcast %cst_107 : f32 to vector<2x64xf32>
    %259 = arith.mulf %258, %257 : vector<2x64xf32>
    %260 = math.tanh %259 : vector<2x64xf32>
    %cst_108 = arith.constant 1.000000e+00 : f32
    %261 = vector.broadcast %cst_108 : f32 to vector<2x64xf32>
    %262 = arith.addf %260, %261 : vector<2x64xf32>
    %cst_109 = arith.constant 5.000000e-01 : f32
    %263 = vector.broadcast %cst_109 : f32 to vector<2x64xf32>
    %264 = arith.mulf %263, %262 : vector<2x64xf32>
    %265 = vector.extract_strided_slice %39 {offsets = [12, 0], sizes = [2, 64], strides = [1, 1]} : vector<16x64xf32> to vector<2x64xf32>
    %266 = arith.addf %246, %49 : vector<2x64xf32>
    %267 = arith.mulf %255, %266 : vector<2x64xf32>
    %268 = arith.addf %265, %267 : vector<2x64xf32>
    %269 = math.tanh %268 : vector<2x64xf32>
    %cst_110 = arith.constant 1.000000e+00 : f32
    %270 = vector.broadcast %cst_110 : f32 to vector<2x64xf32>
    %271 = arith.subf %270, %264 : vector<2x64xf32>
    %272 = arith.mulf %271, %269 : vector<2x64xf32>
    %273 = arith.mulf %264, %242 : vector<2x64xf32>
    %274 = arith.addf %272, %273 : vector<2x64xf32>
    %275 = arith.truncf %274 : vector<2x64xf32> to vector<2x64xbf16>
    %cst_111 = arith.constant dense<0.000000e+00> : vector<2x64xf32>
    %276 = tpu.matmul %275, %41, %cst_111 {dimension_numbers = #tpu.dot_dimension_numbers<[1], [0], [0], [1], [0, 0, 1, 1], [], []>} : vector<2x64xbf16>, vector<64x64xbf16>, vector<2x64xf32> -> vector<2x64xf32>
    %cst_112 = arith.constant dense<0.000000e+00> : vector<2x64xf32>
    %277 = tpu.matmul %275, %43, %cst_112 {dimension_numbers = #tpu.dot_dimension_numbers<[1], [0], [0], [1], [0, 0, 1, 1], [], []>} : vector<2x64xbf16>, vector<64x64xbf16>, vector<2x64xf32> -> vector<2x64xf32>
    %cst_113 = arith.constant dense<0.000000e+00> : vector<2x64xf32>
    %278 = tpu.matmul %275, %45, %cst_113 {dimension_numbers = #tpu.dot_dimension_numbers<[1], [0], [0], [1], [0, 0, 1, 1], [], []>} : vector<2x64xbf16>, vector<64x64xbf16>, vector<2x64xf32> -> vector<2x64xf32>
    %279 = vector.extract_strided_slice %22 {offsets = [14, 0], sizes = [2, 64], strides = [1, 1]} : vector<16x64xf32> to vector<2x64xf32>
    %280 = arith.addf %279, %276 : vector<2x64xf32>
    %cst_114 = arith.constant 5.000000e-01 : f32
    %281 = vector.broadcast %cst_114 : f32 to vector<2x64xf32>
    %282 = arith.mulf %281, %280 : vector<2x64xf32>
    %283 = math.tanh %282 : vector<2x64xf32>
    %cst_115 = arith.constant 1.000000e+00 : f32
    %284 = vector.broadcast %cst_115 : f32 to vector<2x64xf32>
    %285 = arith.addf %283, %284 : vector<2x64xf32>
    %cst_116 = arith.constant 5.000000e-01 : f32
    %286 = vector.broadcast %cst_116 : f32 to vector<2x64xf32>
    %287 = arith.mulf %286, %285 : vector<2x64xf32>
    %288 = vector.extract_strided_slice %32 {offsets = [14, 0], sizes = [2, 64], strides = [1, 1]} : vector<16x64xf32> to vector<2x64xf32>
    %289 = arith.addf %288, %277 : vector<2x64xf32>
    %cst_117 = arith.constant 5.000000e-01 : f32
    %290 = vector.broadcast %cst_117 : f32 to vector<2x64xf32>
    %291 = arith.mulf %290, %289 : vector<2x64xf32>
    %292 = math.tanh %291 : vector<2x64xf32>
    %cst_118 = arith.constant 1.000000e+00 : f32
    %293 = vector.broadcast %cst_118 : f32 to vector<2x64xf32>
    %294 = arith.addf %292, %293 : vector<2x64xf32>
    %cst_119 = arith.constant 5.000000e-01 : f32
    %295 = vector.broadcast %cst_119 : f32 to vector<2x64xf32>
    %296 = arith.mulf %295, %294 : vector<2x64xf32>
    %297 = vector.extract_strided_slice %39 {offsets = [14, 0], sizes = [2, 64], strides = [1, 1]} : vector<16x64xf32> to vector<2x64xf32>
    %298 = arith.addf %278, %49 : vector<2x64xf32>
    %299 = arith.mulf %287, %298 : vector<2x64xf32>
    %300 = arith.addf %297, %299 : vector<2x64xf32>
    %301 = math.tanh %300 : vector<2x64xf32>
    %cst_120 = arith.constant 1.000000e+00 : f32
    %302 = vector.broadcast %cst_120 : f32 to vector<2x64xf32>
    %303 = arith.subf %302, %296 : vector<2x64xf32>
    %304 = arith.mulf %303, %301 : vector<2x64xf32>
    %305 = arith.mulf %296, %274 : vector<2x64xf32>
    %306 = arith.addf %304, %305 : vector<2x64xf32>
    %307 = tpu.iota {dimensions = array<i32: 1>} : vector<2x128xi32>
    %c0_121 = arith.constant 0 : index
    %c0_122 = arith.constant 0 : index
    %308 = vector.load %arg1[%c0_121, %c0_122] : memref<2x1xi32, #tpu.memory_space<vmem>>, vector<2x1xi32>
    %309 = vector.broadcast %308 : vector<2x1xi32> to vector<2x128xi32>
    %310 = arith.cmpi eq, %307, %309 : vector<2x128xi32>
    %311 = arith.extui %310 : vector<2x128xi1> to vector<2x128xi32>
    %312 = arith.sitofp %311 : vector<2x128xi32> to vector<2x128xf32>
    %313 = arith.truncf %312 : vector<2x128xf32> to vector<2x128xbf16>
    %c0_123 = arith.constant 0 : index
    %c0_124 = arith.constant 0 : index
    %314 = vector.load %arg3[%c0_123, %c0_124] : memref<128x32xbf16, #tpu.memory_space<vmem>>, vector<128x32xbf16>
    %cst_125 = arith.constant dense<0.000000e+00> : vector<2x32xf32>
    %315 = tpu.matmul %313, %314, %cst_125 {dimension_numbers = #tpu.dot_dimension_numbers<[1], [0], [0], [1], [0, 0, 1, 1], [], []>} : vector<2x128xbf16>, vector<128x32xbf16>, vector<2x32xf32> -> vector<2x32xf32>
    %316 = arith.truncf %315 : vector<2x32xf32> to vector<2x32xbf16>
    %317 = arith.truncf %306 : vector<2x64xf32> to vector<2x64xbf16>
    %c0_126 = arith.constant 0 : index
    %c0_127 = arith.constant 0 : index
    %c0_128 = arith.constant 0 : index
    %318 = vector.load %arg8[%c0_126, %c0_127, %c0_128] : memref<3x32x64xbf16, #tpu.memory_space<vmem>>, vector<1x32x64xbf16>
    %319 = vector.shape_cast %318 : vector<1x32x64xbf16> to vector<32x64xbf16>
    %cst_129 = arith.constant dense<0.000000e+00> : vector<2x64xf32>
    %320 = tpu.matmul %316, %319, %cst_129 {dimension_numbers = #tpu.dot_dimension_numbers<[1], [0], [0], [1], [0, 0, 1, 1], [], []>} : vector<2x32xbf16>, vector<32x64xbf16>, vector<2x64xf32> -> vector<2x64xf32>
    %c0_130 = arith.constant 0 : index
    %c0_131 = arith.constant 0 : index
    %c0_132 = arith.constant 0 : index
    %321 = vector.load %arg10[%c0_130, %c0_131, %c0_132] : memref<3x1x64xf32, #tpu.memory_space<vmem>>, vector<1x1x64xf32>
    %322 = vector.shape_cast %321 : vector<1x1x64xf32> to vector<1x64xf32>
    %c0_133 = arith.constant 0 : index
    %c0_134 = arith.constant 0 : index
    %c0_135 = arith.constant 0 : index
    %323 = vector.load %arg11[%c0_133, %c0_134, %c0_135] : memref<3x1x64xf32, #tpu.memory_space<vmem>>, vector<1x1x64xf32>
    %324 = vector.shape_cast %323 : vector<1x1x64xf32> to vector<1x64xf32>
    %325 = arith.addf %322, %324 : vector<1x64xf32>
    %326 = vector.broadcast %325 : vector<1x64xf32> to vector<2x64xf32>
    %327 = arith.addf %320, %326 : vector<2x64xf32>
    %c1_136 = arith.constant 1 : index
    %c0_137 = arith.constant 0 : index
    %c0_138 = arith.constant 0 : index
    %328 = vector.load %arg8[%c1_136, %c0_137, %c0_138] : memref<3x32x64xbf16, #tpu.memory_space<vmem>>, vector<1x32x64xbf16>
    %329 = vector.shape_cast %328 : vector<1x32x64xbf16> to vector<32x64xbf16>
    %cst_139 = arith.constant dense<0.000000e+00> : vector<2x64xf32>
    %330 = tpu.matmul %316, %329, %cst_139 {dimension_numbers = #tpu.dot_dimension_numbers<[1], [0], [0], [1], [0, 0, 1, 1], [], []>} : vector<2x32xbf16>, vector<32x64xbf16>, vector<2x64xf32> -> vector<2x64xf32>
    %c1_140 = arith.constant 1 : index
    %c0_141 = arith.constant 0 : index
    %c0_142 = arith.constant 0 : index
    %331 = vector.load %arg10[%c1_140, %c0_141, %c0_142] : memref<3x1x64xf32, #tpu.memory_space<vmem>>, vector<1x1x64xf32>
    %332 = vector.shape_cast %331 : vector<1x1x64xf32> to vector<1x64xf32>
    %c1_143 = arith.constant 1 : index
    %c0_144 = arith.constant 0 : index
    %c0_145 = arith.constant 0 : index
    %333 = vector.load %arg11[%c1_143, %c0_144, %c0_145] : memref<3x1x64xf32, #tpu.memory_space<vmem>>, vector<1x1x64xf32>
    %334 = vector.shape_cast %333 : vector<1x1x64xf32> to vector<1x64xf32>
    %335 = arith.addf %332, %334 : vector<1x64xf32>
    %336 = vector.broadcast %335 : vector<1x64xf32> to vector<2x64xf32>
    %337 = arith.addf %330, %336 : vector<2x64xf32>
    %c2_146 = arith.constant 2 : index
    %c0_147 = arith.constant 0 : index
    %c0_148 = arith.constant 0 : index
    %338 = vector.load %arg8[%c2_146, %c0_147, %c0_148] : memref<3x32x64xbf16, #tpu.memory_space<vmem>>, vector<1x32x64xbf16>
    %339 = vector.shape_cast %338 : vector<1x32x64xbf16> to vector<32x64xbf16>
    %cst_149 = arith.constant dense<0.000000e+00> : vector<2x64xf32>
    %340 = tpu.matmul %316, %339, %cst_149 {dimension_numbers = #tpu.dot_dimension_numbers<[1], [0], [0], [1], [0, 0, 1, 1], [], []>} : vector<2x32xbf16>, vector<32x64xbf16>, vector<2x64xf32> -> vector<2x64xf32>
    %c2_150 = arith.constant 2 : index
    %c0_151 = arith.constant 0 : index
    %c0_152 = arith.constant 0 : index
    %341 = vector.load %arg10[%c2_150, %c0_151, %c0_152] : memref<3x1x64xf32, #tpu.memory_space<vmem>>, vector<1x1x64xf32>
    %342 = vector.shape_cast %341 : vector<1x1x64xf32> to vector<1x64xf32>
    %343 = vector.broadcast %342 : vector<1x64xf32> to vector<2x64xf32>
    %344 = arith.addf %340, %343 : vector<2x64xf32>
    %c0_153 = arith.constant 0 : index
    %c0_154 = arith.constant 0 : index
    %c0_155 = arith.constant 0 : index
    %345 = vector.load %arg9[%c0_153, %c0_154, %c0_155] : memref<3x64x64xbf16, #tpu.memory_space<vmem>>, vector<1x64x64xbf16>
    %346 = vector.shape_cast %345 : vector<1x64x64xbf16> to vector<64x64xbf16>
    %cst_156 = arith.constant dense<0.000000e+00> : vector<2x64xf32>
    %347 = tpu.matmul %317, %346, %cst_156 {dimension_numbers = #tpu.dot_dimension_numbers<[1], [0], [0], [1], [0, 0, 1, 1], [], []>} : vector<2x64xbf16>, vector<64x64xbf16>, vector<2x64xf32> -> vector<2x64xf32>
    %c1_157 = arith.constant 1 : index
    %c0_158 = arith.constant 0 : index
    %c0_159 = arith.constant 0 : index
    %348 = vector.load %arg9[%c1_157, %c0_158, %c0_159] : memref<3x64x64xbf16, #tpu.memory_space<vmem>>, vector<1x64x64xbf16>
    %349 = vector.shape_cast %348 : vector<1x64x64xbf16> to vector<64x64xbf16>
    %cst_160 = arith.constant dense<0.000000e+00> : vector<2x64xf32>
    %350 = tpu.matmul %317, %349, %cst_160 {dimension_numbers = #tpu.dot_dimension_numbers<[1], [0], [0], [1], [0, 0, 1, 1], [], []>} : vector<2x64xbf16>, vector<64x64xbf16>, vector<2x64xf32> -> vector<2x64xf32>
    %c2_161 = arith.constant 2 : index
    %c0_162 = arith.constant 0 : index
    %c0_163 = arith.constant 0 : index
    %351 = vector.load %arg9[%c2_161, %c0_162, %c0_163] : memref<3x64x64xbf16, #tpu.memory_space<vmem>>, vector<1x64x64xbf16>
    %352 = vector.shape_cast %351 : vector<1x64x64xbf16> to vector<64x64xbf16>
    %cst_164 = arith.constant dense<0.000000e+00> : vector<2x64xf32>
    %353 = tpu.matmul %317, %352, %cst_164 {dimension_numbers = #tpu.dot_dimension_numbers<[1], [0], [0], [1], [0, 0, 1, 1], [], []>} : vector<2x64xbf16>, vector<64x64xbf16>, vector<2x64xf32> -> vector<2x64xf32>
    %c2_165 = arith.constant 2 : index
    %c0_166 = arith.constant 0 : index
    %c0_167 = arith.constant 0 : index
    %354 = vector.load %arg11[%c2_165, %c0_166, %c0_167] : memref<3x1x64xf32, #tpu.memory_space<vmem>>, vector<1x1x64xf32>
    %355 = vector.shape_cast %354 : vector<1x1x64xf32> to vector<1x64xf32>
    %356 = vector.broadcast %355 : vector<1x64xf32> to vector<2x64xf32>
    %357 = arith.addf %353, %356 : vector<2x64xf32>
    %358 = arith.addf %327, %347 : vector<2x64xf32>
    %cst_168 = arith.constant 5.000000e-01 : f32
    %359 = vector.broadcast %cst_168 : f32 to vector<2x64xf32>
    %360 = arith.mulf %359, %358 : vector<2x64xf32>
    %361 = math.tanh %360 : vector<2x64xf32>
    %cst_169 = arith.constant 1.000000e+00 : f32
    %362 = vector.broadcast %cst_169 : f32 to vector<2x64xf32>
    %363 = arith.addf %361, %362 : vector<2x64xf32>
    %cst_170 = arith.constant 5.000000e-01 : f32
    %364 = vector.broadcast %cst_170 : f32 to vector<2x64xf32>
    %365 = arith.mulf %364, %363 : vector<2x64xf32>
    %366 = arith.addf %337, %350 : vector<2x64xf32>
    %cst_171 = arith.constant 5.000000e-01 : f32
    %367 = vector.broadcast %cst_171 : f32 to vector<2x64xf32>
    %368 = arith.mulf %367, %366 : vector<2x64xf32>
    %369 = math.tanh %368 : vector<2x64xf32>
    %cst_172 = arith.constant 1.000000e+00 : f32
    %370 = vector.broadcast %cst_172 : f32 to vector<2x64xf32>
    %371 = arith.addf %369, %370 : vector<2x64xf32>
    %cst_173 = arith.constant 5.000000e-01 : f32
    %372 = vector.broadcast %cst_173 : f32 to vector<2x64xf32>
    %373 = arith.mulf %372, %371 : vector<2x64xf32>
    %374 = arith.mulf %365, %357 : vector<2x64xf32>
    %375 = arith.addf %344, %374 : vector<2x64xf32>
    %376 = math.tanh %375 : vector<2x64xf32>
    %cst_174 = arith.constant 1.000000e+00 : f32
    %377 = vector.broadcast %cst_174 : f32 to vector<2x64xf32>
    %378 = arith.subf %377, %373 : vector<2x64xf32>
    %379 = arith.mulf %378, %376 : vector<2x64xf32>
    %380 = arith.mulf %373, %306 : vector<2x64xf32>
    %381 = arith.addf %379, %380 : vector<2x64xf32>
    %382 = arith.truncf %381 : vector<2x64xf32> to vector<2x64xbf16>
    %c0_175 = arith.constant 0 : index
    %c0_176 = arith.constant 0 : index
    %383 = vector.load %arg12[%c0_175, %c0_176] : memref<64x128xbf16, #tpu.memory_space<vmem>>, vector<64x128xbf16>
    %cst_177 = arith.constant dense<0.000000e+00> : vector<2x128xf32>
    %384 = tpu.matmul %382, %383, %cst_177 {dimension_numbers = #tpu.dot_dimension_numbers<[1], [0], [0], [1], [0, 0, 1, 1], [], []>} : vector<2x64xbf16>, vector<64x128xbf16>, vector<2x128xf32> -> vector<2x128xf32>
    %c0_178 = arith.constant 0 : index
    %c0_179 = arith.constant 0 : index
    %385 = vector.load %arg13[%c0_178, %c0_179] : memref<1x128xf32, #tpu.memory_space<vmem>>, vector<1x128xf32>
    %386 = vector.broadcast %385 : vector<1x128xf32> to vector<2x128xf32>
    %387 = arith.addf %384, %386 : vector<2x128xf32>
    %388 = arith.truncf %387 : vector<2x128xf32> to vector<2x128xbf16>
    %c0_180 = arith.constant 0 : index
    %c0_181 = arith.constant 0 : index
    %389 = vector.load %arg14[%c0_180, %c0_181] : memref<128x256xbf16, #tpu.memory_space<vmem>>, vector<128x256xbf16>
    %cst_182 = arith.constant dense<0.000000e+00> : vector<2x256xf32>
    %390 = tpu.matmul %388, %389, %cst_182 {dimension_numbers = #tpu.dot_dimension_numbers<[1], [0], [0], [1], [0, 0, 1, 1], [], []>} : vector<2x128xbf16>, vector<128x256xbf16>, vector<2x256xf32> -> vector<2x256xf32>
    %c0_183 = arith.constant 0 : index
    %c0_184 = arith.constant 0 : index
    %391 = vector.load %arg15[%c0_183, %c0_184] : memref<1x256xf32, #tpu.memory_space<vmem>>, vector<1x256xf32>
    %392 = vector.broadcast %391 : vector<1x256xf32> to vector<2x256xf32>
    %393 = arith.addf %390, %392 : vector<2x256xf32>
    %394 = arith.truncf %393 : vector<2x256xf32> to vector<2x256xbf16>
    %c0_185 = arith.constant 0 : index
    %c0_186 = arith.constant 0 : index
    %395 = vector.load %arg16[%c0_185, %c0_186] : memref<256x128xbf16, #tpu.memory_space<vmem>>, vector<256x128xbf16>
    %cst_187 = arith.constant dense<0.000000e+00> : vector<2x128xf32>
    %396 = tpu.matmul %394, %395, %cst_187 {dimension_numbers = #tpu.dot_dimension_numbers<[1], [0], [0], [1], [0, 0, 1, 1], [], []>} : vector<2x256xbf16>, vector<256x128xbf16>, vector<2x128xf32> -> vector<2x128xf32>
    %c0_188 = arith.constant 0 : index
    %c0_189 = arith.constant 0 : index
    %397 = vector.load %arg17[%c0_188, %c0_189] : memref<1x128xf32, #tpu.memory_space<vmem>>, vector<1x128xf32>
    %398 = vector.broadcast %397 : vector<1x128xf32> to vector<2x128xf32>
    %399 = arith.addf %396, %398 : vector<2x128xf32>
    %c0_190 = arith.constant 0 : index
    %c0_191 = arith.constant 0 : index
    %400 = vector.load %arg18[%c0_190, %c0_191] : memref<2x128xf32, #tpu.memory_space<vmem>>, vector<2x128xf32>
    tpu.vector_store %arg18[%c0_190, %c0_191], %399 {strides = array<i32>} : memref<2x128xf32, #tpu.memory_space<vmem>>, vector<2x128xf32>,
    return
  }
}

</mosaic_0001>

<llo_original>
// kernel: seq2seq_forward.1
$region0: #{seq2seq_forward.1}
  #allocation0 [shape = 'u32[]', space=smem, size = 0x4, offset = 0x4, fixed_abs, tag = 'smem constant byte address 0x4 - core index']
  #allocation1 [shape = 'u32[144,128]{1,0:T(1,128)}', space=vmem, size = 0x12000, scoped, tag = 'internal scratch']
  %s0 = inlined_call_operand.vmem [shape: s32[32,1], index: 0, kind: input, shape index: {}]
  %s1 = inlined_call_operand.vmem [shape: s32[2,1], index: 1, kind: input, shape index: {}]
  %s2 = inlined_call_operand.vmem [shape: bf16[64,32], index: 2, kind: input, shape index: {}]
  %s3 = inlined_call_operand.vmem [shape: bf16[128,32], index: 3, kind: input, shape index: {}]
  %s4 = inlined_call_operand.vmem [shape: bf16[3,64,64], index: 4, kind: input, shape index: {}]
  %s5 = inlined_call_operand.vmem [shape: bf16[3,64,64], index: 5, kind: input, shape index: {}]
  %s6 = inlined_call_operand.vmem [shape: f32[3,1,64], index: 6, kind: input, shape index: {}]
  %s7 = inlined_call_operand.vmem [shape: f32[3,1,64], index: 7, kind: input, shape index: {}]
  %s8 = inlined_call_operand.vmem [shape: bf16[3,32,64], index: 8, kind: input, shape index: {}]
  %s9 = inlined_call_operand.vmem [shape: bf16[3,64,64], index: 9, kind: input, shape index: {}]
  %s10 = inlined_call_operand.vmem [shape: f32[3,1,64], index: 10, kind: input, shape index: {}]
  %s11 = inlined_call_operand.vmem [shape: f32[3,1,64], index: 11, kind: input, shape index: {}]
  %s12 = inlined_call_operand.vmem [shape: bf16[64,128], index: 12, kind: input, shape index: {}]
  %s13 = inlined_call_operand.vmem [shape: f32[1,128], index: 13, kind: input, shape index: {}]
  %s14 = inlined_call_operand.vmem [shape: bf16[128,256], index: 14, kind: input, shape index: {}]
  %s15 = inlined_call_operand.vmem [shape: f32[1,256], index: 15, kind: input, shape index: {}]
  %s16 = inlined_call_operand.vmem [shape: bf16[256,128], index: 16, kind: input, shape index: {}]
  %s17 = inlined_call_operand.vmem [shape: f32[1,128], index: 17, kind: input, shape index: {}]
  %s18 = inlined_call_operand.vmem [shape: f32[2,128], index: 18, kind: output, shape index: {}]
  %s19 = sld [smem:[#allocation0]]
  $region82: #{seq2seq_forward.1} parent=0
    _
  %s21 = ssub.s32 1, %s19
  %s22 = scalar_select 0, %s21, %s19
  // Predicated region
  $region2: #{seq2seq_forward.1} parent=0 // pred_check
    _
  $region3: #{seq2seq_forward.1} parent=0 // pred_check_branch
    %24 = sbr.rel (0) target = $region5
  $region4: #{seq2seq_forward.1} parent=0 // pred_region
    _
  $region5: #{seq2seq_forward.1} parent=0 // pred_fallthru
    _
  // Predicated region
  $region6: #{seq2seq_forward.1} parent=0 // pred_check
    _
  $region7: #{seq2seq_forward.1} parent=0 // pred_check_branch
    %26 = sbr.rel (0) target = $region9
  $region8: #{seq2seq_forward.1} parent=0 // pred_region
    _
  $region9: #{seq2seq_forward.1} parent=0 // pred_fallthru
    _
  // Predicated region
  $region10: #{seq2seq_forward.1} parent=0 // pred_check
    _
  $region11: #{seq2seq_forward.1} parent=0 // pred_check_branch
    %28 = sbr.rel (0) target = $region13
  $region12: #{seq2seq_forward.1} parent=0 // pred_region
    _
  $region13: #{seq2seq_forward.1} parent=0 // pred_fallthru
    _
  // Predicated region
  $region14: #{seq2seq_forward.1} parent=0 // pred_check
    _
  $region15: #{seq2seq_forward.1} parent=0 // pred_check_branch
    %30 = sbr.rel (0) target = $region17
  $region16: #{seq2seq_forward.1} parent=0 // pred_region
    _
  $region17: #{seq2seq_forward.1} parent=0 // pred_fallthru
    _
  // Predicated region
  $region18: #{seq2seq_forward.1} parent=0 // pred_check
    _
  $region19: #{seq2seq_forward.1} parent=0 // pred_check_branch
    %32 = sbr.rel (0) target = $region21
  $region20: #{seq2seq_forward.1} parent=0 // pred_region
    _
  $region21: #{seq2seq_forward.1} parent=0 // pred_fallthru
    _
  // Predicated region
  $region22: #{seq2seq_forward.1} parent=0 // pred_check
    _
  $region23: #{seq2seq_forward.1} parent=0 // pred_check_branch
    %34 = sbr.rel (0) target = $region25
  $region24: #{seq2seq_forward.1} parent=0 // pred_region
    _
  $region25: #{seq2seq_forward.1} parent=0 // pred_fallthru
    _
  // Predicated region
  $region26: #{seq2seq_forward.1} parent=0 // pred_check
    _
  $region27: #{seq2seq_forward.1} parent=0 // pred_check_branch
    %36 = sbr.rel (0) target = $region29
  $region28: #{seq2seq_forward.1} parent=0 // pred_region
    _
  $region29: #{seq2seq_forward.1} parent=0 // pred_fallthru
    _
  // Predicated region
  $region30: #{seq2seq_forward.1} parent=0 // pred_check
    _
  $region31: #{seq2seq_forward.1} parent=0 // pred_check_branch
    %38 = sbr.rel (0) target = $region33
  $region32: #{seq2seq_forward.1} parent=0 // pred_region
    _
  $region33: #{seq2seq_forward.1} parent=0 // pred_fallthru
    _
  // Predicated region
  $region34: #{seq2seq_forward.1} parent=0 // pred_check
    _
  $region35: #{seq2seq_forward.1} parent=0 // pred_check_branch
    %40 = sbr.rel (0) target = $region37
  $region36: #{seq2seq_forward.1} parent=0 // pred_region
    _
  $region37: #{seq2seq_forward.1} parent=0 // pred_fallthru
    _
  // Predicated region
  $region38: #{seq2seq_forward.1} parent=0 // pred_check
    _
  $region39: #{seq2seq_forward.1} parent=0 // pred_check_branch
    %42 = sbr.rel (0) target = $region41
  $region40: #{seq2seq_forward.1} parent=0 // pred_region
    _
  $region41: #{seq2seq_forward.1} parent=0 // pred_fallthru
    _
  // Predicated region
  $region42: #{seq2seq_forward.1} parent=0 // pred_check
    _
  $region43: #{seq2seq_forward.1} parent=0 // pred_check_branch
    %44 = sbr.rel (0) target = $region45
  $region44: #{seq2seq_forward.1} parent=0 // pred_region
    _
  $region45: #{seq2seq_forward.1} parent=0 // pred_fallthru
    _
  // Predicated region
  $region46: #{seq2seq_forward.1} parent=0 // pred_check
    _
  $region47: #{seq2seq_forward.1} parent=0 // pred_check_branch
    %46 = sbr.rel (0) target = $region49
  $region48: #{seq2seq_forward.1} parent=0 // pred_region
    _
  $region49: #{seq2seq_forward.1} parent=0 // pred_fallthru
    _
  // Predicated region
  $region50: #{seq2seq_forward.1} parent=0 // pred_check
    _
  $region51: #{seq2seq_forward.1} parent=0 // pred_check_branch
    %48 = sbr.rel (0) target = $region53
  $region52: #{seq2seq_forward.1} parent=0 // pred_region
    _
  $region53: #{seq2seq_forward.1} parent=0 // pred_fallthru
    _
  // Predicated region
  $region54: #{seq2seq_forward.1} parent=0 // pred_check
    _
  $region55: #{seq2seq_forward.1} parent=0 // pred_check_branch
    %50 = sbr.rel (0) target = $region57
  $region56: #{seq2seq_forward.1} parent=0 // pred_region
    _
  $region57: #{seq2seq_forward.1} parent=0 // pred_fallthru
    _
  // Predicated region
  $region58: #{seq2seq_forward.1} parent=0 // pred_check
    _
  $region59: #{seq2seq_forward.1} parent=0 // pred_check_branch
    %52 = sbr.rel (0) target = $region61
  $region60: #{seq2seq_forward.1} parent=0 // pred_region
    _
  $region61: #{seq2seq_forward.1} parent=0 // pred_fallthru
    _
  // Predicated region
  $region62: #{seq2seq_forward.1} parent=0 // pred_check
    _
  $region63: #{seq2seq_forward.1} parent=0 // pred_check_branch
    %54 = sbr.rel (0) target = $region65
  $region64: #{seq2seq_forward.1} parent=0 // pred_region
    _
  $region65: #{seq2seq_forward.1} parent=0 // pred_fallthru
    _
  // Predicated region
  $region66: #{seq2seq_forward.1} parent=0 // pred_check
    _
  $region67: #{seq2seq_forward.1} parent=0 // pred_check_branch
    %56 = sbr.rel (0) target = $region69
  $region68: #{seq2seq_forward.1} parent=0 // pred_region
    _
  $region69: #{seq2seq_forward.1} parent=0 // pred_fallthru
    _
  // Predicated region
  $region70: #{seq2seq_forward.1} parent=0 // pred_check
    _
  $region71: #{seq2seq_forward.1} parent=0 // pred_check_branch
    %58 = sbr.rel (0) target = $region73
  $region72: #{seq2seq_forward.1} parent=0 // pred_region
    _
  $region73: #{seq2seq_forward.1} parent=0 // pred_fallthru
    _
  %v60 = vlaneseq
  %v61 = vand.u32 %v60, 127
  %v62 = vld [vmem:[%s0] sm:$0xff]
  %v63 = vld [vmem:[%s0 + $0x8] sm:$0xff]
  %v64 = vld [vmem:[%s0 + $0x10] sm:$0xff]
  %v65 = vld [vmem:[%s0 + $0x18] sm:$0xff]
  %66 = vset.pattern.permute.xlu0 0
  %67 = vperm.xlu0 %66, %v62
  %v68 = vpop.permute.xlu0 %67
  %69 = vset.pattern.permute.xlu0 0
  %70 = vperm.xlu0 %69, %v63
  %v71 = vpop.permute.xlu0 %70
  %72 = vset.pattern.permute.xlu0 0
  %73 = vperm.xlu0 %72, %v64
  %v74 = vpop.permute.xlu0 %73
  %75 = vset.pattern.permute.xlu0 0
  %76 = vperm.xlu0 %75, %v65
  %v77 = vpop.permute.xlu0 %76
  %vm78 = vcmp.eq.s32.totalorder %v61, %v68
  %vm79 = vcmp.eq.s32.totalorder %v61, %v71
  %vm80 = vcmp.eq.s32.totalorder %v61, %v74
  %vm81 = vcmp.eq.s32.totalorder %v61, %v77
  %v82 = vsel %vm78, 1, 0
  %v83 = vsel %vm79, 1, 0
  %v84 = vsel %vm80, 1, 0
  %v85 = vsel %vm81, 1, 0
  %v86 = vcvt.s32.f32 %v82
  %v87 = vcvt.s32.f32 %v83
  %v88 = vcvt.s32.f32 %v84
  %v89 = vcvt.s32.f32 %v85
  %v90 = vpack.c.bf16 %v87, %v86
  %v91 = vpack.c.bf16 %v89, %v88
  %v92 = vld [vmem:[%s2] sm:$0xf]
  %v93 = vld [vmem:[%s2 + $0x4] sm:$0xf]
  %v94 = vld [vmem:[%s2 + $0x8] sm:$0xf]
  %v95 = vld [vmem:[%s2 + $0xc] sm:$0xf]
  %v96 = vld [vmem:[%s2 + $0x10] sm:$0xf]
  %v97 = vld [vmem:[%s2 + $0x14] sm:$0xf]
  %v98 = vld [vmem:[%s2 + $0x18] sm:$0xf]
  %v99 = vld [vmem:[%s2 + $0x1c] sm:$0xf]
  %v108 = vunpack.c.l.b16 %v92
  %v109 = vunpack.c.l.b16 %v93
  %v110 = vunpack.c.l.b16 %v94
  %v111 = vunpack.c.l.b16 %v95
  %v112 = vunpack.c.l.b16 %v96
  %v113 = vunpack.c.l.b16 %v97
  %v114 = vunpack.c.l.b16 %v98
  %v115 = vunpack.c.l.b16 %v99
  %v116 = vpack.c.b16 %v109, %v108
  %v117 = vpack.c.b16 %v111, %v110
  %v118 = vpack.c.b16 %v113, %v112
  %v119 = vpack.c.b16 %v115, %v114
  %vm124 = vcmask 523264
  %v126 = vsel %vm124, %v90, 0
  %v129 = vsel %vm124, %v91, 0
  %131 = vmatprep.subr.bf16.mxu0 0
  %132 = vmatpush1.bf16.msra.mxu0 %v116
  %133 = vmatprep.subr.bf16.mxu0 0
  %134 = vmatpush1.bf16.msra.mxu0 %v117
  %135 = vmatprep.subr.bf16.mxu0 0
  %136 = vmatpush1.bf16.msra.mxu0 %v118
  %137 = vmatprep.subr.bf16.mxu0 0
  %138 = vmatpush1.bf16.msra.mxu0 %v119
  %139 = vmatprep.subr.bf16.mxu0 0
  %140 = vmatpush1.bf16.msra.mxu0 0
  %141 = vmatprep.subr.bf16.mxu0 0
  %142 = vmatpush1.bf16.msra.mxu0 0
  %143 = vmatprep.subr.bf16.mxu0 0
  %144 = vmatpush1.bf16.msra.mxu0 0
  %145 = vmatprep.subr.bf16.mxu0 0
  %146 = vmatpush1.bf16.msra.mxu0 0
  %147 = vmatprep.subr.bf16.mxu0 0
  %148 = vmatpush1.bf16.msra.mxu0 0
  %149 = vmatprep.subr.bf16.mxu0 0
  %150 = vmatpush1.bf16.msra.mxu0 0
  %151 = vmatprep.subr.bf16.mxu0 0
  %152 = vmatpush1.bf16.msra.mxu0 0
  %153 = vmatprep.subr.bf16.mxu0 0
  %154 = vmatpush1.bf16.msra.mxu0 0
  %155 = vmatprep.subr.bf16.mxu0 0
  %156 = vmatpush1.bf16.msra.mxu0 0
  %157 = vmatprep.subr.bf16.mxu0 0
  %158 = vmatpush1.bf16.msra.mxu0 0
  %159 = vmatprep.subr.bf16.mxu0 0
  %160 = vmatpush1.bf16.msra.mxu0 0
  %161 = vmatprep.subr.bf16.mxu0 0
  %162 = vmatpush1.bf16.msra.mxu0 0
  %163 = vmatprep.mubr.bf16.mxu0 0
  %164 = vmatmul.mubr.bf16.gmra.mrb[0].mxu0 %v126
  %v165 = vpop.f32.mrb[0].mxu0
  %v166 = vadd.f32 0.0, %v165
  %v167 = vpop.f32.mrb[0].mxu0
  %v168 = vpop.f32.mrb[0].mxu0
  %v169 = vadd.f32 0.0, %v168
  %v170 = vpop.f32.mrb[0].mxu0
  %171 = vmatprep.mubr.bf16.mxu0 0
  %172 = vmatmul.mubr.bf16.gmra.mrb[0].mxu0 %v129
  %v173 = vpop.f32.mrb[0].mxu0
  %v174 = vadd.f32 0.0, %v173
  %v175 = vpop.f32.mrb[0].mxu0
  %v176 = vpop.f32.mrb[0].mxu0
  %v177 = vadd.f32 0.0, %v176
  %v178 = vpop.f32.mrb[0].mxu0
  %179 = vdwg.mxu0
  %v180 = vpack.c.bf16 %v169, %v166
  %v181 = vpack.c.bf16 %v177, %v174
  %183 = vrot.lane.b32.xlu0 %v181, 32
  %v184 = vpop.permute.xlu0 %183
  %vm185 = vcmask 261120
  %v188 = vsel %vm185, %v180, %v184
  %v189 = vld [vmem:[%s4] sm:$0xf]
  %v190 = vld [vmem:[%s4 + $0x4] sm:$0xf]
  %v191 = vld [vmem:[%s4 + $0x8] sm:$0xf]
  %v192 = vld [vmem:[%s4 + $0xc] sm:$0xf]
  %v193 = vld [vmem:[%s4 + $0x10] sm:$0xf]
  %v194 = vld [vmem:[%s4 + $0x14] sm:$0xf]
  %v195 = vld [vmem:[%s4 + $0x18] sm:$0xf]
  %v196 = vld [vmem:[%s4 + $0x1c] sm:$0xf]
  %v197 = vld [vmem:[%s6] sm:$0x1]
  %v198 = vld [vmem:[%s7] sm:$0x1]
  %v199 = vadd.f32 %v197, %v198
  %v201 = vlaneseq
  %v202 = vshrl.u32 %v201, 7
  %v203 = vsub.s32 0, %v202
  %v204 = vrot.slane %v199, %v203
  %v214 = vunpack.c.l.b16 %v189
  %v215 = vunpack.c.l.b16 %v190
  %v216 = vunpack.c.l.b16 %v191
  %v217 = vunpack.c.l.b16 %v192
  %v218 = vunpack.c.l.b16 %v193
  %v219 = vunpack.c.l.b16 %v194
  %v220 = vunpack.c.l.b16 %v195
  %v221 = vunpack.c.l.b16 %v196
  %v222 = vpack.c.b16 %v215, %v214
  %v223 = vpack.c.b16 %v217, %v216
  %v224 = vpack.c.b16 %v219, %v218
  %v225 = vpack.c.b16 %v221, %v220
  %v230 = vsel %vm124, %v188, 0
  %232 = vmatprep.subr.bf16.mxu0 0
  %233 = vmatpush1.bf16.msra.mxu0 %v222
  %234 = vmatprep.subr.bf16.mxu0 0
  %235 = vmatpush1.bf16.msra.mxu0 %v223
  %236 = vmatprep.subr.bf16.mxu0 0
  %237 = vmatpush1.bf16.msra.mxu0 %v224
  %238 = vmatprep.subr.bf16.mxu0 0
  %239 = vmatpush1.bf16.msra.mxu0 %v225
  %240 = vmatprep.subr.bf16.mxu0 0
  %241 = vmatpush1.bf16.msra.mxu0 0
  %242 = vmatprep.subr.bf16.mxu0 0
  %243 = vmatpush1.bf16.msra.mxu0 0
  %244 = vmatprep.subr.bf16.mxu0 0
  %245 = vmatpush1.bf16.msra.mxu0 0
  %246 = vmatprep.subr.bf16.mxu0 0
  %247 = vmatpush1.bf16.msra.mxu0 0
  %248 = vmatprep.subr.bf16.mxu0 0
  %249 = vmatpush1.bf16.msra.mxu0 0
  %250 = vmatprep.subr.bf16.mxu0 0
  %251 = vmatpush1.bf16.msra.mxu0 0
  %252 = vmatprep.subr.bf16.mxu0 0
  %253 = vmatpush1.bf16.msra.mxu0 0
  %254 = vmatprep.subr.bf16.mxu0 0
  %255 = vmatpush1.bf16.msra.mxu0 0
  %256 = vmatprep.subr.bf16.mxu0 0
  %257 = vmatpush1.bf16.msra.mxu0 0
  %258 = vmatprep.subr.bf16.mxu0 0
  %259 = vmatpush1.bf16.msra.mxu0 0
  %260 = vmatprep.subr.bf16.mxu0 0
  %261 = vmatpush1.bf16.msra.mxu0 0
  %262 = vmatprep.subr.bf16.mxu0 0
  %263 = vmatpush1.bf16.msra.mxu0 0
  %264 = vmatprep.mubr.bf16.mxu0 0
  %265 = vmatmul.mubr.bf16.gmra.mrb[0].mxu0 %v230
  %v266 = vpop.f32.mrb[0].mxu0
  %v267 = vadd.f32 %v204, %v266
  %v268 = vpop.f32.mrb[0].mxu0
  %v269 = vpop.f32.mrb[0].mxu0
  %v270 = vadd.f32 %v204, %v269
  %v271 = vpop.f32.mrb[0].mxu0
  %272 = vdwg.mxu0
  %s273 = scalar_lea.vmem %s4, 32
  %v274 = vld [vmem:[%s273] sm:$0xf]
  %v275 = vld [vmem:[%s273 + $0x4] sm:$0xf]
  %v276 = vld [vmem:[%s273 + $0x8] sm:$0xf]
  %v277 = vld [vmem:[%s273 + $0xc] sm:$0xf]
  %v278 = vld [vmem:[%s273 + $0x10] sm:$0xf]
  %v279 = vld [vmem:[%s273 + $0x14] sm:$0xf]
  %v280 = vld [vmem:[%s273 + $0x18] sm:$0xf]
  %v281 = vld [vmem:[%s273 + $0x1c] sm:$0xf]
  %s282 = scalar_lea.vmem %s6, 1
  %v283 = vld [vmem:[%s282] sm:$0x1]
  %s284 = scalar_lea.vmem %s7, 1
  %v285 = vld [vmem:[%s284] sm:$0x1]
  %v286 = vadd.f32 %v283, %v285
  %v288 = vlaneseq
  %v289 = vshrl.u32 %v288, 7
  %v290 = vsub.s32 0, %v289
  %v291 = vrot.slane %v286, %v290
  %v301 = vunpack.c.l.b16 %v274
  %v302 = vunpack.c.l.b16 %v275
  %v303 = vunpack.c.l.b16 %v276
  %v304 = vunpack.c.l.b16 %v277
  %v305 = vunpack.c.l.b16 %v278
  %v306 = vunpack.c.l.b16 %v279
  %v307 = vunpack.c.l.b16 %v280
  %v308 = vunpack.c.l.b16 %v281
  %v309 = vpack.c.b16 %v302, %v301
  %v310 = vpack.c.b16 %v304, %v303
  %v311 = vpack.c.b16 %v306, %v305
  %v312 = vpack.c.b16 %v308, %v307
  %317 = vmatprep.subr.bf16.mxu0 0
  %318 = vmatpush1.bf16.msra.mxu0 %v309
  %319 = vmatprep.subr.bf16.mxu0 0
  %320 = vmatpush1.bf16.msra.mxu0 %v310
  %321 = vmatprep.subr.bf16.mxu0 0
  %322 = vmatpush1.bf16.msra.mxu0 %v311
  %323 = vmatprep.subr.bf16.mxu0 0
  %324 = vmatpush1.bf16.msra.mxu0 %v312
  %325 = vmatprep.subr.bf16.mxu0 0
  %326 = vmatpush1.bf16.msra.mxu0 0
  %327 = vmatprep.subr.bf16.mxu0 0
  %328 = vmatpush1.bf16.msra.mxu0 0
  %329 = vmatprep.subr.bf16.mxu0 0
  %330 = vmatpush1.bf16.msra.mxu0 0
  %331 = vmatprep.subr.bf16.mxu0 0
  %332 = vmatpush1.bf16.msra.mxu0 0
  %333 = vmatprep.subr.bf16.mxu0 0
  %334 = vmatpush1.bf16.msra.mxu0 0
  %335 = vmatprep.subr.bf16.mxu0 0
  %336 = vmatpush1.bf16.msra.mxu0 0
  %337 = vmatprep.subr.bf16.mxu0 0
  %338 = vmatpush1.bf16.msra.mxu0 0
  %339 = vmatprep.subr.bf16.mxu0 0
  %340 = vmatpush1.bf16.msra.mxu0 0
  %341 = vmatprep.subr.bf16.mxu0 0
  %342 = vmatpush1.bf16.msra.mxu0 0
  %343 = vmatprep.subr.bf16.mxu0 0
  %344 = vmatpush1.bf16.msra.mxu0 0
  %345 = vmatprep.subr.bf16.mxu0 0
  %346 = vmatpush1.bf16.msra.mxu0 0
  %347 = vmatprep.subr.bf16.mxu0 0
  %348 = vmatpush1.bf16.msra.mxu0 0
  %349 = vmatprep.mubr.bf16.mxu0 0
  %350 = vmatmul.mubr.bf16.gmra.mrb[0].mxu0 %v230
  %v351 = vpop.f32.mrb[0].mxu0
  %v352 = vadd.f32 %v291, %v351
  %v353 = vpop.f32.mrb[0].mxu0
  %v354 = vpop.f32.mrb[0].mxu0
  %v355 = vadd.f32 %v291, %v354
  %v356 = vpop.f32.mrb[0].mxu0
  %357 = vdwg.mxu0
  %s358 = scalar_lea.vmem %s4, 64
  %v359 = vld [vmem:[%s358] sm:$0xf]
  %v360 = vld [vmem:[%s358 + $0x4] sm:$0xf]
  %v361 = vld [vmem:[%s358 + $0x8] sm:$0xf]
  %v362 = vld [vmem:[%s358 + $0xc] sm:$0xf]
  %v363 = vld [vmem:[%s358 + $0x10] sm:$0xf]
  %v364 = vld [vmem:[%s358 + $0x14] sm:$0xf]
  %v365 = vld [vmem:[%s358 + $0x18] sm:$0xf]
  %v366 = vld [vmem:[%s358 + $0x1c] sm:$0xf]
  %s367 = scalar_lea.vmem %s6, 2
  %v368 = vld [vmem:[%s367] sm:$0x1]
  %v370 = vlaneseq
  %v371 = vshrl.u32 %v370, 7
  %v372 = vsub.s32 0, %v371
  %v373 = vrot.slane %v368, %v372
  %v383 = vunpack.c.l.b16 %v359
  %v384 = vunpack.c.l.b16 %v360
  %v385 = vunpack.c.l.b16 %v361
  %v386 = vunpack.c.l.b16 %v362
  %v387 = vunpack.c.l.b16 %v363
  %v388 = vunpack.c.l.b16 %v364
  %v389 = vunpack.c.l.b16 %v365
  %v390 = vunpack.c.l.b16 %v366
  %v391 = vpack.c.b16 %v384, %v383
  %v392 = vpack.c.b16 %v386, %v385
  %v393 = vpack.c.b16 %v388, %v387
  %v394 = vpack.c.b16 %v390, %v389
  %399 = vmatprep.subr.bf16.mxu0 0
  %400 = vmatpush1.bf16.msra.mxu0 %v391
  %401 = vmatprep.subr.bf16.mxu0 0
  %402 = vmatpush1.bf16.msra.mxu0 %v392
  %403 = vmatprep.subr.bf16.mxu0 0
  %404 = vmatpush1.bf16.msra.mxu0 %v393
  %405 = vmatprep.subr.bf16.mxu0 0
  %406 = vmatpush1.bf16.msra.mxu0 %v394
  %407 = vmatprep.subr.bf16.mxu0 0
  %408 = vmatpush1.bf16.msra.mxu0 0
  %409 = vmatprep.subr.bf16.mxu0 0
  %410 = vmatpush1.bf16.msra.mxu0 0
  %411 = vmatprep.subr.bf16.mxu0 0
  %412 = vmatpush1.bf16.msra.mxu0 0
  %413 = vmatprep.subr.bf16.mxu0 0
  %414 = vmatpush1.bf16.msra.mxu0 0
  %415 = vmatprep.subr.bf16.mxu0 0
  %416 = vmatpush1.bf16.msra.mxu0 0
  %417 = vmatprep.subr.bf16.mxu0 0
  %418 = vmatpush1.bf16.msra.mxu0 0
  %419 = vmatprep.subr.bf16.mxu0 0
  %420 = vmatpush1.bf16.msra.mxu0 0
  %421 = vmatprep.subr.bf16.mxu0 0
  %422 = vmatpush1.bf16.msra.mxu0 0
  %423 = vmatprep.subr.bf16.mxu0 0
  %424 = vmatpush1.bf16.msra.mxu0 0
  %425 = vmatprep.subr.bf16.mxu0 0
  %426 = vmatpush1.bf16.msra.mxu0 0
  %427 = vmatprep.subr.bf16.mxu0 0
  %428 = vmatpush1.bf16.msra.mxu0 0
  %429 = vmatprep.subr.bf16.mxu0 0
  %430 = vmatpush1.bf16.msra.mxu0 0
  %431 = vmatprep.mubr.bf16.mxu0 0
  %432 = vmatmul.mubr.bf16.gmra.mrb[0].mxu0 %v230
  %v433 = vpop.f32.mrb[0].mxu0
  %v434 = vadd.f32 %v373, %v433
  %v435 = vpop.f32.mrb[0].mxu0
  %v436 = vpop.f32.mrb[0].mxu0
  %v437 = vadd.f32 %v373, %v436
  %v438 = vpop.f32.mrb[0].mxu0
  %439 = vdwg.mxu0
  %v440 = vld [vmem:[%s5] sm:$0xf]
  %v441 = vld [vmem:[%s5 + $0x4] sm:$0xf]
  %v442 = vld [vmem:[%s5 + $0x8] sm:$0xf]
  %v443 = vld [vmem:[%s5 + $0xc] sm:$0xf]
  %v444 = vld [vmem:[%s5 + $0x10] sm:$0xf]
  %v445 = vld [vmem:[%s5 + $0x14] sm:$0xf]
  %v446 = vld [vmem:[%s5 + $0x18] sm:$0xf]
  %v447 = vld [vmem:[%s5 + $0x1c] sm:$0xf]
  %s448 = scalar_lea.vmem %s5, 32
  %v449 = vld [vmem:[%s448] sm:$0xf]
  %v450 = vld [vmem:[%s448 + $0x4] sm:$0xf]
  %v451 = vld [vmem:[%s448 + $0x8] sm:$0xf]
  %v452 = vld [vmem:[%s448 + $0xc] sm:$0xf]
  %v453 = vld [vmem:[%s448 + $0x10] sm:$0xf]
  %v454 = vld [vmem:[%s448 + $0x14] sm:$0xf]
  %v455 = vld [vmem:[%s448 + $0x18] sm:$0xf]
  %v456 = vld [vmem:[%s448 + $0x1c] sm:$0xf]
  %s457 = scalar_lea.vmem %s5, 64
  %v458 = vld [vmem:[%s457] sm:$0xf]
  %v459 = vld [vmem:[%s457 + $0x4] sm:$0xf]
  %v460 = vld [vmem:[%s457 + $0x8] sm:$0xf]
  %v461 = vld [vmem:[%s457 + $0xc] sm:$0xf]
  %v462 = vld [vmem:[%s457 + $0x10] sm:$0xf]
  %v463 = vld [vmem:[%s457 + $0x14] sm:$0xf]
  %v464 = vld [vmem:[%s457 + $0x18] sm:$0xf]
  %v465 = vld [vmem:[%s457 + $0x1c] sm:$0xf]
  %s466 = scalar_lea.vmem %s7, 2
  %v467 = vld [vmem:[%s466] sm:$0x1]
  %v469 = vlaneseq
  %v470 = vshrl.u32 %v469, 7
  %v471 = vsub.s32 0, %v470
  %v472 = vrot.slane %v467, %v471
  %v482 = vunpack.c.l.b16 %v440
  %v483 = vunpack.c.l.b16 %v441
  %v484 = vunpack.c.l.b16 %v442
  %v485 = vunpack.c.l.b16 %v443
  %v486 = vunpack.c.l.b16 %v444
  %v487 = vunpack.c.l.b16 %v445
  %v488 = vunpack.c.l.b16 %v446
  %v489 = vunpack.c.l.b16 %v447
  %v490 = vpack.c.b16 %v483, %v482
  %v491 = vpack.c.b16 %v485, %v484
  %v492 = vpack.c.b16 %v487, %v486
  %v493 = vpack.c.b16 %v489, %v488
  %v499 = vsel %vm124, 0, 0
  %501 = vmatprep.subr.bf16.mxu0 0
  %502 = vmatpush1.bf16.msra.mxu0 %v490
  %503 = vmatprep.subr.bf16.mxu0 0
  %504 = vmatpush1.bf16.msra.mxu0 %v491
  %505 = vmatprep.subr.bf16.mxu0 0
  %506 = vmatpush1.bf16.msra.mxu0 %v492
  %507 = vmatprep.subr.bf16.mxu0 0
  %508 = vmatpush1.bf16.msra.mxu0 %v493
  %509 = vmatprep.subr.bf16.mxu0 0
  %510 = vmatpush1.bf16.msra.mxu0 0
  %511 = vmatprep.subr.bf16.mxu0 0
  %512 = vmatpush1.bf16.msra.mxu0 0
  %513 = vmatprep.subr.bf16.mxu0 0
  %514 = vmatpush1.bf16.msra.mxu0 0
  %515 = vmatprep.subr.bf16.mxu0 0
  %516 = vmatpush1.bf16.msra.mxu0 0
  %517 = vmatprep.subr.bf16.mxu0 0
  %518 = vmatpush1.bf16.msra.mxu0 0
  %519 = vmatprep.subr.bf16.mxu0 0
  %520 = vmatpush1.bf16.msra.mxu0 0
  %521 = vmatprep.subr.bf16.mxu0 0
  %522 = vmatpush1.bf16.msra.mxu0 0
  %523 = vmatprep.subr.bf16.mxu0 0
  %524 = vmatpush1.bf16.msra.mxu0 0
  %525 = vmatprep.subr.bf16.mxu0 0
  %526 = vmatpush1.bf16.msra.mxu0 0
  %527 = vmatprep.subr.bf16.mxu0 0
  %528 = vmatpush1.bf16.msra.mxu0 0
  %529 = vmatprep.subr.bf16.mxu0 0
  %530 = vmatpush1.bf16.msra.mxu0 0
  %531 = vmatprep.subr.bf16.mxu0 0
  %532 = vmatpush1.bf16.msra.mxu0 0
  %533 = vmatprep.mubr.bf16.mxu0 0
  %534 = vmatmul.mubr.bf16.gmra.mrb[0].mxu0 %v499
  %v535 = vpop.f32.mrb[0].mxu0
  %v536 = vadd.f32 0.0, %v535
  %v537 = vpop.f32.mrb[0].mxu0
  %v538 = vpop.f32.mrb[0].mxu0
  %v539 = vpop.f32.mrb[0].mxu0
  %540 = vdwg.mxu0
  %v549 = vunpack.c.l.b16 %v449
  %v550 = vunpack.c.l.b16 %v450
  %v551 = vunpack.c.l.b16 %v451
  %v552 = vunpack.c.l.b16 %v452
  %v553 = vunpack.c.l.b16 %v453
  %v554 = vunpack.c.l.b16 %v454
  %v555 = vunpack.c.l.b16 %v455
  %v556 = vunpack.c.l.b16 %v456
  %v557 = vpack.c.b16 %v550, %v549
  %v558 = vpack.c.b16 %v552, %v551
  %v559 = vpack.c.b16 %v554, %v553
  %v560 = vpack.c.b16 %v556, %v555
  %565 = vmatprep.subr.bf16.mxu0 0
  %566 = vmatpush1.bf16.msra.mxu0 %v557
  %567 = vmatprep.subr.bf16.mxu0 0
  %568 = vmatpush1.bf16.msra.mxu0 %v558
  %569 = vmatprep.subr.bf16.mxu0 0
  %570 = vmatpush1.bf16.msra.mxu0 %v559
  %571 = vmatprep.subr.bf16.mxu0 0
  %572 = vmatpush1.bf16.msra.mxu0 %v560
  %573 = vmatprep.subr.bf16.mxu0 0
  %574 = vmatpush1.bf16.msra.mxu0 0
  %575 = vmatprep.subr.bf16.mxu0 0
  %576 = vmatpush1.bf16.msra.mxu0 0
  %577 = vmatprep.subr.bf16.mxu0 0
  %578 = vmatpush1.bf16.msra.mxu0 0
  %579 = vmatprep.subr.bf16.mxu0 0
  %580 = vmatpush1.bf16.msra.mxu0 0
  %581 = vmatprep.subr.bf16.mxu0 0
  %582 = vmatpush1.bf16.msra.mxu0 0
  %583 = vmatprep.subr.bf16.mxu0 0
  %584 = vmatpush1.bf16.msra.mxu0 0
  %585 = vmatprep.subr.bf16.mxu0 0
  %586 = vmatpush1.bf16.msra.mxu0 0
  %587 = vmatprep.subr.bf16.mxu0 0
  %588 = vmatpush1.bf16.msra.mxu0 0
  %589 = vmatprep.subr.bf16.mxu0 0
  %590 = vmatpush1.bf16.msra.mxu0 0
  %591 = vmatprep.subr.bf16.mxu0 0
  %592 = vmatpush1.bf16.msra.mxu0 0
  %593 = vmatprep.subr.bf16.mxu0 0
  %594 = vmatpush1.bf16.msra.mxu0 0
  %595 = vmatprep.subr.bf16.mxu0 0
  %596 = vmatpush1.bf16.msra.mxu0 0
  %597 = vmatprep.mubr.bf16.mxu0 0
  %598 = vmatmul.mubr.bf16.gmra.mrb[0].mxu0 %v499
  %v599 = vpop.f32.mrb[0].mxu0
  %v600 = vadd.f32 0.0, %v599
  %v601 = vpop.f32.mrb[0].mxu0
  %v602 = vpop.f32.mrb[0].mxu0
  %v603 = vpop.f32.mrb[0].mxu0
  %604 = vdwg.mxu0
  %v605 = vadd.f32 %v267, %v536
  %v606 = vmul.f32 %v605, 0.5
  %v607 = vtanh.pop %v606
  %v608 = vadd.f32 %v607, 1.0
  %v609 = vmul.f32 %v608, 0.5
  %v610 = vadd.f32 %v352, %v600
  %v611 = vmul.f32 %v610, 0.5
  %v612 = vtanh.pop %v611
  %v613 = vadd.f32 %v612, 1.0
  %v614 = vmul.f32 %v613, 0.5
  %v623 = vunpack.c.l.b16 %v458
  %v624 = vunpack.c.l.b16 %v459
  %v625 = vunpack.c.l.b16 %v460
  %v626 = vunpack.c.l.b16 %v461
  %v627 = vunpack.c.l.b16 %v462
  %v628 = vunpack.c.l.b16 %v463
  %v629 = vunpack.c.l.b16 %v464
  %v630 = vunpack.c.l.b16 %v465
  %v631 = vpack.c.b16 %v624, %v623
  %v632 = vpack.c.b16 %v626, %v625
  %v633 = vpack.c.b16 %v628, %v627
  %v634 = vpack.c.b16 %v630, %v629
  %639 = vmatprep.subr.bf16.mxu0 0
  %640 = vmatpush1.bf16.msra.mxu0 %v631
  %641 = vmatprep.subr.bf16.mxu0 0
  %642 = vmatpush1.bf16.msra.mxu0 %v632
  %643 = vmatprep.subr.bf16.mxu0 0
  %644 = vmatpush1.bf16.msra.mxu0 %v633
  %645 = vmatprep.subr.bf16.mxu0 0
  %646 = vmatpush1.bf16.msra.mxu0 %v634
  %647 = vmatprep.subr.bf16.mxu0 0
  %648 = vmatpush1.bf16.msra.mxu0 0
  %649 = vmatprep.subr.bf16.mxu0 0
  %650 = vmatpush1.bf16.msra.mxu0 0
  %651 = vmatprep.subr.bf16.mxu0 0
  %652 = vmatpush1.bf16.msra.mxu0 0
  %653 = vmatprep.subr.bf16.mxu0 0
  %654 = vmatpush1.bf16.msra.mxu0 0
  %655 = vmatprep.subr.bf16.mxu0 0
  %656 = vmatpush1.bf16.msra.mxu0 0
  %657 = vmatprep.subr.bf16.mxu0 0
  %658 = vmatpush1.bf16.msra.mxu0 0
  %659 = vmatprep.subr.bf16.mxu0 0
  %660 = vmatpush1.bf16.msra.mxu0 0
  %661 = vmatprep.subr.bf16.mxu0 0
  %662 = vmatpush1.bf16.msra.mxu0 0
  %663 = vmatprep.subr.bf16.mxu0 0
  %664 = vmatpush1.bf16.msra.mxu0 0
  %665 = vmatprep.subr.bf16.mxu0 0
  %666 = vmatpush1.bf16.msra.mxu0 0
  %667 = vmatprep.subr.bf16.mxu0 0
  %668 = vmatpush1.bf16.msra.mxu0 0
  %669 = vmatprep.subr.bf16.mxu0 0
  %670 = vmatpush1.bf16.msra.mxu0 0
  %671 = vmatprep.mubr.bf16.mxu0 0
  %672 = vmatmul.mubr.bf16.gmra.mrb[0].mxu0 %v499
  %v673 = vpop.f32.mrb[0].mxu0
  %v674 = vadd.f32 %v472, %v673
  %v675 = vpop.f32.mrb[0].mxu0
  %v676 = vpop.f32.mrb[0].mxu0
  %v677 = vpop.f32.mrb[0].mxu0
  %678 = vdwg.mxu0
  %v679 = vmul.f32 %v609, %v674
  %v680 = vadd.f32 %v434, %v679
  %v681 = vtanh.pop %v680
  %v682 = vsub.f32 1.0, %v614
  %v683 = vmul.f32 %v682, %v681
  %v684 = vmul.f32 %v614, 0.0
  %v685 = vadd.f32 %v683, %v684
  %v686 = vpack.c.bf16 %v685, %v685
  %v688 = vsel %vm124, %v686, 0
  %690 = vmatprep.subr.bf16.mxu0 0
  %691 = vmatpush1.bf16.msra.mxu0 %v490
  %692 = vmatprep.subr.bf16.mxu0 0
  %693 = vmatpush1.bf16.msra.mxu0 %v491
  %694 = vmatprep.subr.bf16.mxu0 0
  %695 = vmatpush1.bf16.msra.mxu0 %v492
  %696 = vmatprep.subr.bf16.mxu0 0
  %697 = vmatpush1.bf16.msra.mxu0 %v493
  %698 = vmatprep.subr.bf16.mxu0 0
  %699 = vmatpush1.bf16.msra.mxu0 0
  %700 = vmatprep.subr.bf16.mxu0 0
  %701 = vmatpush1.bf16.msra.mxu0 0
  %702 = vmatprep.subr.bf16.mxu0 0
  %703 = vmatpush1.bf16.msra.mxu0 0
  %704 = vmatprep.subr.bf16.mxu0 0
  %705 = vmatpush1.bf16.msra.mxu0 0
  %706 = vmatprep.subr.bf16.mxu0 0
  %707 = vmatpush1.bf16.msra.mxu0 0
  %708 = vmatprep.subr.bf16.mxu0 0
  %709 = vmatpush1.bf16.msra.mxu0 0
  %710 = vmatprep.subr.bf16.mxu0 0
  %711 = vmatpush1.bf16.msra.mxu0 0
  %712 = vmatprep.subr.bf16.mxu0 0
  %713 = vmatpush1.bf16.msra.mxu0 0
  %714 = vmatprep.subr.bf16.mxu0 0
  %715 = vmatpush1.bf16.msra.mxu0 0
  %716 = vmatprep.subr.bf16.mxu0 0
  %717 = vmatpush1.bf16.msra.mxu0 0
  %718 = vmatprep.subr.bf16.mxu0 0
  %719 = vmatpush1.bf16.msra.mxu0 0
  %720 = vmatprep.subr.bf16.mxu0 0
  %721 = vmatpush1.bf16.msra.mxu0 0
  %722 = vmatprep.mubr.bf16.mxu0 0
  %723 = vmatmul.mubr.bf16.gmra.mrb[0].mxu0 %v688
  %v724 = vpop.f32.mrb[0].mxu0
  %v725 = vadd.f32 0.0, %v724
  %v726 = vpop.f32.mrb[0].mxu0
  %v727 = vpop.f32.mrb[0].mxu0
  %v728 = vpop.f32.mrb[0].mxu0
  %729 = vdwg.mxu0
  %730 = vmatprep.subr.bf16.mxu0 0
  %731 = vmatpush1.bf16.msra.mxu0 %v557
  %732 = vmatprep.subr.bf16.mxu0 0
  %733 = vmatpush1.bf16.msra.mxu0 %v558
  %734 = vmatprep.subr.bf16.mxu0 0
  %735 = vmatpush1.bf16.msra.mxu0 %v559
  %736 = vmatprep.subr.bf16.mxu0 0
  %737 = vmatpush1.bf16.msra.mxu0 %v560
  %738 = vmatprep.subr.bf16.mxu0 0
  %739 = vmatpush1.bf16.msra.mxu0 0
  %740 = vmatprep.subr.bf16.mxu0 0
  %741 = vmatpush1.bf16.msra.mxu0 0
  %742 = vmatprep.subr.bf16.mxu0 0
  %743 = vmatpush1.bf16.msra.mxu0 0
  %744 = vmatprep.subr.bf16.mxu0 0
  %745 = vmatpush1.bf16.msra.mxu0 0
  %746 = vmatprep.subr.bf16.mxu0 0
  %747 = vmatpush1.bf16.msra.mxu0 0
  %748 = vmatprep.subr.bf16.mxu0 0
  %749 = vmatpush1.bf16.msra.mxu0 0
  %750 = vmatprep.subr.bf16.mxu0 0
  %751 = vmatpush1.bf16.msra.mxu0 0
  %752 = vmatprep.subr.bf16.mxu0 0
  %753 = vmatpush1.bf16.msra.mxu0 0
  %754 = vmatprep.subr.bf16.mxu0 0
  %755 = vmatpush1.bf16.msra.mxu0 0
  %756 = vmatprep.subr.bf16.mxu0 0
  %757 = vmatpush1.bf16.msra.mxu0 0
  %758 = vmatprep.subr.bf16.mxu0 0
  %759 = vmatpush1.bf16.msra.mxu0 0
  %760 = vmatprep.subr.bf16.mxu0 0
  %761 = vmatpush1.bf16.msra.mxu0 0
  %762 = vmatprep.mubr.bf16.mxu0 0
  %763 = vmatmul.mubr.bf16.gmra.mrb[0].mxu0 %v688
  %v764 = vpop.f32.mrb[0].mxu0
  %v765 = vadd.f32 0.0, %v764
  %v766 = vpop.f32.mrb[0].mxu0
  %v767 = vpop.f32.mrb[0].mxu0
  %v768 = vpop.f32.mrb[0].mxu0
  %769 = vdwg.mxu0
  %v771 = vrot.slane %v725, 6
  %v773 = vadd.f32 %v267, %v771
  %v774 = vmul.f32 %v773, 0.5
  %v775 = vtanh.pop %v774
  %v776 = vadd.f32 %v775, 1.0
  %v777 = vmul.f32 %v776, 0.5
  %v779 = vrot.slane %v765, 6
  %v781 = vadd.f32 %v352, %v779
  %v782 = vmul.f32 %v781, 0.5
  %v783 = vtanh.pop %v782
  %v784 = vadd.f32 %v783, 1.0
  %v785 = vmul.f32 %v784, 0.5
  %786 = vmatprep.subr.bf16.mxu0 0
  %787 = vmatpush1.bf16.msra.mxu0 %v631
  %788 = vmatprep.subr.bf16.mxu0 0
  %789 = vmatpush1.bf16.msra.mxu0 %v632
  %790 = vmatprep.subr.bf16.mxu0 0
  %791 = vmatpush1.bf16.msra.mxu0 %v633
  %792 = vmatprep.subr.bf16.mxu0 0
  %793 = vmatpush1.bf16.msra.mxu0 %v634
  %794 = vmatprep.subr.bf16.mxu0 0
  %795 = vmatpush1.bf16.msra.mxu0 0
  %796 = vmatprep.subr.bf16.mxu0 0
  %797 = vmatpush1.bf16.msra.mxu0 0
  %798 = vmatprep.subr.bf16.mxu0 0
  %799 = vmatpush1.bf16.msra.mxu0 0
  %800 = vmatprep.subr.bf16.mxu0 0
  %801 = vmatpush1.bf16.msra.mxu0 0
  %802 = vmatprep.subr.bf16.mxu0 0
  %803 = vmatpush1.bf16.msra.mxu0 0
  %804 = vmatprep.subr.bf16.mxu0 0
  %805 = vmatpush1.bf16.msra.mxu0 0
  %806 = vmatprep.subr.bf16.mxu0 0
  %807 = vmatpush1.bf16.msra.mxu0 0
  %808 = vmatprep.subr.bf16.mxu0 0
  %809 = vmatpush1.bf16.msra.mxu0 0
  %810 = vmatprep.subr.bf16.mxu0 0
  %811 = vmatpush1.bf16.msra.mxu0 0
  %812 = vmatprep.subr.bf16.mxu0 0
  %813 = vmatpush1.bf16.msra.mxu0 0
  %814 = vmatprep.subr.bf16.mxu0 0
  %815 = vmatpush1.bf16.msra.mxu0 0
  %816 = vmatprep.subr.bf16.mxu0 0
  %817 = vmatpush1.bf16.msra.mxu0 0
  %818 = vmatprep.mubr.bf16.mxu0 0
  %819 = vmatmul.mubr.bf16.gmra.mrb[0].mxu0 %v688
  %v820 = vpop.f32.mrb[0].mxu0
  %v821 = vadd.f32 %v472, %v820
  %v822 = vpop.f32.mrb[0].mxu0
  %v823 = vpop.f32.mrb[0].mxu0
  %v824 = vpop.f32.mrb[0].mxu0
  %825 = vdwg.mxu0
  %v827 = vrot.slane %v821, 6
  %v829 = vmul.f32 %v777, %v827
  %v830 = vadd.f32 %v434, %v829
  %v831 = vtanh.pop %v830
  %v832 = vsub.f32 1.0, %v785
  %v833 = vmul.f32 %v832, %v831
  %v835 = vrot.slane %v685, 6
  %v837 = vmul.f32 %v785, %v835
  %v838 = vadd.f32 %v833, %v837
  %v839 = vpack.c.bf16 %v838, %v838
  %v841 = vrot.slane %v839, 1
  %v843 = vsel %vm124, %v841, 0
  %845 = vmatprep.subr.bf16.mxu0 0
  %846 = vmatpush1.bf16.msra.mxu0 %v490
  %847 = vmatprep.subr.bf16.mxu0 0
  %848 = vmatpush1.bf16.msra.mxu0 %v491
  %849 = vmatprep.subr.bf16.mxu0 0
  %850 = vmatpush1.bf16.msra.mxu0 %v492
  %851 = vmatprep.subr.bf16.mxu0 0
  %852 = vmatpush1.bf16.msra.mxu0 %v493
  %853 = vmatprep.subr.bf16.mxu0 0
  %854 = vmatpush1.bf16.msra.mxu0 0
  %855 = vmatprep.subr.bf16.mxu0 0
  %856 = vmatpush1.bf16.msra.mxu0 0
  %857 = vmatprep.subr.bf16.mxu0 0
  %858 = vmatpush1.bf16.msra.mxu0 0
  %859 = vmatprep.subr.bf16.mxu0 0
  %860 = vmatpush1.bf16.msra.mxu0 0
  %861 = vmatprep.subr.bf16.mxu0 0
  %862 = vmatpush1.bf16.msra.mxu0 0
  %863 = vmatprep.subr.bf16.mxu0 0
  %864 = vmatpush1.bf16.msra.mxu0 0
  %865 = vmatprep.subr.bf16.mxu0 0
  %866 = vmatpush1.bf16.msra.mxu0 0
  %867 = vmatprep.subr.bf16.mxu0 0
  %868 = vmatpush1.bf16.msra.mxu0 0
  %869 = vmatprep.subr.bf16.mxu0 0
  %870 = vmatpush1.bf16.msra.mxu0 0
  %871 = vmatprep.subr.bf16.mxu0 0
  %872 = vmatpush1.bf16.msra.mxu0 0
  %873 = vmatprep.subr.bf16.mxu0 0
  %874 = vmatpush1.bf16.msra.mxu0 0
  %875 = vmatprep.subr.bf16.mxu0 0
  %876 = vmatpush1.bf16.msra.mxu0 0
  %877 = vmatprep.mubr.bf16.mxu0 0
  %878 = vmatmul.mubr.bf16.gmra.mrb[0].mxu0 %v843
  %v879 = vpop.f32.mrb[0].mxu0
  %v880 = vadd.f32 0.0, %v879
  %v881 = vpop.f32.mrb[0].mxu0
  %v882 = vpop.f32.mrb[0].mxu0
  %v883 = vpop.f32.mrb[0].mxu0
  %884 = vdwg.mxu0
  %885 = vmatprep.subr.bf16.mxu0 0
  %886 = vmatpush1.bf16.msra.mxu0 %v557
  %887 = vmatprep.subr.bf16.mxu0 0
  %888 = vmatpush1.bf16.msra.mxu0 %v558
  %889 = vmatprep.subr.bf16.mxu0 0
  %890 = vmatpush1.bf16.msra.mxu0 %v559
  %891 = vmatprep.subr.bf16.mxu0 0
  %892 = vmatpush1.bf16.msra.mxu0 %v560
  %893 = vmatprep.subr.bf16.mxu0 0
  %894 = vmatpush1.bf16.msra.mxu0 0
  %895 = vmatprep.subr.bf16.mxu0 0
  %896 = vmatpush1.bf16.msra.mxu0 0
  %897 = vmatprep.subr.bf16.mxu0 0
  %898 = vmatpush1.bf16.msra.mxu0 0
  %899 = vmatprep.subr.bf16.mxu0 0
  %900 = vmatpush1.bf16.msra.mxu0 0
  %901 = vmatprep.subr.bf16.mxu0 0
  %902 = vmatpush1.bf16.msra.mxu0 0
  %903 = vmatprep.subr.bf16.mxu0 0
  %904 = vmatpush1.bf16.msra.mxu0 0
  %905 = vmatprep.subr.bf16.mxu0 0
  %906 = vmatpush1.bf16.msra.mxu0 0
  %907 = vmatprep.subr.bf16.mxu0 0
  %908 = vmatpush1.bf16.msra.mxu0 0
  %909 = vmatprep.subr.bf16.mxu0 0
  %910 = vmatpush1.bf16.msra.mxu0 0
  %911 = vmatprep.subr.bf16.mxu0 0
  %912 = vmatpush1.bf16.msra.mxu0 0
  %913 = vmatprep.subr.bf16.mxu0 0
  %914 = vmatpush1.bf16.msra.mxu0 0
  %915 = vmatprep.subr.bf16.mxu0 0
  %916 = vmatpush1.bf16.msra.mxu0 0
  %917 = vmatprep.mubr.bf16.mxu0 0
  %918 = vmatmul.mubr.bf16.gmra.mrb[0].mxu0 %v843
  %v919 = vpop.f32.mrb[0].mxu0
  %v920 = vadd.f32 0.0, %v919
  %v921 = vpop.f32.mrb[0].mxu0
  %v922 = vpop.f32.mrb[0].mxu0
  %v923 = vpop.f32.mrb[0].mxu0
  %924 = vdwg.mxu0
  %v926 = vrot.slane %v880, 4
  %v928 = vadd.f32 %v267, %v926
  %v929 = vmul.f32 %v928, 0.5
  %v930 = vtanh.pop %v929
  %v931 = vadd.f32 %v930, 1.0
  %v932 = vmul.f32 %v931, 0.5
  %v934 = vrot.slane %v920, 4
  %v936 = vadd.f32 %v352, %v934
  %v937 = vmul.f32 %v936, 0.5
  %v938 = vtanh.pop %v937
  %v939 = vadd.f32 %v938, 1.0
  %v940 = vmul.f32 %v939, 0.5
  %941 = vmatprep.subr.bf16.mxu0 0
  %942 = vmatpush1.bf16.msra.mxu0 %v631
  %943 = vmatprep.subr.bf16.mxu0 0
  %944 = vmatpush1.bf16.msra.mxu0 %v632
  %945 = vmatprep.subr.bf16.mxu0 0
  %946 = vmatpush1.bf16.msra.mxu0 %v633
  %947 = vmatprep.subr.bf16.mxu0 0
  %948 = vmatpush1.bf16.msra.mxu0 %v634
  %949 = vmatprep.subr.bf16.mxu0 0
  %950 = vmatpush1.bf16.msra.mxu0 0
  %951 = vmatprep.subr.bf16.mxu0 0
  %952 = vmatpush1.bf16.msra.mxu0 0
  %953 = vmatprep.subr.bf16.mxu0 0
  %954 = vmatpush1.bf16.msra.mxu0 0
  %955 = vmatprep.subr.bf16.mxu0 0
  %956 = vmatpush1.bf16.msra.mxu0 0
  %957 = vmatprep.subr.bf16.mxu0 0
  %958 = vmatpush1.bf16.msra.mxu0 0
  %959 = vmatprep.subr.bf16.mxu0 0
  %960 = vmatpush1.bf16.msra.mxu0 0
  %961 = vmatprep.subr.bf16.mxu0 0
  %962 = vmatpush1.bf16.msra.mxu0 0
  %963 = vmatprep.subr.bf16.mxu0 0
  %964 = vmatpush1.bf16.msra.mxu0 0
  %965 = vmatprep.subr.bf16.mxu0 0
  %966 = vmatpush1.bf16.msra.mxu0 0
  %967 = vmatprep.subr.bf16.mxu0 0
  %968 = vmatpush1.bf16.msra.mxu0 0
  %969 = vmatprep.subr.bf16.mxu0 0
  %970 = vmatpush1.bf16.msra.mxu0 0
  %971 = vmatprep.subr.bf16.mxu0 0
  %972 = vmatpush1.bf16.msra.mxu0 0
  %973 = vmatprep.mubr.bf16.mxu0 0
  %974 = vmatmul.mubr.bf16.gmra.mrb[0].mxu0 %v843
  %v975 = vpop.f32.mrb[0].mxu0
  %v976 = vadd.f32 %v472, %v975
  %v977 = vpop.f32.mrb[0].mxu0
  %v978 = vpop.f32.mrb[0].mxu0
  %v979 = vpop.f32.mrb[0].mxu0
  %980 = vdwg.mxu0
  %v982 = vrot.slane %v976, 4
  %v984 = vmul.f32 %v932, %v982
  %v985 = vadd.f32 %v434, %v984
  %v986 = vtanh.pop %v985
  %v987 = vsub.f32 1.0, %v940
  %v988 = vmul.f32 %v987, %v986
  %v990 = vrot.slane %v838, 6
  %v992 = vmul.f32 %v940, %v990
  %v993 = vadd.f32 %v988, %v992
  %v994 = vpack.c.bf16 %v993, %v993
  %v996 = vrot.slane %v994, 2
  %v998 = vsel %vm124, %v996, 0
  %1000 = vmatprep.subr.bf16.mxu0 0
  %1001 = vmatpush1.bf16.msra.mxu0 %v490
  %1002 = vmatprep.subr.bf16.mxu0 0
  %1003 = vmatpush1.bf16.msra.mxu0 %v491
  %1004 = vmatprep.subr.bf16.mxu0 0
  %1005 = vmatpush1.bf16.msra.mxu0 %v492
  %1006 = vmatprep.subr.bf16.mxu0 0
  %1007 = vmatpush1.bf16.msra.mxu0 %v493
  %1008 = vmatprep.subr.bf16.mxu0 0
  %1009 = vmatpush1.bf16.msra.mxu0 0
  %1010 = vmatprep.subr.bf16.mxu0 0
  %1011 = vmatpush1.bf16.msra.mxu0 0
  %1012 = vmatprep.subr.bf16.mxu0 0
  %1013 = vmatpush1.bf16.msra.mxu0 0
  %1014 = vmatprep.subr.bf16.mxu0 0
  %1015 = vmatpush1.bf16.msra.mxu0 0
  %1016 = vmatprep.subr.bf16.mxu0 0
  %1017 = vmatpush1.bf16.msra.mxu0 0
  %1018 = vmatprep.subr.bf16.mxu0 0
  %1019 = vmatpush1.bf16.msra.mxu0 0
  %1020 = vmatprep.subr.bf16.mxu0 0
  %1021 = vmatpush1.bf16.msra.mxu0 0
  %1022 = vmatprep.subr.bf16.mxu0 0
  %1023 = vmatpush1.bf16.msra.mxu0 0
  %1024 = vmatprep.subr.bf16.mxu0 0
  %1025 = vmatpush1.bf16.msra.mxu0 0
  %1026 = vmatprep.subr.bf16.mxu0 0
  %1027 = vmatpush1.bf16.msra.mxu0 0
  %1028 = vmatprep.subr.bf16.mxu0 0
  %1029 = vmatpush1.bf16.msra.mxu0 0
  %1030 = vmatprep.subr.bf16.mxu0 0
  %1031 = vmatpush1.bf16.msra.mxu0 0
  %1032 = vmatprep.mubr.bf16.mxu0 0
  %1033 = vmatmul.mubr.bf16.gmra.mrb[0].mxu0 %v998
  %v1034 = vpop.f32.mrb[0].mxu0
  %v1035 = vadd.f32 0.0, %v1034
  %v1036 = vpop.f32.mrb[0].mxu0
  %v1037 = vpop.f32.mrb[0].mxu0
  %v1038 = vpop.f32.mrb[0].mxu0
  %1039 = vdwg.mxu0
  %1040 = vmatprep.subr.bf16.mxu0 0
  %1041 = vmatpush1.bf16.msra.mxu0 %v557
  %1042 = vmatprep.subr.bf16.mxu0 0
  %1043 = vmatpush1.bf16.msra.mxu0 %v558
  %1044 = vmatprep.subr.bf16.mxu0 0
  %1045 = vmatpush1.bf16.msra.mxu0 %v559
  %1046 = vmatprep.subr.bf16.mxu0 0
  %1047 = vmatpush1.bf16.msra.mxu0 %v560
  %1048 = vmatprep.subr.bf16.mxu0 0
  %1049 = vmatpush1.bf16.msra.mxu0 0
  %1050 = vmatprep.subr.bf16.mxu0 0
  %1051 = vmatpush1.bf16.msra.mxu0 0
  %1052 = vmatprep.subr.bf16.mxu0 0
  %1053 = vmatpush1.bf16.msra.mxu0 0
  %1054 = vmatprep.subr.bf16.mxu0 0
  %1055 = vmatpush1.bf16.msra.mxu0 0
  %1056 = vmatprep.subr.bf16.mxu0 0
  %1057 = vmatpush1.bf16.msra.mxu0 0
  %1058 = vmatprep.subr.bf16.mxu0 0
  %1059 = vmatpush1.bf16.msra.mxu0 0
  %1060 = vmatprep.subr.bf16.mxu0 0
  %1061 = vmatpush1.bf16.msra.mxu0 0
  %1062 = vmatprep.subr.bf16.mxu0 0
  %1063 = vmatpush1.bf16.msra.mxu0 0
  %1064 = vmatprep.subr.bf16.mxu0 0
  %1065 = vmatpush1.bf16.msra.mxu0 0
  %1066 = vmatprep.subr.bf16.mxu0 0
  %1067 = vmatpush1.bf16.msra.mxu0 0
  %1068 = vmatprep.subr.bf16.mxu0 0
  %1069 = vmatpush1.bf16.msra.mxu0 0
  %1070 = vmatprep.subr.bf16.mxu0 0
  %1071 = vmatpush1.bf16.msra.mxu0 0
  %1072 = vmatprep.mubr.bf16.mxu0 0
  %1073 = vmatmul.mubr.bf16.gmra.mrb[0].mxu0 %v998
  %v1074 = vpop.f32.mrb[0].mxu0
  %v1075 = vadd.f32 0.0, %v1074
  %v1076 = vpop.f32.mrb[0].mxu0
  %v1077 = vpop.f32.mrb[0].mxu0
  %v1078 = vpop.f32.mrb[0].mxu0
  %1079 = vdwg.mxu0
  %v1081 = vrot.slane %v1035, 2
  %v1083 = vadd.f32 %v267, %v1081
  %v1084 = vmul.f32 %v1083, 0.5
  %v1085 = vtanh.pop %v1084
  %v1086 = vadd.f32 %v1085, 1.0
  %v1087 = vmul.f32 %v1086, 0.5
  %v1089 = vrot.slane %v1075, 2
  %v1091 = vadd.f32 %v352, %v1089
  %v1092 = vmul.f32 %v1091, 0.5
  %v1093 = vtanh.pop %v1092
  %v1094 = vadd.f32 %v1093, 1.0
  %v1095 = vmul.f32 %v1094, 0.5
  %1096 = vmatprep.subr.bf16.mxu0 0
  %1097 = vmatpush1.bf16.msra.mxu0 %v631
  %1098 = vmatprep.subr.bf16.mxu0 0
  %1099 = vmatpush1.bf16.msra.mxu0 %v632
  %1100 = vmatprep.subr.bf16.mxu0 0
  %1101 = vmatpush1.bf16.msra.mxu0 %v633
  %1102 = vmatprep.subr.bf16.mxu0 0
  %1103 = vmatpush1.bf16.msra.mxu0 %v634
  %1104 = vmatprep.subr.bf16.mxu0 0
  %1105 = vmatpush1.bf16.msra.mxu0 0
  %1106 = vmatprep.subr.bf16.mxu0 0
  %1107 = vmatpush1.bf16.msra.mxu0 0
  %1108 = vmatprep.subr.bf16.mxu0 0
  %1109 = vmatpush1.bf16.msra.mxu0 0
  %1110 = vmatprep.subr.bf16.mxu0 0
  %1111 = vmatpush1.bf16.msra.mxu0 0
  %1112 = vmatprep.subr.bf16.mxu0 0
  %1113 = vmatpush1.bf16.msra.mxu0 0
  %1114 = vmatprep.subr.bf16.mxu0 0
  %1115 = vmatpush1.bf16.msra.mxu0 0
  %1116 = vmatprep.subr.bf16.mxu0 0
  %1117 = vmatpush1.bf16.msra.mxu0 0
  %1118 = vmatprep.subr.bf16.mxu0 0
  %1119 = vmatpush1.bf16.msra.mxu0 0
  %1120 = vmatprep.subr.bf16.mxu0 0
  %1121 = vmatpush1.bf16.msra.mxu0 0
  %1122 = vmatprep.subr.bf16.mxu0 0
  %1123 = vmatpush1.bf16.msra.mxu0 0
  %1124 = vmatprep.subr.bf16.mxu0 0
  %1125 = vmatpush1.bf16.msra.mxu0 0
  %1126 = vmatprep.subr.bf16.mxu0 0
  %1127 = vmatpush1.bf16.msra.mxu0 0
  %1128 = vmatprep.mubr.bf16.mxu0 0
  %1129 = vmatmul.mubr.bf16.gmra.mrb[0].mxu0 %v998
  %v1130 = vpop.f32.mrb[0].mxu0
  %v1131 = vadd.f32 %v472, %v1130
  %v1132 = vpop.f32.mrb[0].mxu0
  %v1133 = vpop.f32.mrb[0].mxu0
  %v1134 = vpop.f32.mrb[0].mxu0
  %1135 = vdwg.mxu0
  %v1137 = vrot.slane %v1131, 2
  %v1139 = vmul.f32 %v1087, %v1137
  %v1140 = vadd.f32 %v434, %v1139
  %v1141 = vtanh.pop %v1140
  %v1142 = vsub.f32 1.0, %v1095
  %v1143 = vmul.f32 %v1142, %v1141
  %v1145 = vrot.slane %v993, 6
  %v1147 = vmul.f32 %v1095, %v1145
  %v1148 = vadd.f32 %v1143, %v1147
  %v1149 = vpack.c.bf16 %v1148, %v1148
  %v1151 = vrot.slane %v1149, 3
  %v1153 = vsel %vm124, %v1151, 0
  %1155 = vmatprep.subr.bf16.mxu0 0
  %1156 = vmatpush1.bf16.msra.mxu0 %v490
  %1157 = vmatprep.subr.bf16.mxu0 0
  %1158 = vmatpush1.bf16.msra.mxu0 %v491
  %1159 = vmatprep.subr.bf16.mxu0 0
  %1160 = vmatpush1.bf16.msra.mxu0 %v492
  %1161 = vmatprep.subr.bf16.mxu0 0
  %1162 = vmatpush1.bf16.msra.mxu0 %v493
  %1163 = vmatprep.subr.bf16.mxu0 0
  %1164 = vmatpush1.bf16.msra.mxu0 0
  %1165 = vmatprep.subr.bf16.mxu0 0
  %1166 = vmatpush1.bf16.msra.mxu0 0
  %1167 = vmatprep.subr.bf16.mxu0 0
  %1168 = vmatpush1.bf16.msra.mxu0 0
  %1169 = vmatprep.subr.bf16.mxu0 0
  %1170 = vmatpush1.bf16.msra.mxu0 0
  %1171 = vmatprep.subr.bf16.mxu0 0
  %1172 = vmatpush1.bf16.msra.mxu0 0
  %1173 = vmatprep.subr.bf16.mxu0 0
  %1174 = vmatpush1.bf16.msra.mxu0 0
  %1175 = vmatprep.subr.bf16.mxu0 0
  %1176 = vmatpush1.bf16.msra.mxu0 0
  %1177 = vmatprep.subr.bf16.mxu0 0
  %1178 = vmatpush1.bf16.msra.mxu0 0
  %1179 = vmatprep.subr.bf16.mxu0 0
  %1180 = vmatpush1.bf16.msra.mxu0 0
  %1181 = vmatprep.subr.bf16.mxu0 0
  %1182 = vmatpush1.bf16.msra.mxu0 0
  %1183 = vmatprep.subr.bf16.mxu0 0
  %1184 = vmatpush1.bf16.msra.mxu0 0
  %1185 = vmatprep.subr.bf16.mxu0 0
  %1186 = vmatpush1.bf16.msra.mxu0 0
  %1187 = vmatprep.mubr.bf16.mxu0 0
  %1188 = vmatmul.mubr.bf16.gmra.mrb[0].mxu0 %v1153
  %v1189 = vpop.f32.mrb[0].mxu0
  %v1190 = vadd.f32 0.0, %v1189
  %v1191 = vpop.f32.mrb[0].mxu0
  %v1192 = vpop.f32.mrb[0].mxu0
  %v1193 = vpop.f32.mrb[0].mxu0
  %1194 = vdwg.mxu0
  %1195 = vmatprep.subr.bf16.mxu0 0
  %1196 = vmatpush1.bf16.msra.mxu0 %v557
  %1197 = vmatprep.subr.bf16.mxu0 0
  %1198 = vmatpush1.bf16.msra.mxu0 %v558
  %1199 = vmatprep.subr.bf16.mxu0 0
  %1200 = vmatpush1.bf16.msra.mxu0 %v559
  %1201 = vmatprep.subr.bf16.mxu0 0
  %1202 = vmatpush1.bf16.msra.mxu0 %v560
  %1203 = vmatprep.subr.bf16.mxu0 0
  %1204 = vmatpush1.bf16.msra.mxu0 0
  %1205 = vmatprep.subr.bf16.mxu0 0
  %1206 = vmatpush1.bf16.msra.mxu0 0
  %1207 = vmatprep.subr.bf16.mxu0 0
  %1208 = vmatpush1.bf16.msra.mxu0 0
  %1209 = vmatprep.subr.bf16.mxu0 0
  %1210 = vmatpush1.bf16.msra.mxu0 0
  %1211 = vmatprep.subr.bf16.mxu0 0
  %1212 = vmatpush1.bf16.msra.mxu0 0
  %1213 = vmatprep.subr.bf16.mxu0 0
  %1214 = vmatpush1.bf16.msra.mxu0 0
  %1215 = vmatprep.subr.bf16.mxu0 0
  %1216 = vmatpush1.bf16.msra.mxu0 0
  %1217 = vmatprep.subr.bf16.mxu0 0
  %1218 = vmatpush1.bf16.msra.mxu0 0
  %1219 = vmatprep.subr.bf16.mxu0 0
  %1220 = vmatpush1.bf16.msra.mxu0 0
  %1221 = vmatprep.subr.bf16.mxu0 0
  %1222 = vmatpush1.bf16.msra.mxu0 0
  %1223 = vmatprep.subr.bf16.mxu0 0
  %1224 = vmatpush1.bf16.msra.mxu0 0
  %1225 = vmatprep.subr.bf16.mxu0 0
  %1226 = vmatpush1.bf16.msra.mxu0 0
  %1227 = vmatprep.mubr.bf16.mxu0 0
  %1228 = vmatmul.mubr.bf16.gmra.mrb[0].mxu0 %v1153
  %v1229 = vpop.f32.mrb[0].mxu0
  %v1230 = vadd.f32 0.0, %v1229
  %v1231 = vpop.f32.mrb[0].mxu0
  %v1232 = vpop.f32.mrb[0].mxu0
  %v1233 = vpop.f32.mrb[0].mxu0
  %1234 = vdwg.mxu0
  %v1235 = vadd.f32 %v270, %v1190
  %v1236 = vmul.f32 %v1235, 0.5
  %v1237 = vtanh.pop %v1236
  %v1238 = vadd.f32 %v1237, 1.0
  %v1239 = vmul.f32 %v1238, 0.5
  %v1240 = vadd.f32 %v355, %v1230
  %v1241 = vmul.f32 %v1240, 0.5
  %v1242 = vtanh.pop %v1241
  %v1243 = vadd.f32 %v1242, 1.0
  %v1244 = vmul.f32 %v1243, 0.5
  %1245 = vmatprep.subr.bf16.mxu0 0
  %1246 = vmatpush1.bf16.msra.mxu0 %v631
  %1247 = vmatprep.subr.bf16.mxu0 0
  %1248 = vmatpush1.bf16.msra.mxu0 %v632
  %1249 = vmatprep.subr.bf16.mxu0 0
  %1250 = vmatpush1.bf16.msra.mxu0 %v633
  %1251 = vmatprep.subr.bf16.mxu0 0
  %1252 = vmatpush1.bf16.msra.mxu0 %v634
  %1253 = vmatprep.subr.bf16.mxu0 0
  %1254 = vmatpush1.bf16.msra.mxu0 0
  %1255 = vmatprep.subr.bf16.mxu0 0
  %1256 = vmatpush1.bf16.msra.mxu0 0
  %1257 = vmatprep.subr.bf16.mxu0 0
  %1258 = vmatpush1.bf16.msra.mxu0 0
  %1259 = vmatprep.subr.bf16.mxu0 0
  %1260 = vmatpush1.bf16.msra.mxu0 0
  %1261 = vmatprep.subr.bf16.mxu0 0
  %1262 = vmatpush1.bf16.msra.mxu0 0
  %1263 = vmatprep.subr.bf16.mxu0 0
  %1264 = vmatpush1.bf16.msra.mxu0 0
  %1265 = vmatprep.subr.bf16.mxu0 0
  %1266 = vmatpush1.bf16.msra.mxu0 0
  %1267 = vmatprep.subr.bf16.mxu0 0
  %1268 = vmatpush1.bf16.msra.mxu0 0
  %1269 = vmatprep.subr.bf16.mxu0 0
  %1270 = vmatpush1.bf16.msra.mxu0 0
  %1271 = vmatprep.subr.bf16.mxu0 0
  %1272 = vmatpush1.bf16.msra.mxu0 0
  %1273 = vmatprep.subr.bf16.mxu0 0
  %1274 = vmatpush1.bf16.msra.mxu0 0
  %1275 = vmatprep.subr.bf16.mxu0 0
  %1276 = vmatpush1.bf16.msra.mxu0 0
  %1277 = vmatprep.mubr.bf16.mxu0 0
  %1278 = vmatmul.mubr.bf16.gmra.mrb[0].mxu0 %v1153
  %v1279 = vpop.f32.mrb[0].mxu0
  %v1280 = vadd.f32 %v472, %v1279
  %v1281 = vpop.f32.mrb[0].mxu0
  %v1282 = vpop.f32.mrb[0].mxu0
  %v1283 = vpop.f32.mrb[0].mxu0
  %1284 = vdwg.mxu0
  %v1285 = vmul.f32 %v1239, %v1280
  %v1286 = vadd.f32 %v437, %v1285
  %v1287 = vtanh.pop %v1286
  %v1288 = vsub.f32 1.0, %v1244
  %v1289 = vmul.f32 %v1288, %v1287
  %v1291 = vrot.slane %v1148, 6
  %v1293 = vmul.f32 %v1244, %v1291
  %v1294 = vadd.f32 %v1289, %v1293
  %v1295 = vpack.c.bf16 %v1294, %v1294
  %v1297 = vsel %vm124, %v1295, 0
  %1299 = vmatprep.subr.bf16.mxu0 0
  %1300 = vmatpush1.bf16.msra.mxu0 %v490
  %1301 = vmatprep.subr.bf16.mxu0 0
  %1302 = vmatpush1.bf16.msra.mxu0 %v491
  %1303 = vmatprep.subr.bf16.mxu0 0
  %1304 = vmatpush1.bf16.msra.mxu0 %v492
  %1305 = vmatprep.subr.bf16.mxu0 0
  %1306 = vmatpush1.bf16.msra.mxu0 %v493
  %1307 = vmatprep.subr.bf16.mxu0 0
  %1308 = vmatpush1.bf16.msra.mxu0 0
  %1309 = vmatprep.subr.bf16.mxu0 0
  %1310 = vmatpush1.bf16.msra.mxu0 0
  %1311 = vmatprep.subr.bf16.mxu0 0
  %1312 = vmatpush1.bf16.msra.mxu0 0
  %1313 = vmatprep.subr.bf16.mxu0 0
  %1314 = vmatpush1.bf16.msra.mxu0 0
  %1315 = vmatprep.subr.bf16.mxu0 0
  %1316 = vmatpush1.bf16.msra.mxu0 0
  %1317 = vmatprep.subr.bf16.mxu0 0
  %1318 = vmatpush1.bf16.msra.mxu0 0
  %1319 = vmatprep.subr.bf16.mxu0 0
  %1320 = vmatpush1.bf16.msra.mxu0 0
  %1321 = vmatprep.subr.bf16.mxu0 0
  %1322 = vmatpush1.bf16.msra.mxu0 0
  %1323 = vmatprep.subr.bf16.mxu0 0
  %1324 = vmatpush1.bf16.msra.mxu0 0
  %1325 = vmatprep.subr.bf16.mxu0 0
  %1326 = vmatpush1.bf16.msra.mxu0 0
  %1327 = vmatprep.subr.bf16.mxu0 0
  %1328 = vmatpush1.bf16.msra.mxu0 0
  %1329 = vmatprep.subr.bf16.mxu0 0
  %1330 = vmatpush1.bf16.msra.mxu0 0
  %1331 = vmatprep.mubr.bf16.mxu0 0
  %1332 = vmatmul.mubr.bf16.gmra.mrb[0].mxu0 %v1297
  %v1333 = vpop.f32.mrb[0].mxu0
  %v1334 = vadd.f32 0.0, %v1333
  %v1335 = vpop.f32.mrb[0].mxu0
  %v1336 = vpop.f32.mrb[0].mxu0
  %v1337 = vpop.f32.mrb[0].mxu0
  %1338 = vdwg.mxu0
  %1339 = vmatprep.subr.bf16.mxu0 0
  %1340 = vmatpush1.bf16.msra.mxu0 %v557
  %1341 = vmatprep.subr.bf16.mxu0 0
  %1342 = vmatpush1.bf16.msra.mxu0 %v558
  %1343 = vmatprep.subr.bf16.mxu0 0
  %1344 = vmatpush1.bf16.msra.mxu0 %v559
  %1345 = vmatprep.subr.bf16.mxu0 0
  %1346 = vmatpush1.bf16.msra.mxu0 %v560
  %1347 = vmatprep.subr.bf16.mxu0 0
  %1348 = vmatpush1.bf16.msra.mxu0 0
  %1349 = vmatprep.subr.bf16.mxu0 0
  %1350 = vmatpush1.bf16.msra.mxu0 0
  %1351 = vmatprep.subr.bf16.mxu0 0
  %1352 = vmatpush1.bf16.msra.mxu0 0
  %1353 = vmatprep.subr.bf16.mxu0 0
  %1354 = vmatpush1.bf16.msra.mxu0 0
  %1355 = vmatprep.subr.bf16.mxu0 0
  %1356 = vmatpush1.bf16.msra.mxu0 0
  %1357 = vmatprep.subr.bf16.mxu0 0
  %1358 = vmatpush1.bf16.msra.mxu0 0
  %1359 = vmatprep.subr.bf16.mxu0 0
  %1360 = vmatpush1.bf16.msra.mxu0 0
  %1361 = vmatprep.subr.bf16.mxu0 0
  %1362 = vmatpush1.bf16.msra.mxu0 0
  %1363 = vmatprep.subr.bf16.mxu0 0
  %1364 = vmatpush1.bf16.msra.mxu0 0
  %1365 = vmatprep.subr.bf16.mxu0 0
  %1366 = vmatpush1.bf16.msra.mxu0 0
  %1367 = vmatprep.subr.bf16.mxu0 0
  %1368 = vmatpush1.bf16.msra.mxu0 0
  %1369 = vmatprep.subr.bf16.mxu0 0
  %1370 = vmatpush1.bf16.msra.mxu0 0
  %1371 = vmatprep.mubr.bf16.mxu0 0
  %1372 = vmatmul.mubr.bf16.gmra.mrb[0].mxu0 %v1297
  %v1373 = vpop.f32.mrb[0].mxu0
  %v1374 = vadd.f32 0.0, %v1373
  %v1375 = vpop.f32.mrb[0].mxu0
  %v1376 = vpop.f32.mrb[0].mxu0
  %v1377 = vpop.f32.mrb[0].mxu0
  %1378 = vdwg.mxu0
  %v1380 = vrot.slane %v1334, 6
  %v1382 = vadd.f32 %v270, %v1380
  %v1383 = vmul.f32 %v1382, 0.5
  %v1384 = vtanh.pop %v1383
  %v1385 = vadd.f32 %v1384, 1.0
  %v1386 = vmul.f32 %v1385, 0.5
  %v1388 = vrot.slane %v1374, 6
  %v1390 = vadd.f32 %v355, %v1388
  %v1391 = vmul.f32 %v1390, 0.5
  %v1392 = vtanh.pop %v1391
  %v1393 = vadd.f32 %v1392, 1.0
  %v1394 = vmul.f32 %v1393, 0.5
  %1395 = vmatprep.subr.bf16.mxu0 0
  %1396 = vmatpush1.bf16.msra.mxu0 %v631
  %1397 = vmatprep.subr.bf16.mxu0 0
  %1398 = vmatpush1.bf16.msra.mxu0 %v632
  %1399 = vmatprep.subr.bf16.mxu0 0
  %1400 = vmatpush1.bf16.msra.mxu0 %v633
  %1401 = vmatprep.subr.bf16.mxu0 0
  %1402 = vmatpush1.bf16.msra.mxu0 %v634
  %1403 = vmatprep.subr.bf16.mxu0 0
  %1404 = vmatpush1.bf16.msra.mxu0 0
  %1405 = vmatprep.subr.bf16.mxu0 0
  %1406 = vmatpush1.bf16.msra.mxu0 0
  %1407 = vmatprep.subr.bf16.mxu0 0
  %1408 = vmatpush1.bf16.msra.mxu0 0
  %1409 = vmatprep.subr.bf16.mxu0 0
  %1410 = vmatpush1.bf16.msra.mxu0 0
  %1411 = vmatprep.subr.bf16.mxu0 0
  %1412 = vmatpush1.bf16.msra.mxu0 0
  %1413 = vmatprep.subr.bf16.mxu0 0
  %1414 = vmatpush1.bf16.msra.mxu0 0
  %1415 = vmatprep.subr.bf16.mxu0 0
  %1416 = vmatpush1.bf16.msra.mxu0 0
  %1417 = vmatprep.subr.bf16.mxu0 0
  %1418 = vmatpush1.bf16.msra.mxu0 0
  %1419 = vmatprep.subr.bf16.mxu0 0
  %1420 = vmatpush1.bf16.msra.mxu0 0
  %1421 = vmatprep.subr.bf16.mxu0 0
  %1422 = vmatpush1.bf16.msra.mxu0 0
  %1423 = vmatprep.subr.bf16.mxu0 0
  %1424 = vmatpush1.bf16.msra.mxu0 0
  %1425 = vmatprep.subr.bf16.mxu0 0
  %1426 = vmatpush1.bf16.msra.mxu0 0
  %1427 = vmatprep.mubr.bf16.mxu0 0
  %1428 = vmatmul.mubr.bf16.gmra.mrb[0].mxu0 %v1297
  %v1429 = vpop.f32.mrb[0].mxu0
  %v1430 = vadd.f32 %v472, %v1429
  %v1431 = vpop.f32.mrb[0].mxu0
  %v1432 = vpop.f32.mrb[0].mxu0
  %v1433 = vpop.f32.mrb[0].mxu0
  %1434 = vdwg.mxu0
  %v1436 = vrot.slane %v1430, 6
  %v1438 = vmul.f32 %v1386, %v1436
  %v1439 = vadd.f32 %v437, %v1438
  %v1440 = vtanh.pop %v1439
  %v1441 = vsub.f32 1.0, %v1394
  %v1442 = vmul.f32 %v1441, %v1440
  %v1444 = vrot.slane %v1294, 6
  %v1446 = vmul.f32 %v1394, %v1444
  %v1447 = vadd.f32 %v1442, %v1446
  %v1448 = vpack.c.bf16 %v1447, %v1447
  %v1450 = vrot.slane %v1448, 1
  %v1452 = vsel %vm124, %v1450, 0
  %1454 = vmatprep.subr.bf16.mxu0 0
  %1455 = vmatpush1.bf16.msra.mxu0 %v490
  %1456 = vmatprep.subr.bf16.mxu0 0
  %1457 = vmatpush1.bf16.msra.mxu0 %v491
  %1458 = vmatprep.subr.bf16.mxu0 0
  %1459 = vmatpush1.bf16.msra.mxu0 %v492
  %1460 = vmatprep.subr.bf16.mxu0 0
  %1461 = vmatpush1.bf16.msra.mxu0 %v493
  %1462 = vmatprep.subr.bf16.mxu0 0
  %1463 = vmatpush1.bf16.msra.mxu0 0
  %1464 = vmatprep.subr.bf16.mxu0 0
  %1465 = vmatpush1.bf16.msra.mxu0 0
  %1466 = vmatprep.subr.bf16.mxu0 0
  %1467 = vmatpush1.bf16.msra.mxu0 0
  %1468 = vmatprep.subr.bf16.mxu0 0
  %1469 = vmatpush1.bf16.msra.mxu0 0
  %1470 = vmatprep.subr.bf16.mxu0 0
  %1471 = vmatpush1.bf16.msra.mxu0 0
  %1472 = vmatprep.subr.bf16.mxu0 0
  %1473 = vmatpush1.bf16.msra.mxu0 0
  %1474 = vmatprep.subr.bf16.mxu0 0
  %1475 = vmatpush1.bf16.msra.mxu0 0
  %1476 = vmatprep.subr.bf16.mxu0 0
  %1477 = vmatpush1.bf16.msra.mxu0 0
  %1478 = vmatprep.subr.bf16.mxu0 0
  %1479 = vmatpush1.bf16.msra.mxu0 0
  %1480 = vmatprep.subr.bf16.mxu0 0
  %1481 = vmatpush1.bf16.msra.mxu0 0
  %1482 = vmatprep.subr.bf16.mxu0 0
  %1483 = vmatpush1.bf16.msra.mxu0 0
  %1484 = vmatprep.subr.bf16.mxu0 0
  %1485 = vmatpush1.bf16.msra.mxu0 0
  %1486 = vmatprep.mubr.bf16.mxu0 0
  %1487 = vmatmul.mubr.bf16.gmra.mrb[0].mxu0 %v1452
  %v1488 = vpop.f32.mrb[0].mxu0
  %v1489 = vadd.f32 0.0, %v1488
  %v1490 = vpop.f32.mrb[0].mxu0
  %v1491 = vpop.f32.mrb[0].mxu0
  %v1492 = vpop.f32.mrb[0].mxu0
  %1493 = vdwg.mxu0
  %1494 = vmatprep.subr.bf16.mxu0 0
  %1495 = vmatpush1.bf16.msra.mxu0 %v557
  %1496 = vmatprep.subr.bf16.mxu0 0
  %1497 = vmatpush1.bf16.msra.mxu0 %v558
  %1498 = vmatprep.subr.bf16.mxu0 0
  %1499 = vmatpush1.bf16.msra.mxu0 %v559
  %1500 = vmatprep.subr.bf16.mxu0 0
  %1501 = vmatpush1.bf16.msra.mxu0 %v560
  %1502 = vmatprep.subr.bf16.mxu0 0
  %1503 = vmatpush1.bf16.msra.mxu0 0
  %1504 = vmatprep.subr.bf16.mxu0 0
  %1505 = vmatpush1.bf16.msra.mxu0 0
  %1506 = vmatprep.subr.bf16.mxu0 0
  %1507 = vmatpush1.bf16.msra.mxu0 0
  %1508 = vmatprep.subr.bf16.mxu0 0
  %1509 = vmatpush1.bf16.msra.mxu0 0
  %1510 = vmatprep.subr.bf16.mxu0 0
  %1511 = vmatpush1.bf16.msra.mxu0 0
  %1512 = vmatprep.subr.bf16.mxu0 0
  %1513 = vmatpush1.bf16.msra.mxu0 0
  %1514 = vmatprep.subr.bf16.mxu0 0
  %1515 = vmatpush1.bf16.msra.mxu0 0
  %1516 = vmatprep.subr.bf16.mxu0 0
  %1517 = vmatpush1.bf16.msra.mxu0 0
  %1518 = vmatprep.subr.bf16.mxu0 0
  %1519 = vmatpush1.bf16.msra.mxu0 0
  %1520 = vmatprep.subr.bf16.mxu0 0
  %1521 = vmatpush1.bf16.msra.mxu0 0
  %1522 = vmatprep.subr.bf16.mxu0 0
  %1523 = vmatpush1.bf16.msra.mxu0 0
  %1524 = vmatprep.subr.bf16.mxu0 0
  %1525 = vmatpush1.bf16.msra.mxu0 0
  %1526 = vmatprep.mubr.bf16.mxu0 0
  %1527 = vmatmul.mubr.bf16.gmra.mrb[0].mxu0 %v1452
  %v1528 = vpop.f32.mrb[0].mxu0
  %v1529 = vadd.f32 0.0, %v1528
  %v1530 = vpop.f32.mrb[0].mxu0
  %v1531 = vpop.f32.mrb[0].mxu0
  %v1532 = vpop.f32.mrb[0].mxu0
  %1533 = vdwg.mxu0
  %v1535 = vrot.slane %v1489, 4
  %v1537 = vadd.f32 %v270, %v1535
  %v1538 = vmul.f32 %v1537, 0.5
  %v1539 = vtanh.pop %v1538
  %v1540 = vadd.f32 %v1539, 1.0
  %v1541 = vmul.f32 %v1540, 0.5
  %v1543 = vrot.slane %v1529, 4
  %v1545 = vadd.f32 %v355, %v1543
  %v1546 = vmul.f32 %v1545, 0.5
  %v1547 = vtanh.pop %v1546
  %v1548 = vadd.f32 %v1547, 1.0
  %v1549 = vmul.f32 %v1548, 0.5
  %1550 = vmatprep.subr.bf16.mxu0 0
  %1551 = vmatpush1.bf16.msra.mxu0 %v631
  %1552 = vmatprep.subr.bf16.mxu0 0
  %1553 = vmatpush1.bf16.msra.mxu0 %v632
  %1554 = vmatprep.subr.bf16.mxu0 0
  %1555 = vmatpush1.bf16.msra.mxu0 %v633
  %1556 = vmatprep.subr.bf16.mxu0 0
  %1557 = vmatpush1.bf16.msra.mxu0 %v634
  %1558 = vmatprep.subr.bf16.mxu0 0
  %1559 = vmatpush1.bf16.msra.mxu0 0
  %1560 = vmatprep.subr.bf16.mxu0 0
  %1561 = vmatpush1.bf16.msra.mxu0 0
  %1562 = vmatprep.subr.bf16.mxu0 0
  %1563 = vmatpush1.bf16.msra.mxu0 0
  %1564 = vmatprep.subr.bf16.mxu0 0
  %1565 = vmatpush1.bf16.msra.mxu0 0
  %1566 = vmatprep.subr.bf16.mxu0 0
  %1567 = vmatpush1.bf16.msra.mxu0 0
  %1568 = vmatprep.subr.bf16.mxu0 0
  %1569 = vmatpush1.bf16.msra.mxu0 0
  %1570 = vmatprep.subr.bf16.mxu0 0
  %1571 = vmatpush1.bf16.msra.mxu0 0
  %1572 = vmatprep.subr.bf16.mxu0 0
  %1573 = vmatpush1.bf16.msra.mxu0 0
  %1574 = vmatprep.subr.bf16.mxu0 0
  %1575 = vmatpush1.bf16.msra.mxu0 0
  %1576 = vmatprep.subr.bf16.mxu0 0
  %1577 = vmatpush1.bf16.msra.mxu0 0
  %1578 = vmatprep.subr.bf16.mxu0 0
  %1579 = vmatpush1.bf16.msra.mxu0 0
  %1580 = vmatprep.subr.bf16.mxu0 0
  %1581 = vmatpush1.bf16.msra.mxu0 0
  %1582 = vmatprep.mubr.bf16.mxu0 0
  %1583 = vmatmul.mubr.bf16.gmra.mrb[0].mxu0 %v1452
  %v1584 = vpop.f32.mrb[0].mxu0
  %v1585 = vadd.f32 %v472, %v1584
  %v1586 = vpop.f32.mrb[0].mxu0
  %v1587 = vpop.f32.mrb[0].mxu0
  %v1588 = vpop.f32.mrb[0].mxu0
  %1589 = vdwg.mxu0
  %v1591 = vrot.slane %v1585, 4
  %v1593 = vmul.f32 %v1541, %v1591
  %v1594 = vadd.f32 %v437, %v1593
  %v1595 = vtanh.pop %v1594
  %v1596 = vsub.f32 1.0, %v1549
  %v1597 = vmul.f32 %v1596, %v1595
  %v1599 = vrot.slane %v1447, 6
  %v1601 = vmul.f32 %v1549, %v1599
  %v1602 = vadd.f32 %v1597, %v1601
  %v1603 = vpack.c.bf16 %v1602, %v1602
  %v1605 = vrot.slane %v1603, 2
  %v1607 = vsel %vm124, %v1605, 0
  %1609 = vmatprep.subr.bf16.mxu0 0
  %1610 = vmatpush1.bf16.msra.mxu0 %v490
  %1611 = vmatprep.subr.bf16.mxu0 0
  %1612 = vmatpush1.bf16.msra.mxu0 %v491
  %1613 = vmatprep.subr.bf16.mxu0 0
  %1614 = vmatpush1.bf16.msra.mxu0 %v492
  %1615 = vmatprep.subr.bf16.mxu0 0
  %1616 = vmatpush1.bf16.msra.mxu0 %v493
  %1617 = vmatprep.subr.bf16.mxu0 0
  %1618 = vmatpush1.bf16.msra.mxu0 0
  %1619 = vmatprep.subr.bf16.mxu0 0
  %1620 = vmatpush1.bf16.msra.mxu0 0
  %1621 = vmatprep.subr.bf16.mxu0 0
  %1622 = vmatpush1.bf16.msra.mxu0 0
  %1623 = vmatprep.subr.bf16.mxu0 0
  %1624 = vmatpush1.bf16.msra.mxu0 0
  %1625 = vmatprep.subr.bf16.mxu0 0
  %1626 = vmatpush1.bf16.msra.mxu0 0
  %1627 = vmatprep.subr.bf16.mxu0 0
  %1628 = vmatpush1.bf16.msra.mxu0 0
  %1629 = vmatprep.subr.bf16.mxu0 0
  %1630 = vmatpush1.bf16.msra.mxu0 0
  %1631 = vmatprep.subr.bf16.mxu0 0
  %1632 = vmatpush1.bf16.msra.mxu0 0
  %1633 = vmatprep.subr.bf16.mxu0 0
  %1634 = vmatpush1.bf16.msra.mxu0 0
  %1635 = vmatprep.subr.bf16.mxu0 0
  %1636 = vmatpush1.bf16.msra.mxu0 0
  %1637 = vmatprep.subr.bf16.mxu0 0
  %1638 = vmatpush1.bf16.msra.mxu0 0
  %1639 = vmatprep.subr.bf16.mxu0 0
  %1640 = vmatpush1.bf16.msra.mxu0 0
  %1641 = vmatprep.mubr.bf16.mxu0 0
  %1642 = vmatmul.mubr.bf16.gmra.mrb[0].mxu0 %v1607
  %v1643 = vpop.f32.mrb[0].mxu0
  %v1644 = vadd.f32 0.0, %v1643
  %v1645 = vpop.f32.mrb[0].mxu0
  %v1646 = vpop.f32.mrb[0].mxu0
  %v1647 = vpop.f32.mrb[0].mxu0
  %1648 = vdwg.mxu0
  %1649 = vmatprep.subr.bf16.mxu0 0
  %1650 = vmatpush1.bf16.msra.mxu0 %v557
  %1651 = vmatprep.subr.bf16.mxu0 0
  %1652 = vmatpush1.bf16.msra.mxu0 %v558
  %1653 = vmatprep.subr.bf16.mxu0 0
  %1654 = vmatpush1.bf16.msra.mxu0 %v559
  %1655 = vmatprep.subr.bf16.mxu0 0
  %1656 = vmatpush1.bf16.msra.mxu0 %v560
  %1657 = vmatprep.subr.bf16.mxu0 0
  %1658 = vmatpush1.bf16.msra.mxu0 0
  %1659 = vmatprep.subr.bf16.mxu0 0
  %1660 = vmatpush1.bf16.msra.mxu0 0
  %1661 = vmatprep.subr.bf16.mxu0 0
  %1662 = vmatpush1.bf16.msra.mxu0 0
  %1663 = vmatprep.subr.bf16.mxu0 0
  %1664 = vmatpush1.bf16.msra.mxu0 0
  %1665 = vmatprep.subr.bf16.mxu0 0
  %1666 = vmatpush1.bf16.msra.mxu0 0
  %1667 = vmatprep.subr.bf16.mxu0 0
  %1668 = vmatpush1.bf16.msra.mxu0 0
  %1669 = vmatprep.subr.bf16.mxu0 0
  %1670 = vmatpush1.bf16.msra.mxu0 0
  %1671 = vmatprep.subr.bf16.mxu0 0
  %1672 = vmatpush1.bf16.msra.mxu0 0
  %1673 = vmatprep.subr.bf16.mxu0 0
  %1674 = vmatpush1.bf16.msra.mxu0 0
  %1675 = vmatprep.subr.bf16.mxu0 0
  %1676 = vmatpush1.bf16.msra.mxu0 0
  %1677 = vmatprep.subr.bf16.mxu0 0
  %1678 = vmatpush1.bf16.msra.mxu0 0
  %1679 = vmatprep.subr.bf16.mxu0 0
  %1680 = vmatpush1.bf16.msra.mxu0 0
  %1681 = vmatprep.mubr.bf16.mxu0 0
  %1682 = vmatmul.mubr.bf16.gmra.mrb[0].mxu0 %v1607
  %v1683 = vpop.f32.mrb[0].mxu0
  %v1684 = vadd.f32 0.0, %v1683
  %v1685 = vpop.f32.mrb[0].mxu0
  %v1686 = vpop.f32.mrb[0].mxu0
  %v1687 = vpop.f32.mrb[0].mxu0
  %1688 = vdwg.mxu0
  %v1690 = vrot.slane %v1644, 2
  %v1692 = vadd.f32 %v270, %v1690
  %v1693 = vmul.f32 %v1692, 0.5
  %v1694 = vtanh.pop %v1693
  %v1695 = vadd.f32 %v1694, 1.0
  %v1696 = vmul.f32 %v1695, 0.5
  %v1698 = vrot.slane %v1684, 2
  %v1700 = vadd.f32 %v355, %v1698
  %v1701 = vmul.f32 %v1700, 0.5
  %v1702 = vtanh.pop %v1701
  %v1703 = vadd.f32 %v1702, 1.0
  %v1704 = vmul.f32 %v1703, 0.5
  %1705 = vmatprep.subr.bf16.mxu0 0
  %1706 = vmatpush1.bf16.msra.mxu0 %v631
  %1707 = vmatprep.subr.bf16.mxu0 0
  %1708 = vmatpush1.bf16.msra.mxu0 %v632
  %1709 = vmatprep.subr.bf16.mxu0 0
  %1710 = vmatpush1.bf16.msra.mxu0 %v633
  %1711 = vmatprep.subr.bf16.mxu0 0
  %1712 = vmatpush1.bf16.msra.mxu0 %v634
  %1713 = vmatprep.subr.bf16.mxu0 0
  %1714 = vmatpush1.bf16.msra.mxu0 0
  %1715 = vmatprep.subr.bf16.mxu0 0
  %1716 = vmatpush1.bf16.msra.mxu0 0
  %1717 = vmatprep.subr.bf16.mxu0 0
  %1718 = vmatpush1.bf16.msra.mxu0 0
  %1719 = vmatprep.subr.bf16.mxu0 0
  %1720 = vmatpush1.bf16.msra.mxu0 0
  %1721 = vmatprep.subr.bf16.mxu0 0
  %1722 = vmatpush1.bf16.msra.mxu0 0
  %1723 = vmatprep.subr.bf16.mxu0 0
  %1724 = vmatpush1.bf16.msra.mxu0 0
  %1725 = vmatprep.subr.bf16.mxu0 0
  %1726 = vmatpush1.bf16.msra.mxu0 0
  %1727 = vmatprep.subr.bf16.mxu0 0
  %1728 = vmatpush1.bf16.msra.mxu0 0
  %1729 = vmatprep.subr.bf16.mxu0 0
  %1730 = vmatpush1.bf16.msra.mxu0 0
  %1731 = vmatprep.subr.bf16.mxu0 0
  %1732 = vmatpush1.bf16.msra.mxu0 0
  %1733 = vmatprep.subr.bf16.mxu0 0
  %1734 = vmatpush1.bf16.msra.mxu0 0
  %1735 = vmatprep.subr.bf16.mxu0 0
  %1736 = vmatpush1.bf16.msra.mxu0 0
  %1737 = vmatprep.mubr.bf16.mxu0 0
  %1738 = vmatmul.mubr.bf16.gmra.mrb[0].mxu0 %v1607
  %v1739 = vpop.f32.mrb[0].mxu0
  %v1740 = vadd.f32 %v472, %v1739
  %v1741 = vpop.f32.mrb[0].mxu0
  %v1742 = vpop.f32.mrb[0].mxu0
  %v1743 = vpop.f32.mrb[0].mxu0
  %1744 = vdwg.mxu0
  %v1746 = vrot.slane %v1740, 2
  %v1748 = vmul.f32 %v1696, %v1746
  %v1749 = vadd.f32 %v437, %v1748
  %v1750 = vtanh.pop %v1749
  %v1751 = vsub.f32 1.0, %v1704
  %v1752 = vmul.f32 %v1751, %v1750
  %v1754 = vrot.slane %v1602, 6
  %v1756 = vmul.f32 %v1704, %v1754
  %v1757 = vadd.f32 %v1752, %v1756
  %v1758 = vld [vmem:[%s1] sm:$0x3]
  %1759 = vset.pattern.permute.xlu0 0
  %1760 = vperm.xlu0 %1759, %v1758
  %v1761 = vpop.permute.xlu0 %1760
  %vm1762 = vcmp.eq.s32.totalorder %v61, %v1761
  %v1763 = vsel %vm1762, 1, 0
  %v1764 = vcvt.s32.f32 %v1763
  %v1765 = vpack.c.bf16 %v1764, %v1764
  %v1766 = vld [vmem:[%s3] sm:$0xf]
  %v1767 = vld [vmem:[%s3 + $0x4] sm:$0xf]
  %v1768 = vld [vmem:[%s3 + $0x8] sm:$0xf]
  %v1769 = vld [vmem:[%s3 + $0xc] sm:$0xf]
  %v1770 = vld [vmem:[%s3 + $0x10] sm:$0xf]
  %v1771 = vld [vmem:[%s3 + $0x14] sm:$0xf]
  %v1772 = vld [vmem:[%s3 + $0x18] sm:$0xf]
  %v1773 = vld [vmem:[%s3 + $0x1c] sm:$0xf]
  %v1774 = vld [vmem:[%s3 + $0x20] sm:$0xf]
  %v1775 = vld [vmem:[%s3 + $0x24] sm:$0xf]
  %v1776 = vld [vmem:[%s3 + $0x28] sm:$0xf]
  %v1777 = vld [vmem:[%s3 + $0x2c] sm:$0xf]
  %v1778 = vld [vmem:[%s3 + $0x30] sm:$0xf]
  %v1779 = vld [vmem:[%s3 + $0x34] sm:$0xf]
  %v1780 = vld [vmem:[%s3 + $0x38] sm:$0xf]
  %v1781 = vld [vmem:[%s3 + $0x3c] sm:$0xf]
  %v1798 = vunpack.c.l.b16 %v1766
  %v1799 = vunpack.c.l.b16 %v1767
  %v1800 = vunpack.c.l.b16 %v1768
  %v1801 = vunpack.c.l.b16 %v1769
  %v1802 = vunpack.c.l.b16 %v1770
  %v1803 = vunpack.c.l.b16 %v1771
  %v1804 = vunpack.c.l.b16 %v1772
  %v1805 = vunpack.c.l.b16 %v1773
  %v1806 = vunpack.c.l.b16 %v1774
  %v1807 = vunpack.c.l.b16 %v1775
  %v1808 = vunpack.c.l.b16 %v1776
  %v1809 = vunpack.c.l.b16 %v1777
  %v1810 = vunpack.c.l.b16 %v1778
  %v1811 = vunpack.c.l.b16 %v1779
  %v1812 = vunpack.c.l.b16 %v1780
  %v1813 = vunpack.c.l.b16 %v1781
  %v1814 = vpack.c.b16 %v1799, %v1798
  %v1815 = vpack.c.b16 %v1801, %v1800
  %v1816 = vpack.c.b16 %v1803, %v1802
  %v1817 = vpack.c.b16 %v1805, %v1804
  %v1818 = vpack.c.b16 %v1807, %v1806
  %v1819 = vpack.c.b16 %v1809, %v1808
  %v1820 = vpack.c.b16 %v1811, %v1810
  %v1821 = vpack.c.b16 %v1813, %v1812
  %1830 = vmatprep.subr.bf16.mxu0 0
  %1831 = vmatpush1.bf16.msra.mxu0 %v1814
  %1832 = vmatprep.subr.bf16.mxu0 0
  %1833 = vmatpush1.bf16.msra.mxu0 %v1815
  %1834 = vmatprep.subr.bf16.mxu0 0
  %1835 = vmatpush1.bf16.msra.mxu0 %v1816
  %1836 = vmatprep.subr.bf16.mxu0 0
  %1837 = vmatpush1.bf16.msra.mxu0 %v1817
  %1838 = vmatprep.subr.bf16.mxu0 0
  %1839 = vmatpush1.bf16.msra.mxu0 %v1818
  %1840 = vmatprep.subr.bf16.mxu0 0
  %1841 = vmatpush1.bf16.msra.mxu0 %v1819
  %1842 = vmatprep.subr.bf16.mxu0 0
  %1843 = vmatpush1.bf16.msra.mxu0 %v1820
  %1844 = vmatprep.subr.bf16.mxu0 0
  %1845 = vmatpush1.bf16.msra.mxu0 %v1821
  %1846 = vmatprep.subr.bf16.mxu0 0
  %1847 = vmatpush1.bf16.msra.mxu0 0
  %1848 = vmatprep.subr.bf16.mxu0 0
  %1849 = vmatpush1.bf16.msra.mxu0 0
  %1850 = vmatprep.subr.bf16.mxu0 0
  %1851 = vmatpush1.bf16.msra.mxu0 0
  %1852 = vmatprep.subr.bf16.mxu0 0
  %1853 = vmatpush1.bf16.msra.mxu0 0
  %1854 = vmatprep.subr.bf16.mxu0 0
  %1855 = vmatpush1.bf16.msra.mxu0 0
  %1856 = vmatprep.subr.bf16.mxu0 0
  %1857 = vmatpush1.bf16.msra.mxu0 0
  %1858 = vmatprep.subr.bf16.mxu0 0
  %1859 = vmatpush1.bf16.msra.mxu0 0
  %1860 = vmatprep.subr.bf16.mxu0 0
  %1861 = vmatpush1.bf16.msra.mxu0 0
  %1862 = vmatprep.mubr.bf16.mxu0 0
  %1863 = vmatmul.mubr.bf16.gmra.mrb[0].mxu0 %v1765
  %v1864 = vpop.f32.mrb[0].mxu0
  %v1865 = vadd.f32 0.0, %v1864
  %v1866 = vpop.f32.mrb[0].mxu0
  %v1867 = vpop.f32.mrb[0].mxu0
  %v1868 = vpop.f32.mrb[0].mxu0
  %1869 = vdwg.mxu0
  %v1870 = vpack.c.bf16 %v1865, %v1865
  %v1871 = vpack.c.bf16 %v1757, %v1757
  %v1872 = vld [vmem:[%s8] sm:$0xf]
  %v1873 = vld [vmem:[%s8 + $0x4] sm:$0xf]
  %v1874 = vld [vmem:[%s8 + $0x8] sm:$0xf]
  %v1875 = vld [vmem:[%s8 + $0xc] sm:$0xf]
  %v1876 = vld [vmem:[%s10] sm:$0x1]
  %v1877 = vld [vmem:[%s11] sm:$0x1]
  %v1878 = vadd.f32 %v1876, %v1877
  %v1880 = vlaneseq
  %v1881 = vshrl.u32 %v1880, 7
  %v1882 = vsub.s32 0, %v1881
  %v1883 = vrot.slane %v1878, %v1882
  %v1889 = vunpack.c.l.b16 %v1872
  %v1890 = vunpack.c.l.b16 %v1873
  %v1891 = vunpack.c.l.b16 %v1874
  %v1892 = vunpack.c.l.b16 %v1875
  %v1893 = vpack.c.b16 %v1890, %v1889
  %v1894 = vpack.c.b16 %v1892, %v1891
  %v1898 = vsel %vm185, %v1870, 0
  %1900 = vmatprep.subr.bf16.mxu0 0
  %1901 = vmatpush1.bf16.msra.mxu0 %v1893
  %1902 = vmatprep.subr.bf16.mxu0 0
  %1903 = vmatpush1.bf16.msra.mxu0 %v1894
  %1904 = vmatprep.subr.bf16.mxu0 0
  %1905 = vmatpush1.bf16.msra.mxu0 0
  %1906 = vmatprep.subr.bf16.mxu0 0
  %1907 = vmatpush1.bf16.msra.mxu0 0
  %1908 = vmatprep.subr.bf16.mxu0 0
  %1909 = vmatpush1.bf16.msra.mxu0 0
  %1910 = vmatprep.subr.bf16.mxu0 0
  %1911 = vmatpush1.bf16.msra.mxu0 0
  %1912 = vmatprep.subr.bf16.mxu0 0
  %1913 = vmatpush1.bf16.msra.mxu0 0
  %1914 = vmatprep.subr.bf16.mxu0 0
  %1915 = vmatpush1.bf16.msra.mxu0 0
  %1916 = vmatprep.subr.bf16.mxu0 0
  %1917 = vmatpush1.bf16.msra.mxu0 0
  %1918 = vmatprep.subr.bf16.mxu0 0
  %1919 = vmatpush1.bf16.msra.mxu0 0
  %1920 = vmatprep.subr.bf16.mxu0 0
  %1921 = vmatpush1.bf16.msra.mxu0 0
  %1922 = vmatprep.subr.bf16.mxu0 0
  %1923 = vmatpush1.bf16.msra.mxu0 0
  %1924 = vmatprep.subr.bf16.mxu0 0
  %1925 = vmatpush1.bf16.msra.mxu0 0
  %1926 = vmatprep.subr.bf16.mxu0 0
  %1927 = vmatpush1.bf16.msra.mxu0 0
  %1928 = vmatprep.subr.bf16.mxu0 0
  %1929 = vmatpush1.bf16.msra.mxu0 0
  %1930 = vmatprep.subr.bf16.mxu0 0
  %1931 = vmatpush1.bf16.msra.mxu0 0
  %1932 = vmatprep.mubr.bf16.mxu0 0
  %1933 = vmatmul.mubr.bf16.gmra.mrb[0].mxu0 %v1898
  %v1934 = vpop.f32.mrb[0].mxu0
  %v1935 = vadd.f32 %v1883, %v1934
  %v1936 = vpop.f32.mrb[0].mxu0
  %v1937 = vpop.f32.mrb[0].mxu0
  %v1938 = vpop.f32.mrb[0].mxu0
  %1939 = vdwg.mxu0
  %s1940 = scalar_lea.vmem %s8, 16
  %v1941 = vld [vmem:[%s1940] sm:$0xf]
  %v1942 = vld [vmem:[%s1940 + $0x4] sm:$0xf]
  %v1943 = vld [vmem:[%s1940 + $0x8] sm:$0xf]
  %v1944 = vld [vmem:[%s1940 + $0xc] sm:$0xf]
  %s1945 = scalar_lea.vmem %s10, 1
  %v1946 = vld [vmem:[%s1945] sm:$0x1]
  %s1947 = scalar_lea.vmem %s11, 1
  %v1948 = vld [vmem:[%s1947] sm:$0x1]
  %v1949 = vadd.f32 %v1946, %v1948
  %v1951 = vlaneseq
  %v1952 = vshrl.u32 %v1951, 7
  %v1953 = vsub.s32 0, %v1952
  %v1954 = vrot.slane %v1949, %v1953
  %v1960 = vunpack.c.l.b16 %v1941
  %v1961 = vunpack.c.l.b16 %v1942
  %v1962 = vunpack.c.l.b16 %v1943
  %v1963 = vunpack.c.l.b16 %v1944
  %v1964 = vpack.c.b16 %v1961, %v1960
  %v1965 = vpack.c.b16 %v1963, %v1962
  %1968 = vmatprep.subr.bf16.mxu0 0
  %1969 = vmatpush1.bf16.msra.mxu0 %v1964
  %1970 = vmatprep.subr.bf16.mxu0 0
  %1971 = vmatpush1.bf16.msra.mxu0 %v1965
  %1972 = vmatprep.subr.bf16.mxu0 0
  %1973 = vmatpush1.bf16.msra.mxu0 0
  %1974 = vmatprep.subr.bf16.mxu0 0
  %1975 = vmatpush1.bf16.msra.mxu0 0
  %1976 = vmatprep.subr.bf16.mxu0 0
  %1977 = vmatpush1.bf16.msra.mxu0 0
  %1978 = vmatprep.subr.bf16.mxu0 0
  %1979 = vmatpush1.bf16.msra.mxu0 0
  %1980 = vmatprep.subr.bf16.mxu0 0
  %1981 = vmatpush1.bf16.msra.mxu0 0
  %1982 = vmatprep.subr.bf16.mxu0 0
  %1983 = vmatpush1.bf16.msra.mxu0 0
  %1984 = vmatprep.subr.bf16.mxu0 0
  %1985 = vmatpush1.bf16.msra.mxu0 0
  %1986 = vmatprep.subr.bf16.mxu0 0
  %1987 = vmatpush1.bf16.msra.mxu0 0
  %1988 = vmatprep.subr.bf16.mxu0 0
  %1989 = vmatpush1.bf16.msra.mxu0 0
  %1990 = vmatprep.subr.bf16.mxu0 0
  %1991 = vmatpush1.bf16.msra.mxu0 0
  %1992 = vmatprep.subr.bf16.mxu0 0
  %1993 = vmatpush1.bf16.msra.mxu0 0
  %1994 = vmatprep.subr.bf16.mxu0 0
  %1995 = vmatpush1.bf16.msra.mxu0 0
  %1996 = vmatprep.subr.bf16.mxu0 0
  %1997 = vmatpush1.bf16.msra.mxu0 0
  %1998 = vmatprep.subr.bf16.mxu0 0
  %1999 = vmatpush1.bf16.msra.mxu0 0
  %2000 = vmatprep.mubr.bf16.mxu0 0
  %2001 = vmatmul.mubr.bf16.gmra.mrb[0].mxu0 %v1898
  %v2002 = vpop.f32.mrb[0].mxu0
  %v2003 = vadd.f32 %v1954, %v2002
  %v2004 = vpop.f32.mrb[0].mxu0
  %v2005 = vpop.f32.mrb[0].mxu0
  %v2006 = vpop.f32.mrb[0].mxu0
  %2007 = vdwg.mxu0
  %s2008 = scalar_lea.vmem %s8, 32
  %v2009 = vld [vmem:[%s2008] sm:$0xf]
  %v2010 = vld [vmem:[%s2008 + $0x4] sm:$0xf]
  %v2011 = vld [vmem:[%s2008 + $0x8] sm:$0xf]
  %v2012 = vld [vmem:[%s2008 + $0xc] sm:$0xf]
  %s2013 = scalar_lea.vmem %s10, 2
  %v2014 = vld [vmem:[%s2013] sm:$0x1]
  %v2016 = vlaneseq
  %v2017 = vshrl.u32 %v2016, 7
  %v2018 = vsub.s32 0, %v2017
  %v2019 = vrot.slane %v2014, %v2018
  %v2025 = vunpack.c.l.b16 %v2009
  %v2026 = vunpack.c.l.b16 %v2010
  %v2027 = vunpack.c.l.b16 %v2011
  %v2028 = vunpack.c.l.b16 %v2012
  %v2029 = vpack.c.b16 %v2026, %v2025
  %v2030 = vpack.c.b16 %v2028, %v2027
  %2033 = vmatprep.subr.bf16.mxu0 0
  %2034 = vmatpush1.bf16.msra.mxu0 %v2029
  %2035 = vmatprep.subr.bf16.mxu0 0
  %2036 = vmatpush1.bf16.msra.mxu0 %v2030
  %2037 = vmatprep.subr.bf16.mxu0 0
  %2038 = vmatpush1.bf16.msra.mxu0 0
  %2039 = vmatprep.subr.bf16.mxu0 0
  %2040 = vmatpush1.bf16.msra.mxu0 0
  %2041 = vmatprep.subr.bf16.mxu0 0
  %2042 = vmatpush1.bf16.msra.mxu0 0
  %2043 = vmatprep.subr.bf16.mxu0 0
  %2044 = vmatpush1.bf16.msra.mxu0 0
  %2045 = vmatprep.subr.bf16.mxu0 0
  %2046 = vmatpush1.bf16.msra.mxu0 0
  %2047 = vmatprep.subr.bf16.mxu0 0
  %2048 = vmatpush1.bf16.msra.mxu0 0
  %2049 = vmatprep.subr.bf16.mxu0 0
  %2050 = vmatpush1.bf16.msra.mxu0 0
  %2051 = vmatprep.subr.bf16.mxu0 0
  %2052 = vmatpush1.bf16.msra.mxu0 0
  %2053 = vmatprep.subr.bf16.mxu0 0
  %2054 = vmatpush1.bf16.msra.mxu0 0
  %2055 = vmatprep.subr.bf16.mxu0 0
  %2056 = vmatpush1.bf16.msra.mxu0 0
  %2057 = vmatprep.subr.bf16.mxu0 0
  %2058 = vmatpush1.bf16.msra.mxu0 0
  %2059 = vmatprep.subr.bf16.mxu0 0
  %2060 = vmatpush1.bf16.msra.mxu0 0
  %2061 = vmatprep.subr.bf16.mxu0 0
  %2062 = vmatpush1.bf16.msra.mxu0 0
  %2063 = vmatprep.subr.bf16.mxu0 0
  %2064 = vmatpush1.bf16.msra.mxu0 0
  %2065 = vmatprep.mubr.bf16.mxu0 0
  %2066 = vmatmul.mubr.bf16.gmra.mrb[0].mxu0 %v1898
  %v2067 = vpop.f32.mrb[0].mxu0
  %v2068 = vadd.f32 %v2019, %v2067
  %v2069 = vpop.f32.mrb[0].mxu0
  %v2070 = vpop.f32.mrb[0].mxu0
  %v2071 = vpop.f32.mrb[0].mxu0
  %2072 = vdwg.mxu0
  %v2073 = vld [vmem:[%s9] sm:$0xf]
  %v2074 = vld [vmem:[%s9 + $0x4] sm:$0xf]
  %v2075 = vld [vmem:[%s9 + $0x8] sm:$0xf]
  %v2076 = vld [vmem:[%s9 + $0xc] sm:$0xf]
  %v2077 = vld [vmem:[%s9 + $0x10] sm:$0xf]
  %v2078 = vld [vmem:[%s9 + $0x14] sm:$0xf]
  %v2079 = vld [vmem:[%s9 + $0x18] sm:$0xf]
  %v2080 = vld [vmem:[%s9 + $0x1c] sm:$0xf]
  %v2082 = vrot.slane %v1871, 3
  %v2091 = vunpack.c.l.b16 %v2073
  %v2092 = vunpack.c.l.b16 %v2074
  %v2093 = vunpack.c.l.b16 %v2075
  %v2094 = vunpack.c.l.b16 %v2076
  %v2095 = vunpack.c.l.b16 %v2077
  %v2096 = vunpack.c.l.b16 %v2078
  %v2097 = vunpack.c.l.b16 %v2079
  %v2098 = vunpack.c.l.b16 %v2080
  %v2099 = vpack.c.b16 %v2092, %v2091
  %v2100 = vpack.c.b16 %v2094, %v2093
  %v2101 = vpack.c.b16 %v2096, %v2095
  %v2102 = vpack.c.b16 %v2098, %v2097
  %v2108 = vsel %vm124, %v2082, 0
  %2110 = vmatprep.subr.bf16.mxu0 0
  %2111 = vmatpush1.bf16.msra.mxu0 %v2099
  %2112 = vmatprep.subr.bf16.mxu0 0
  %2113 = vmatpush1.bf16.msra.mxu0 %v2100
  %2114 = vmatprep.subr.bf16.mxu0 0
  %2115 = vmatpush1.bf16.msra.mxu0 %v2101
  %2116 = vmatprep.subr.bf16.mxu0 0
  %2117 = vmatpush1.bf16.msra.mxu0 %v2102
  %2118 = vmatprep.subr.bf16.mxu0 0
  %2119 = vmatpush1.bf16.msra.mxu0 0
  %2120 = vmatprep.subr.bf16.mxu0 0
  %2121 = vmatpush1.bf16.msra.mxu0 0
  %2122 = vmatprep.subr.bf16.mxu0 0
  %2123 = vmatpush1.bf16.msra.mxu0 0
  %2124 = vmatprep.subr.bf16.mxu0 0
  %2125 = vmatpush1.bf16.msra.mxu0 0
  %2126 = vmatprep.subr.bf16.mxu0 0
  %2127 = vmatpush1.bf16.msra.mxu0 0
  %2128 = vmatprep.subr.bf16.mxu0 0
  %2129 = vmatpush1.bf16.msra.mxu0 0
  %2130 = vmatprep.subr.bf16.mxu0 0
  %2131 = vmatpush1.bf16.msra.mxu0 0
  %2132 = vmatprep.subr.bf16.mxu0 0
  %2133 = vmatpush1.bf16.msra.mxu0 0
  %2134 = vmatprep.subr.bf16.mxu0 0
  %2135 = vmatpush1.bf16.msra.mxu0 0
  %2136 = vmatprep.subr.bf16.mxu0 0
  %2137 = vmatpush1.bf16.msra.mxu0 0
  %2138 = vmatprep.subr.bf16.mxu0 0
  %2139 = vmatpush1.bf16.msra.mxu0 0
  %2140 = vmatprep.subr.bf16.mxu0 0
  %2141 = vmatpush1.bf16.msra.mxu0 0
  %2142 = vmatprep.mubr.bf16.mxu0 0
  %2143 = vmatmul.mubr.bf16.gmra.mrb[0].mxu0 %v2108
  %v2144 = vpop.f32.mrb[0].mxu0
  %v2145 = vadd.f32 0.0, %v2144
  %v2146 = vpop.f32.mrb[0].mxu0
  %v2147 = vpop.f32.mrb[0].mxu0
  %v2148 = vpop.f32.mrb[0].mxu0
  %2149 = vdwg.mxu0
  %s2150 = scalar_lea.vmem %s9, 32
  %v2151 = vld [vmem:[%s2150] sm:$0xf]
  %v2152 = vld [vmem:[%s2150 + $0x4] sm:$0xf]
  %v2153 = vld [vmem:[%s2150 + $0x8] sm:$0xf]
  %v2154 = vld [vmem:[%s2150 + $0xc] sm:$0xf]
  %v2155 = vld [vmem:[%s2150 + $0x10] sm:$0xf]
  %v2156 = vld [vmem:[%s2150 + $0x14] sm:$0xf]
  %v2157 = vld [vmem:[%s2150 + $0x18] sm:$0xf]
  %v2158 = vld [vmem:[%s2150 + $0x1c] sm:$0xf]
  %v2167 = vunpack.c.l.b16 %v2151
  %v2168 = vunpack.c.l.b16 %v2152
  %v2169 = vunpack.c.l.b16 %v2153
  %v2170 = vunpack.c.l.b16 %v2154
  %v2171 = vunpack.c.l.b16 %v2155
  %v2172 = vunpack.c.l.b16 %v2156
  %v2173 = vunpack.c.l.b16 %v2157
  %v2174 = vunpack.c.l.b16 %v2158
  %v2175 = vpack.c.b16 %v2168, %v2167
  %v2176 = vpack.c.b16 %v2170, %v2169
  %v2177 = vpack.c.b16 %v2172, %v2171
  %v2178 = vpack.c.b16 %v2174, %v2173
  %2183 = vmatprep.subr.bf16.mxu0 0
  %2184 = vmatpush1.bf16.msra.mxu0 %v2175
  %2185 = vmatprep.subr.bf16.mxu0 0
  %2186 = vmatpush1.bf16.msra.mxu0 %v2176
  %2187 = vmatprep.subr.bf16.mxu0 0
  %2188 = vmatpush1.bf16.msra.mxu0 %v2177
  %2189 = vmatprep.subr.bf16.mxu0 0
  %2190 = vmatpush1.bf16.msra.mxu0 %v2178
  %2191 = vmatprep.subr.bf16.mxu0 0
  %2192 = vmatpush1.bf16.msra.mxu0 0
  %2193 = vmatprep.subr.bf16.mxu0 0
  %2194 = vmatpush1.bf16.msra.mxu0 0
  %2195 = vmatprep.subr.bf16.mxu0 0
  %2196 = vmatpush1.bf16.msra.mxu0 0
  %2197 = vmatprep.subr.bf16.mxu0 0
  %2198 = vmatpush1.bf16.msra.mxu0 0
  %2199 = vmatprep.subr.bf16.mxu0 0
  %2200 = vmatpush1.bf16.msra.mxu0 0
  %2201 = vmatprep.subr.bf16.mxu0 0
  %2202 = vmatpush1.bf16.msra.mxu0 0
  %2203 = vmatprep.subr.bf16.mxu0 0
  %2204 = vmatpush1.bf16.msra.mxu0 0
  %2205 = vmatprep.subr.bf16.mxu0 0
  %2206 = vmatpush1.bf16.msra.mxu0 0
  %2207 = vmatprep.subr.bf16.mxu0 0
  %2208 = vmatpush1.bf16.msra.mxu0 0
  %2209 = vmatprep.subr.bf16.mxu0 0
  %2210 = vmatpush1.bf16.msra.mxu0 0
  %2211 = vmatprep.subr.bf16.mxu0 0
  %2212 = vmatpush1.bf16.msra.mxu0 0
  %2213 = vmatprep.subr.bf16.mxu0 0
  %2214 = vmatpush1.bf16.msra.mxu0 0
  %2215 = vmatprep.mubr.bf16.mxu0 0
  %2216 = vmatmul.mubr.bf16.gmra.mrb[0].mxu0 %v2108
  %v2217 = vpop.f32.mrb[0].mxu0
  %v2218 = vadd.f32 0.0, %v2217
  %v2219 = vpop.f32.mrb[0].mxu0
  %v2220 = vpop.f32.mrb[0].mxu0
  %v2221 = vpop.f32.mrb[0].mxu0
  %2222 = vdwg.mxu0
  %s2223 = scalar_lea.vmem %s9, 64
  %v2224 = vld [vmem:[%s2223] sm:$0xf]
  %v2225 = vld [vmem:[%s2223 + $0x4] sm:$0xf]
  %v2226 = vld [vmem:[%s2223 + $0x8] sm:$0xf]
  %v2227 = vld [vmem:[%s2223 + $0xc] sm:$0xf]
  %v2228 = vld [vmem:[%s2223 + $0x10] sm:$0xf]
  %v2229 = vld [vmem:[%s2223 + $0x14] sm:$0xf]
  %v2230 = vld [vmem:[%s2223 + $0x18] sm:$0xf]
  %v2231 = vld [vmem:[%s2223 + $0x1c] sm:$0xf]
  %s2232 = scalar_lea.vmem %s11, 2
  %v2233 = vld [vmem:[%s2232] sm:$0x1]
  %v2235 = vlaneseq
  %v2236 = vshrl.u32 %v2235, 7
  %v2237 = vsub.s32 0, %v2236
  %v2238 = vrot.slane %v2233, %v2237
  %v2248 = vunpack.c.l.b16 %v2224
  %v2249 = vunpack.c.l.b16 %v2225
  %v2250 = vunpack.c.l.b16 %v2226
  %v2251 = vunpack.c.l.b16 %v2227
  %v2252 = vunpack.c.l.b16 %v2228
  %v2253 = vunpack.c.l.b16 %v2229
  %v2254 = vunpack.c.l.b16 %v2230
  %v2255 = vunpack.c.l.b16 %v2231
  %v2256 = vpack.c.b16 %v2249, %v2248
  %v2257 = vpack.c.b16 %v2251, %v2250
  %v2258 = vpack.c.b16 %v2253, %v2252
  %v2259 = vpack.c.b16 %v2255, %v2254
  %2264 = vmatprep.subr.bf16.mxu0 0
  %2265 = vmatpush1.bf16.msra.mxu0 %v2256
  %2266 = vmatprep.subr.bf16.mxu0 0
  %2267 = vmatpush1.bf16.msra.mxu0 %v2257
  %2268 = vmatprep.subr.bf16.mxu0 0
  %2269 = vmatpush1.bf16.msra.mxu0 %v2258
  %2270 = vmatprep.subr.bf16.mxu0 0
  %2271 = vmatpush1.bf16.msra.mxu0 %v2259
  %2272 = vmatprep.subr.bf16.mxu0 0
  %2273 = vmatpush1.bf16.msra.mxu0 0
  %2274 = vmatprep.subr.bf16.mxu0 0
  %2275 = vmatpush1.bf16.msra.mxu0 0
  %2276 = vmatprep.subr.bf16.mxu0 0
  %2277 = vmatpush1.bf16.msra.mxu0 0
  %2278 = vmatprep.subr.bf16.mxu0 0
  %2279 = vmatpush1.bf16.msra.mxu0 0
  %2280 = vmatprep.subr.bf16.mxu0 0
  %2281 = vmatpush1.bf16.msra.mxu0 0
  %2282 = vmatprep.subr.bf16.mxu0 0
  %2283 = vmatpush1.bf16.msra.mxu0 0
  %2284 = vmatprep.subr.bf16.mxu0 0
  %2285 = vmatpush1.bf16.msra.mxu0 0
  %2286 = vmatprep.subr.bf16.mxu0 0
  %2287 = vmatpush1.bf16.msra.mxu0 0
  %2288 = vmatprep.subr.bf16.mxu0 0
  %2289 = vmatpush1.bf16.msra.mxu0 0
  %2290 = vmatprep.subr.bf16.mxu0 0
  %2291 = vmatpush1.bf16.msra.mxu0 0
  %2292 = vmatprep.subr.bf16.mxu0 0
  %2293 = vmatpush1.bf16.msra.mxu0 0
  %2294 = vmatprep.subr.bf16.mxu0 0
  %2295 = vmatpush1.bf16.msra.mxu0 0
  %2296 = vmatprep.mubr.bf16.mxu0 0
  %2297 = vmatmul.mubr.bf16.gmra.mrb[0].mxu0 %v2108
  %v2298 = vpop.f32.mrb[0].mxu0
  %v2299 = vadd.f32 %v2238, %v2298
  %v2300 = vpop.f32.mrb[0].mxu0
  %v2301 = vpop.f32.mrb[0].mxu0
  %v2302 = vpop.f32.mrb[0].mxu0
  %2303 = vdwg.mxu0
  %v2304 = vadd.f32 %v1935, %v2145
  %v2305 = vmul.f32 %v2304, 0.5
  %v2306 = vtanh.pop %v2305
  %v2307 = vadd.f32 %v2306, 1.0
  %v2308 = vmul.f32 %v2307, 0.5
  %v2309 = vadd.f32 %v2003, %v2218
  %v2310 = vmul.f32 %v2309, 0.5
  %v2311 = vtanh.pop %v2310
  %v2312 = vadd.f32 %v2311, 1.0
  %v2313 = vmul.f32 %v2312, 0.5
  %v2314 = vmul.f32 %v2308, %v2299
  %v2315 = vadd.f32 %v2068, %v2314
  %v2316 = vtanh.pop %v2315
  %v2317 = vsub.f32 1.0, %v2313
  %v2318 = vmul.f32 %v2317, %v2316
  %v2320 = vrot.slane %v1757, 6
  %v2322 = vmul.f32 %v2313, %v2320
  %v2323 = vadd.f32 %v2318, %v2322
  %v2324 = vpack.c.bf16 %v2323, %v2323
  %v2325 = vld [vmem:[%s12] sm:$0xf]
  %v2326 = vld [vmem:[%s12 + $0x4] sm:$0xf]
  %v2327 = vld [vmem:[%s12 + $0x8] sm:$0xf]
  %v2328 = vld [vmem:[%s12 + $0xc] sm:$0xf]
  %v2329 = vld [vmem:[%s12 + $0x10] sm:$0xf]
  %v2330 = vld [vmem:[%s12 + $0x14] sm:$0xf]
  %v2331 = vld [vmem:[%s12 + $0x18] sm:$0xf]
  %v2332 = vld [vmem:[%s12 + $0x1c] sm:$0xf]
  %v2333 = vld [vmem:[%s13] sm:$0x1]
  %v2335 = vlaneseq
  %v2336 = vshrl.u32 %v2335, 7
  %v2337 = vsub.s32 0, %v2336
  %v2338 = vrot.slane %v2333, %v2337
  %v2348 = vunpack.c.l.b16 %v2325
  %v2349 = vunpack.c.l.b16 %v2326
  %v2350 = vunpack.c.l.b16 %v2327
  %v2351 = vunpack.c.l.b16 %v2328
  %v2352 = vunpack.c.l.b16 %v2329
  %v2353 = vunpack.c.l.b16 %v2330
  %v2354 = vunpack.c.l.b16 %v2331
  %v2355 = vunpack.c.l.b16 %v2332
  %v2356 = vpack.c.b16 %v2349, %v2348
  %v2357 = vpack.c.b16 %v2351, %v2350
  %v2358 = vpack.c.b16 %v2353, %v2352
  %v2359 = vpack.c.b16 %v2355, %v2354
  %v2365 = vsel %vm124, %v2324, 0
  %2367 = vmatprep.subr.bf16.mxu0 0
  %2368 = vmatpush1.bf16.msra.mxu0 %v2356
  %2369 = vmatprep.subr.bf16.mxu0 0
  %2370 = vmatpush1.bf16.msra.mxu0 %v2357
  %2371 = vmatprep.subr.bf16.mxu0 0
  %2372 = vmatpush1.bf16.msra.mxu0 %v2358
  %2373 = vmatprep.subr.bf16.mxu0 0
  %2374 = vmatpush1.bf16.msra.mxu0 %v2359
  %2375 = vmatprep.subr.bf16.mxu0 0
  %2376 = vmatpush1.bf16.msra.mxu0 0
  %2377 = vmatprep.subr.bf16.mxu0 0
  %2378 = vmatpush1.bf16.msra.mxu0 0
  %2379 = vmatprep.subr.bf16.mxu0 0
  %2380 = vmatpush1.bf16.msra.mxu0 0
  %2381 = vmatprep.subr.bf16.mxu0 0
  %2382 = vmatpush1.bf16.msra.mxu0 0
  %2383 = vmatprep.subr.bf16.mxu0 0
  %2384 = vmatpush1.bf16.msra.mxu0 0
  %2385 = vmatprep.subr.bf16.mxu0 0
  %2386 = vmatpush1.bf16.msra.mxu0 0
  %2387 = vmatprep.subr.bf16.mxu0 0
  %2388 = vmatpush1.bf16.msra.mxu0 0
  %2389 = vmatprep.subr.bf16.mxu0 0
  %2390 = vmatpush1.bf16.msra.mxu0 0
  %2391 = vmatprep.subr.bf16.mxu0 0
  %2392 = vmatpush1.bf16.msra.mxu0 0
  %2393 = vmatprep.subr.bf16.mxu0 0
  %2394 = vmatpush1.bf16.msra.mxu0 0
  %2395 = vmatprep.subr.bf16.mxu0 0
  %2396 = vmatpush1.bf16.msra.mxu0 0
  %2397 = vmatprep.subr.bf16.mxu0 0
  %2398 = vmatpush1.bf16.msra.mxu0 0
  %2399 = vmatprep.mubr.bf16.mxu0 0
  %2400 = vmatmul.mubr.bf16.gmra.mrb[0].mxu0 %v2365
  %v2401 = vpop.f32.mrb[0].mxu0
  %v2402 = vadd.f32 %v2338, %v2401
  %v2403 = vpop.f32.mrb[0].mxu0
  %v2404 = vpop.f32.mrb[0].mxu0
  %v2405 = vpop.f32.mrb[0].mxu0
  %2406 = vdwg.mxu0
  %v2407 = vpack.c.bf16 %v2402, %v2402
  %v2408 = vld [vmem:[%s14] sm:$0xff]
  %v2409 = vld [vmem:[%s14 + $0x8] sm:$0xff]
  %v2410 = vld [vmem:[%s14 + $0x10] sm:$0xff]
  %v2411 = vld [vmem:[%s14 + $0x18] sm:$0xff]
  %v2412 = vld [vmem:[%s14 + $0x20] sm:$0xff]
  %v2413 = vld [vmem:[%s14 + $0x28] sm:$0xff]
  %v2414 = vld [vmem:[%s14 + $0x30] sm:$0xff]
  %v2415 = vld [vmem:[%s14 + $0x38] sm:$0xff]
  %v2416 = vld [vmem:[%s14 + $0x40] sm:$0xff]
  %v2417 = vld [vmem:[%s14 + $0x48] sm:$0xff]
  %v2418 = vld [vmem:[%s14 + $0x50] sm:$0xff]
  %v2419 = vld [vmem:[%s14 + $0x58] sm:$0xff]
  %v2420 = vld [vmem:[%s14 + $0x60] sm:$0xff]
  %v2421 = vld [vmem:[%s14 + $0x68] sm:$0xff]
  %v2422 = vld [vmem:[%s14 + $0x70] sm:$0xff]
  %v2423 = vld [vmem:[%s14 + $0x78] sm:$0xff]
  %v2424 = vld [vmem:[%s15] sm:$0x3]
  %v2426 = vlaneseq
  %v2427 = vshrl.u32 %v2426, 7
  %v2428 = vsub.s32 0, %v2427
  %v2429 = vrot.slane %v2424, %v2428
  %v2430 = vlaneseq
  %v2431 = vshrl.u32 %v2430, 7
  %v2432 = vsub.s32 1, %v2431
  %v2433 = vrot.slane %v2424, %v2432
  %v2452 = vunpack.c.l.b16 %v2408
  %v2453 = vunpack.c.h.b16 %v2408
  %v2454 = vunpack.c.l.b16 %v2409
  %v2455 = vunpack.c.h.b16 %v2409
  %v2456 = vunpack.c.l.b16 %v2410
  %v2457 = vunpack.c.h.b16 %v2410
  %v2458 = vunpack.c.l.b16 %v2411
  %v2459 = vunpack.c.h.b16 %v2411
  %v2460 = vunpack.c.l.b16 %v2412
  %v2461 = vunpack.c.h.b16 %v2412
  %v2462 = vunpack.c.l.b16 %v2413
  %v2463 = vunpack.c.h.b16 %v2413
  %v2464 = vunpack.c.l.b16 %v2414
  %v2465 = vunpack.c.h.b16 %v2414
  %v2466 = vunpack.c.l.b16 %v2415
  %v2467 = vunpack.c.h.b16 %v2415
  %v2468 = vunpack.c.l.b16 %v2416
  %v2469 = vunpack.c.h.b16 %v2416
  %v2470 = vunpack.c.l.b16 %v2417
  %v2471 = vunpack.c.h.b16 %v2417
  %v2472 = vunpack.c.l.b16 %v2418
  %v2473 = vunpack.c.h.b16 %v2418
  %v2474 = vunpack.c.l.b16 %v2419
  %v2475 = vunpack.c.h.b16 %v2419
  %v2476 = vunpack.c.l.b16 %v2420
  %v2477 = vunpack.c.h.b16 %v2420
  %v2478 = vunpack.c.l.b16 %v2421
  %v2479 = vunpack.c.h.b16 %v2421
  %v2480 = vunpack.c.l.b16 %v2422
  %v2481 = vunpack.c.h.b16 %v2422
  %v2482 = vunpack.c.l.b16 %v2423
  %v2483 = vunpack.c.h.b16 %v2423
  %v2484 = vpack.c.b16 %v2454, %v2452
  %v2485 = vpack.c.b16 %v2455, %v2453
  %v2486 = vpack.c.b16 %v2458, %v2456
  %v2487 = vpack.c.b16 %v2459, %v2457
  %v2488 = vpack.c.b16 %v2462, %v2460
  %v2489 = vpack.c.b16 %v2463, %v2461
  %v2490 = vpack.c.b16 %v2466, %v2464
  %v2491 = vpack.c.b16 %v2467, %v2465
  %v2492 = vpack.c.b16 %v2470, %v2468
  %v2493 = vpack.c.b16 %v2471, %v2469
  %v2494 = vpack.c.b16 %v2474, %v2472
  %v2495 = vpack.c.b16 %v2475, %v2473
  %v2496 = vpack.c.b16 %v2478, %v2476
  %v2497 = vpack.c.b16 %v2479, %v2477
  %v2498 = vpack.c.b16 %v2482, %v2480
  %v2499 = vpack.c.b16 %v2483, %v2481
  %2516 = vmatprep.subr.bf16.mxu0 %v2485
  %2517 = vmatpush1.bf16.msra.mxu0 %v2484
  %2518 = vmatprep.subr.bf16.mxu0 %v2487
  %2519 = vmatpush1.bf16.msra.mxu0 %v2486
  %2520 = vmatprep.subr.bf16.mxu0 %v2489
  %2521 = vmatpush1.bf16.msra.mxu0 %v2488
  %2522 = vmatprep.subr.bf16.mxu0 %v2491
  %2523 = vmatpush1.bf16.msra.mxu0 %v2490
  %2524 = vmatprep.subr.bf16.mxu0 %v2493
  %2525 = vmatpush1.bf16.msra.mxu0 %v2492
  %2526 = vmatprep.subr.bf16.mxu0 %v2495
  %2527 = vmatpush1.bf16.msra.mxu0 %v2494
  %2528 = vmatprep.subr.bf16.mxu0 %v2497
  %2529 = vmatpush1.bf16.msra.mxu0 %v2496
  %2530 = vmatprep.subr.bf16.mxu0 %v2499
  %2531 = vmatpush1.bf16.msra.mxu0 %v2498
  %2532 = vmatprep.subr.bf16.mxu0 0
  %2533 = vmatpush1.bf16.msra.mxu0 0
  %2534 = vmatprep.subr.bf16.mxu0 0
  %2535 = vmatpush1.bf16.msra.mxu0 0
  %2536 = vmatprep.subr.bf16.mxu0 0
  %2537 = vmatpush1.bf16.msra.mxu0 0
  %2538 = vmatprep.subr.bf16.mxu0 0
  %2539 = vmatpush1.bf16.msra.mxu0 0
  %2540 = vmatprep.subr.bf16.mxu0 0
  %2541 = vmatpush1.bf16.msra.mxu0 0
  %2542 = vmatprep.subr.bf16.mxu0 0
  %2543 = vmatpush1.bf16.msra.mxu0 0
  %2544 = vmatprep.subr.bf16.mxu0 0
  %2545 = vmatpush1.bf16.msra.mxu0 0
  %2546 = vmatprep.subr.bf16.mxu0 0
  %2547 = vmatpush1.bf16.msra.mxu0 0
  %2548 = vmatprep.mubr.bf16.mxu0 0
  %2549 = vmatmul.mubr.bf16.gmra.mrb[0].mxu0 %v2407
  %v2550 = vpop.f32.mrb[0].mxu0
  %v2551 = vadd.f32 %v2429, %v2550
  %v2552 = vpop.f32.mrb[0].mxu0
  %v2553 = vadd.f32 %v2433, %v2552
  %v2554 = vpop.f32.mrb[0].mxu0
  %v2555 = vpop.f32.mrb[0].mxu0
  %2556 = vdwg.mxu0
  %v2557 = vpack.c.bf16 %v2551, %v2551
  %v2558 = vpack.c.bf16 %v2553, %v2553
  %v2559 = vld [vmem:[%s16] sm:$0xf]
  %v2560 = vld [vmem:[%s16 + $0x4] sm:$0xf]
  %v2561 = vld [vmem:[%s16 + $0x8] sm:$0xf]
  %v2562 = vld [vmem:[%s16 + $0xc] sm:$0xf]
  %v2563 = vld [vmem:[%s16 + $0x10] sm:$0xf]
  %v2564 = vld [vmem:[%s16 + $0x14] sm:$0xf]
  %v2565 = vld [vmem:[%s16 + $0x18] sm:$0xf]
  %v2566 = vld [vmem:[%s16 + $0x1c] sm:$0xf]
  %v2567 = vld [vmem:[%s16 + $0x20] sm:$0xf]
  %v2568 = vld [vmem:[%s16 + $0x24] sm:$0xf]
  %v2569 = vld [vmem:[%s16 + $0x28] sm:$0xf]
  %v2570 = vld [vmem:[%s16 + $0x2c] sm:$0xf]
  %v2571 = vld [vmem:[%s16 + $0x30] sm:$0xf]
  %v2572 = vld [vmem:[%s16 + $0x34] sm:$0xf]
  %v2573 = vld [vmem:[%s16 + $0x38] sm:$0xf]
  %v2574 = vld [vmem:[%s16 + $0x3c] sm:$0xf]
  %v2575 = vld [vmem:[%s16 + $0x40] sm:$0xf]
  %v2576 = vld [vmem:[%s16 + $0x44] sm:$0xf]
  %v2577 = vld [vmem:[%s16 + $0x48] sm:$0xf]
  %v2578 = vld [vmem:[%s16 + $0x4c] sm:$0xf]
  %v2579 = vld [vmem:[%s16 + $0x50] sm:$0xf]
  %v2580 = vld [vmem:[%s16 + $0x54] sm:$0xf]
  %v2581 = vld [vmem:[%s16 + $0x58] sm:$0xf]
  %v2582 = vld [vmem:[%s16 + $0x5c] sm:$0xf]
  %v2583 = vld [vmem:[%s16 + $0x60] sm:$0xf]
  %v2584 = vld [vmem:[%s16 + $0x64] sm:$0xf]
  %v2585 = vld [vmem:[%s16 + $0x68] sm:$0xf]
  %v2586 = vld [vmem:[%s16 + $0x6c] sm:$0xf]
  %v2587 = vld [vmem:[%s16 + $0x70] sm:$0xf]
  %v2588 = vld [vmem:[%s16 + $0x74] sm:$0xf]
  %v2589 = vld [vmem:[%s16 + $0x78] sm:$0xf]
  %v2590 = vld [vmem:[%s16 + $0x7c] sm:$0xf]
  %v2591 = vld [vmem:[%s17] sm:$0x1]
  %v2593 = vlaneseq
  %v2594 = vshrl.u32 %v2593, 7
  %v2595 = vsub.s32 0, %v2594
  %v2596 = vrot.slane %v2591, %v2595
  %v2630 = vunpack.c.l.b16 %v2559
  %v2631 = vunpack.c.l.b16 %v2560
  %v2632 = vunpack.c.l.b16 %v2561
  %v2633 = vunpack.c.l.b16 %v2562
  %v2634 = vunpack.c.l.b16 %v2563
  %v2635 = vunpack.c.l.b16 %v2564
  %v2636 = vunpack.c.l.b16 %v2565
  %v2637 = vunpack.c.l.b16 %v2566
  %v2638 = vunpack.c.l.b16 %v2567
  %v2639 = vunpack.c.l.b16 %v2568
  %v2640 = vunpack.c.l.b16 %v2569
  %v2641 = vunpack.c.l.b16 %v2570
  %v2642 = vunpack.c.l.b16 %v2571
  %v2643 = vunpack.c.l.b16 %v2572
  %v2644 = vunpack.c.l.b16 %v2573
  %v2645 = vunpack.c.l.b16 %v2574
  %v2646 = vunpack.c.l.b16 %v2575
  %v2647 = vunpack.c.l.b16 %v2576
  %v2648 = vunpack.c.l.b16 %v2577
  %v2649 = vunpack.c.l.b16 %v2578
  %v2650 = vunpack.c.l.b16 %v2579
  %v2651 = vunpack.c.l.b16 %v2580
  %v2652 = vunpack.c.l.b16 %v2581
  %v2653 = vunpack.c.l.b16 %v2582
  %v2654 = vunpack.c.l.b16 %v2583
  %v2655 = vunpack.c.l.b16 %v2584
  %v2656 = vunpack.c.l.b16 %v2585
  %v2657 = vunpack.c.l.b16 %v2586
  %v2658 = vunpack.c.l.b16 %v2587
  %v2659 = vunpack.c.l.b16 %v2588
  %v2660 = vunpack.c.l.b16 %v2589
  %v2661 = vunpack.c.l.b16 %v2590
  %v2662 = vpack.c.b16 %v2631, %v2630
  %v2663 = vpack.c.b16 %v2633, %v2632
  %v2664 = vpack.c.b16 %v2635, %v2634
  %v2665 = vpack.c.b16 %v2637, %v2636
  %v2666 = vpack.c.b16 %v2639, %v2638
  %v2667 = vpack.c.b16 %v2641, %v2640
  %v2668 = vpack.c.b16 %v2643, %v2642
  %v2669 = vpack.c.b16 %v2645, %v2644
  %v2670 = vpack.c.b16 %v2647, %v2646
  %v2671 = vpack.c.b16 %v2649, %v2648
  %v2672 = vpack.c.b16 %v2651, %v2650
  %v2673 = vpack.c.b16 %v2653, %v2652
  %v2674 = vpack.c.b16 %v2655, %v2654
  %v2675 = vpack.c.b16 %v2657, %v2656
  %v2676 = vpack.c.b16 %v2659, %v2658
  %v2677 = vpack.c.b16 %v2661, %v2660
  %2694 = vmatprep.subr.bf16.mxu0 0
  %2695 = vmatpush1.bf16.msra.mxu0 %v2662
  %2696 = vmatprep.subr.bf16.mxu0 0
  %2697 = vmatpush1.bf16.msra.mxu0 %v2663
  %2698 = vmatprep.subr.bf16.mxu0 0
  %2699 = vmatpush1.bf16.msra.mxu0 %v2664
  %2700 = vmatprep.subr.bf16.mxu0 0
  %2701 = vmatpush1.bf16.msra.mxu0 %v2665
  %2702 = vmatprep.subr.bf16.mxu0 0
  %2703 = vmatpush1.bf16.msra.mxu0 %v2666
  %2704 = vmatprep.subr.bf16.mxu0 0
  %2705 = vmatpush1.bf16.msra.mxu0 %v2667
  %2706 = vmatprep.subr.bf16.mxu0 0
  %2707 = vmatpush1.bf16.msra.mxu0 %v2668
  %2708 = vmatprep.subr.bf16.mxu0 0
  %2709 = vmatpush1.bf16.msra.mxu0 %v2669
  %2710 = vmatprep.subr.bf16.mxu0 0
  %2711 = vmatpush1.bf16.msra.mxu0 %v2670
  %2712 = vmatprep.subr.bf16.mxu0 0
  %2713 = vmatpush1.bf16.msra.mxu0 %v2671
  %2714 = vmatprep.subr.bf16.mxu0 0
  %2715 = vmatpush1.bf16.msra.mxu0 %v2672
  %2716 = vmatprep.subr.bf16.mxu0 0
  %2717 = vmatpush1.bf16.msra.mxu0 %v2673
  %2718 = vmatprep.subr.bf16.mxu0 0
  %2719 = vmatpush1.bf16.msra.mxu0 %v2674
  %2720 = vmatprep.subr.bf16.mxu0 0
  %2721 = vmatpush1.bf16.msra.mxu0 %v2675
  %2722 = vmatprep.subr.bf16.mxu0 0
  %2723 = vmatpush1.bf16.msra.mxu0 %v2676
  %2724 = vmatprep.subr.bf16.mxu0 0
  %2725 = vmatpush1.bf16.msra.mxu0 %v2677
  %2726 = vmatprep.mubr.bf16.mxu0 %v2558
  %2727 = vmatmul.mubr.bf16.gmra.mrb[0].mxu0 %v2557
  %v2728 = vpop.f32.mrb[0].mxu0
  %v2729 = vadd.f32 %v2596, %v2728
  %v2730 = vpop.f32.mrb[0].mxu0
  %v2731 = vpop.f32.mrb[0].mxu0
  %v2732 = vpop.f32.mrb[0].mxu0
  %2733 = vdwg.mxu0
  %2734 = vst [vmem:[%s18] sm:$0x3] %v2729
  // Predicated region
  $region74: #{seq2seq_forward.1} parent=0 // pred_check
    _
  $region75: #{seq2seq_forward.1} parent=0 // pred_check_branch
    %2736 = sbr.rel (0) target = $region77
  $region76: #{seq2seq_forward.1} parent=0 // pred_region
    _
  $region77: #{seq2seq_forward.1} parent=0 // pred_fallthru
    _
  // Predicated region
  $region78: #{seq2seq_forward.1} parent=0 // pred_check
    _
  $region79: #{seq2seq_forward.1} parent=0 // pred_check_branch
    %2738 = sbr.rel (0) target = $region81
  $region80: #{seq2seq_forward.1} parent=0 // pred_region
    _
  $region81: #{seq2seq_forward.1} parent=0 // pred_fallthru
    _

</llo_original>
